<compile_context>
chip_gen: v6e
topology: v6e:2x2x1
jax: 0.10.0
libtpu: 0.0.40
codegen_flags: <defaults>
</compile_context>

<pallas_src>
import functools

import jax
import jax.numpy as jnp
from jax import lax
from jax.experimental import pallas as pl
from jax.experimental.pallas import tpu as pltpu


def lstm_fc_kernel(x_ref, len_ref, wih_ref, whh_ref, b_ref,
                   w1_ref, b1_ref, w2_ref, b2_ref,
                   out_ref, xw_sc):
    """One grid step == one batch block. Full T recurrence + FC head inside."""
    BB = out_ref.shape[0]                 # rows of this batch block
    H = whh_ref.shape[0]                  # hidden size (lane-aligned, 128)
    T = xw_sc.shape[0] // BB              # number of timesteps

    # ---- Hoisted input projection: one big matmul, off the serial chain ----
    # x_ref: (T*BB, E) bf16, wih_ref: (E, 4H) bf16 -> f32 accumulate
    xw_sc[...] = (jnp.dot(x_ref[...], wih_ref[...],
                          preferred_element_type=jnp.float32)
                  + b_ref[...])                               # (+ b_ih + b_hh)

    lens = len_ref[...]                                       # (BB, 1) int32
    whh = whh_ref[...]                                        # (H, 4H) bf16

    def step(t, carry):
        h, c = carry                                          # (BB, H) f32
        row = pl.multiple_of(t * BB, BB)
        gates = (xw_sc[pl.ds(row, BB), :]
                 + jnp.dot(h.astype(whh.dtype), whh,
                           preferred_element_type=jnp.float32))   # (BB, 4H)
        # PyTorch LSTM gate order: i, f, g, o ; slices are lane-aligned (H=128)
        i_g = jax.nn.sigmoid(gates[:, 0 * H:1 * H])
        f_g = jax.nn.sigmoid(gates[:, 1 * H:2 * H])
        g_g = jnp.tanh(gates[:, 2 * H:3 * H])
        o_g = jax.nn.sigmoid(gates[:, 3 * H:4 * H])
        c_new = f_g * c + i_g * g_g
        h_new = o_g * jnp.tanh(c_new)
        # pack_padded_sequence semantics: freeze state once t >= length[b]
        mask = t < lens                                       # (BB, 1) bool
        return jnp.where(mask, h_new, h), jnp.where(mask, c_new, c)

    h0 = jnp.zeros((BB, H), jnp.float32)
    c0 = jnp.zeros((BB, H), jnp.float32)
    h, _ = lax.fori_loop(0, T, step, (h0, c0), unroll=True)

    # ---- FC head on the last valid hidden state ----
    z1 = jnp.dot(h.astype(w1_ref.dtype), w1_ref[...],
                 preferred_element_type=jnp.float32) + b1_ref[...]
    z1 = jnp.maximum(z1, 0.0)                                 # ReLU
    # fc2 (F -> 1): VPU multiply + lane reduce instead of a degenerate MXU pass
    z2 = jnp.sum(z1 * w2_ref[...], axis=-1, keepdims=True) + b2_ref[...]
    out_ref[...] = jax.nn.sigmoid(z2)                         # (BB, 1)


@functools.partial(jax.jit, static_argnames=("batch_block",))
def rnn_forward(text, lengths, params, *, batch_block=8):
    emb = params["emb"]
    B, T = text.shape
    E = emb.shape[1]
    H = params["whh_t"].shape[0]
    F = params["w1_t"].shape[1]
    assert B % batch_block == 0
    nb = B // batch_block

    # Embedding gather is glue (done by XLA); everything else is the kernel.
    x = jnp.take(emb, text, axis=0)                           # (B, T, E) f32
    # Layout plumbing: per batch block, time-major rows  (b, t, j) -> 2D slab
    x = x.reshape(nb, batch_block, T, E).transpose(0, 2, 1, 3)
    x = x.reshape(nb * T * batch_block, E).astype(jnp.bfloat16)

    len2d = lengths.astype(jnp.int32).reshape(B, 1)

    # bf16 weights for the MXU (f32 accumulate); biases / fc2 row stay f32.
    wih = params["wih_t"].astype(jnp.bfloat16)                # (E, 4H)
    whh = params["whh_t"].astype(jnp.bfloat16)                # (H, 4H)
    w1 = params["w1_t"].astype(jnp.bfloat16)                  # (H, F)

    tb = T * batch_block
    # NOTE: weight in_specs use a constant index_map, so their blocks are not
    # re-fetched across the (parallel) batch-block grid; at these sizes the
    # default double-buffering overhead is negligible.
    return pl.pallas_call(
        lstm_fc_kernel,
        out_shape=jax.ShapeDtypeStruct((B, 1), jnp.float32),
        grid_spec=pltpu.PrefetchScalarGridSpec(
            num_scalar_prefetch=0,
            grid=(nb,),
            in_specs=[
                pl.BlockSpec((tb, E), lambda b: (b, 0)),        # x (per block)
                pl.BlockSpec((batch_block, 1), lambda b: (b, 0)),  # lengths
                pl.BlockSpec((E, 4 * H), lambda b: (0, 0)),     # W_ih^T
                pl.BlockSpec((H, 4 * H), lambda b: (0, 0)),     # W_hh^T
                pl.BlockSpec((1, 4 * H), lambda b: (0, 0)),     # b_ih + b_hh
                pl.BlockSpec((H, F), lambda b: (0, 0)),         # fc1 W^T
                pl.BlockSpec((1, F), lambda b: (0, 0)),         # fc1 b
                pl.BlockSpec((1, F), lambda b: (0, 0)),         # fc2 W row
                pl.BlockSpec((1, 1), lambda b: (0, 0)),         # fc2 b
            ],
            out_specs=pl.BlockSpec((batch_block, 1), lambda b: (b, 0)),
            scratch_shapes=[pltpu.VMEM((tb, 4 * H), jnp.float32)],  # x@W_ih + b
        ),
        compiler_params=pltpu.CompilerParams(
            dimension_semantics=("parallel",)),                 # batch blocks
    )(x, len2d, wih, whh, params["b"], w1, params["b1"],
      params["w2_row"], params["b2"])


def rnn_reference(text, lengths, params):
    """Pure-JAX f32 reference mirroring the torch module's semantics."""
    x = jnp.take(params["emb"], text, axis=0).astype(jnp.float32)  # (B,T,E)
    B, T, _ = x.shape
    H = params["whh_t"].shape[0]
    h = jnp.zeros((B, H), jnp.float32)
    c = jnp.zeros((B, H), jnp.float32)
    for t in range(T):
        gates = x[:, t] @ params["wih_t"] + h @ params["whh_t"] + params["b"]
        i_g = jax.nn.sigmoid(gates[:, :H])
        f_g = jax.nn.sigmoid(gates[:, H:2 * H])
        g_g = jnp.tanh(gates[:, 2 * H:3 * H])
        o_g = jax.nn.sigmoid(gates[:, 3 * H:])
        c_new = f_g * c + i_g * g_g
        h_new = o_g * jnp.tanh(c_new)
        m = (t < lengths).reshape(B, 1)
        h = jnp.where(m, h_new, h)
        c = jnp.where(m, c_new, c)
    z1 = jnp.maximum(h @ params["w1_t"] + params["b1"], 0.0)
    logit = jnp.sum(z1 * params["w2_row"], axis=-1, keepdims=True) + params["b2"]
    return jax.nn.sigmoid(logit)


def init_params(key, vocab_size, embed_dim, hidden, fc_hidden):
    ks = jax.random.split(key, 9)
    scale = 0.1
    emb = scale * jax.random.normal(ks[0], (vocab_size, embed_dim), jnp.float32)
    emb = emb.at[0].set(0.0)                                   # padding_idx=0
    wih_t = scale * jax.random.normal(ks[1], (embed_dim, 4 * hidden), jnp.float32)
    whh_t = scale * jax.random.normal(ks[2], (hidden, 4 * hidden), jnp.float32)
    b = (scale * jax.random.normal(ks[3], (1, 4 * hidden), jnp.float32)
         + scale * jax.random.normal(ks[4], (1, 4 * hidden), jnp.float32))  # b_ih+b_hh
    w1_t = scale * jax.random.normal(ks[5], (hidden, fc_hidden), jnp.float32)
    b1 = scale * jax.random.normal(ks[6], (1, fc_hidden), jnp.float32)
    w2_row = scale * jax.random.normal(ks[7], (1, fc_hidden), jnp.float32)   # fc2 weight (1,F)
    b2 = scale * jax.random.normal(ks[8], (1, 1), jnp.float32)
    return dict(emb=emb, wih_t=wih_t, whh_t=whh_t, b=b,
                w1_t=w1_t, b1=b1, w2_row=w2_row, b2=b2)


if __name__ == "__main__":
    # Lane-aligned hidden sizes (128) and sublane-aligned batch blocks (8).
    VOCAB, EMBED, HIDDEN, FC_HIDDEN = 64, 64, 128, 128
    B, T = 16, 16                                  # 2 batch blocks of 8

    key = jax.random.PRNGKey(0)
    k_par, k_len, k_tok = jax.random.split(key, 3)
    params = init_params(k_par, VOCAB, EMBED, HIDDEN, FC_HIDDEN)

    lengths = jax.random.randint(k_len, (B,), 1, T + 1, dtype=jnp.int32)
    tokens = jax.random.randint(k_tok, (B, T), 1, VOCAB, dtype=jnp.int32)
    pos = jnp.arange(T)[None, :]
    text = jnp.where(pos < lengths[:, None], tokens, 0)        # pad with idx 0

    out = rnn_forward(text, lengths, params)
    jax.block_until_ready(out)

    ref = rnn_reference(text, lengths, params)
    assert out.shape == (B, 1)
    # bf16 MXU operands with f32 accumulation -> relaxed tolerance vs f32 ref.
    assert jnp.allclose(out, ref, atol=2e-2, rtol=2e-2), (
        f"max abs diff {jnp.max(jnp.abs(out - ref))}")
    print("KERNEL_OK")
</pallas_src>

<mosaic_0001>
module attributes {stable_mosaic.version = 11 : i64} {
  func.func @lstm_fc_kernel(%arg0: i32, %arg1: memref<128x64xbf16, #tpu.memory_space<vmem>>, %arg2: memref<8x1xi32, #tpu.memory_space<vmem>>, %arg3: memref<64x512xbf16, #tpu.memory_space<vmem>>, %arg4: memref<128x512xbf16, #tpu.memory_space<vmem>>, %arg5: memref<1x512xf32, #tpu.memory_space<vmem>>, %arg6: memref<128x128xbf16, #tpu.memory_space<vmem>>, %arg7: memref<1x128xf32, #tpu.memory_space<vmem>>, %arg8: memref<1x128xf32, #tpu.memory_space<vmem>>, %arg9: memref<1x1xf32, #tpu.memory_space<vmem>>, %arg10: memref<8x1xf32, #tpu.memory_space<vmem>>, %arg11: memref<128x512xf32, #tpu.memory_space<vmem>>) attributes {dimension_semantics = [#tpu.dimension_semantics<parallel>], iteration_bounds = array<i64: 2>, scalar_prefetch = 0 : i64, scratch_operands = 1 : i64, tpu.core_type = #tpu.core_type<tc>, window_params = [{transform_indices = @transform_0, window_bounds = array<i64: 128, 64>}, {transform_indices = @transform_1, window_bounds = array<i64: 8, 1>}, {pipeline_mode = #tpu.pipeline_mode<synchronous>, transform_indices = @transform_2, window_bounds = array<i64: 64, 512>}, {pipeline_mode = #tpu.pipeline_mode<synchronous>, transform_indices = @transform_3, window_bounds = array<i64: 128, 512>}, {pipeline_mode = #tpu.pipeline_mode<synchronous>, transform_indices = @transform_4, window_bounds = array<i64: 1, 512>}, {pipeline_mode = #tpu.pipeline_mode<synchronous>, transform_indices = @transform_5, window_bounds = array<i64: 128, 128>}, {pipeline_mode = #tpu.pipeline_mode<synchronous>, transform_indices = @transform_6, window_bounds = array<i64: 1, 128>}, {pipeline_mode = #tpu.pipeline_mode<synchronous>, transform_indices = @transform_7, window_bounds = array<i64: 1, 128>}, {pipeline_mode = #tpu.pipeline_mode<synchronous>, transform_indices = @transform_8, window_bounds = array<i64: 1, 1>}, {transform_indices = @transform_9, window_bounds = array<i64: 8, 1>}]} {
    %c0 = arith.constant 0 : index
    %c0_0 = arith.constant 0 : index
    %0 = vector.load %arg1[%c0, %c0_0] : memref<128x64xbf16, #tpu.memory_space<vmem>>, vector<128x64xbf16>
    %c0_1 = arith.constant 0 : index
    %c0_2 = arith.constant 0 : index
    %1 = vector.load %arg3[%c0_1, %c0_2] : memref<64x512xbf16, #tpu.memory_space<vmem>>, vector<64x512xbf16>
    %cst = arith.constant dense<0.000000e+00> : vector<128x512xf32>
    %2 = tpu.matmul %0, %1, %cst {dimension_numbers = #tpu.dot_dimension_numbers<[1], [0], [0], [1], [0, 0, 1, 1], [], []>} : vector<128x64xbf16>, vector<64x512xbf16>, vector<128x512xf32> -> vector<128x512xf32>
    %c0_3 = arith.constant 0 : index
    %c0_4 = arith.constant 0 : index
    %3 = vector.load %arg5[%c0_3, %c0_4] : memref<1x512xf32, #tpu.memory_space<vmem>>, vector<1x512xf32>
    %4 = vector.broadcast %3 : vector<1x512xf32> to vector<128x512xf32>
    %5 = arith.addf %2, %4 : vector<128x512xf32>
    %c0_5 = arith.constant 0 : index
    %c0_6 = arith.constant 0 : index
    %6 = vector.load %arg11[%c0_5, %c0_6] : memref<128x512xf32, #tpu.memory_space<vmem>>, vector<128x512xf32>
    tpu.vector_store %arg11[%c0_5, %c0_6], %5 {strides = array<i32>} : memref<128x512xf32, #tpu.memory_space<vmem>>, vector<128x512xf32>,
    %c0_7 = arith.constant 0 : index
    %c0_8 = arith.constant 0 : index
    %7 = vector.load %arg2[%c0_7, %c0_8] : memref<8x1xi32, #tpu.memory_space<vmem>>, vector<8x1xi32>
    %c0_9 = arith.constant 0 : index
    %c0_10 = arith.constant 0 : index
    %8 = vector.load %arg4[%c0_9, %c0_10] : memref<128x512xbf16, #tpu.memory_space<vmem>>, vector<128x512xbf16>
    %cst_11 = arith.constant 0.000000e+00 : f32
    %9 = vector.broadcast %cst_11 : f32 to vector<8x128xf32>
    %cst_12 = arith.constant 0.000000e+00 : f32
    %10 = vector.broadcast %cst_12 : f32 to vector<8x128xf32>
    %c0_i32 = arith.constant 0 : i32
    %c8_i32 = arith.constant 8 : i32
    %11 = arith.muli %c0_i32, %c8_i32 : i32
    %12 = tpu.assume_multiple %11, 8 : i32
    %13 = arith.index_cast %12 : i32 to index
    %c0_13 = arith.constant 0 : index
    %14 = vector.load %arg11[%13, %c0_13] : memref<128x512xf32, #tpu.memory_space<vmem>>, vector<8x512xf32>
    %15 = arith.truncf %9 : vector<8x128xf32> to vector<8x128xbf16>
    %cst_14 = arith.constant dense<0.000000e+00> : vector<8x512xf32>
    %16 = tpu.matmul %15, %8, %cst_14 {dimension_numbers = #tpu.dot_dimension_numbers<[1], [0], [0], [1], [0, 0, 1, 1], [], []>} : vector<8x128xbf16>, vector<128x512xbf16>, vector<8x512xf32> -> vector<8x512xf32>
    %17 = arith.addf %14, %16 : vector<8x512xf32>
    %18 = vector.extract_strided_slice %17 {offsets = [0, 0], sizes = [8, 128], strides = [1, 1]} : vector<8x512xf32> to vector<8x128xf32>
    %19 = arith.negf %18 : vector<8x128xf32>
    %20 = math.exp %19 : vector<8x128xf32>
    %cst_15 = arith.constant 1.000000e+00 : f32
    %21 = vector.broadcast %cst_15 : f32 to vector<8x128xf32>
    %22 = arith.addf %21, %20 : vector<8x128xf32>
    %23 = arith.divf %21, %22 : vector<8x128xf32>
    %24 = vector.extract_strided_slice %17 {offsets = [0, 128], sizes = [8, 128], strides = [1, 1]} : vector<8x512xf32> to vector<8x128xf32>
    %25 = arith.negf %24 : vector<8x128xf32>
    %26 = math.exp %25 : vector<8x128xf32>
    %cst_16 = arith.constant 1.000000e+00 : f32
    %27 = vector.broadcast %cst_16 : f32 to vector<8x128xf32>
    %28 = arith.addf %27, %26 : vector<8x128xf32>
    %29 = arith.divf %27, %28 : vector<8x128xf32>
    %30 = vector.extract_strided_slice %17 {offsets = [0, 256], sizes = [8, 128], strides = [1, 1]} : vector<8x512xf32> to vector<8x128xf32>
    %31 = math.tanh %30 : vector<8x128xf32>
    %32 = vector.extract_strided_slice %17 {offsets = [0, 384], sizes = [8, 128], strides = [1, 1]} : vector<8x512xf32> to vector<8x128xf32>
    %33 = arith.negf %32 : vector<8x128xf32>
    %34 = math.exp %33 : vector<8x128xf32>
    %cst_17 = arith.constant 1.000000e+00 : f32
    %35 = vector.broadcast %cst_17 : f32 to vector<8x128xf32>
    %36 = arith.addf %35, %34 : vector<8x128xf32>
    %37 = arith.divf %35, %36 : vector<8x128xf32>
    %38 = arith.mulf %29, %10 : vector<8x128xf32>
    %39 = arith.mulf %23, %31 : vector<8x128xf32>
    %40 = arith.addf %38, %39 : vector<8x128xf32>
    %41 = math.tanh %40 : vector<8x128xf32>
    %42 = arith.mulf %37, %41 : vector<8x128xf32>
    %43 = vector.broadcast %c0_i32 : i32 to vector<8x1xi32>
    %44 = arith.cmpi slt, %43, %7 : vector<8x1xi32>
    %45 = vector.shape_cast %44 : vector<8x1xi1> to vector<8x1xi1>
    %46 = vector.broadcast %45 : vector<8x1xi1> to vector<8x128xi1>
    %47 = arith.select %46, %42, %9 : vector<8x128xi1>, vector<8x128xf32>
    %48 = vector.shape_cast %44 : vector<8x1xi1> to vector<8x1xi1>
    %49 = vector.broadcast %48 : vector<8x1xi1> to vector<8x128xi1>
    %50 = arith.select %49, %40, %10 : vector<8x128xi1>, vector<8x128xf32>
    %c1_i32 = arith.constant 1 : i32
    %c8_i32_18 = arith.constant 8 : i32
    %51 = arith.muli %c1_i32, %c8_i32_18 : i32
    %52 = tpu.assume_multiple %51, 8 : i32
    %53 = arith.index_cast %52 : i32 to index
    %c0_19 = arith.constant 0 : index
    %54 = vector.load %arg11[%53, %c0_19] : memref<128x512xf32, #tpu.memory_space<vmem>>, vector<8x512xf32>
    %55 = arith.truncf %47 : vector<8x128xf32> to vector<8x128xbf16>
    %cst_20 = arith.constant dense<0.000000e+00> : vector<8x512xf32>
    %56 = tpu.matmul %55, %8, %cst_20 {dimension_numbers = #tpu.dot_dimension_numbers<[1], [0], [0], [1], [0, 0, 1, 1], [], []>} : vector<8x128xbf16>, vector<128x512xbf16>, vector<8x512xf32> -> vector<8x512xf32>
    %57 = arith.addf %54, %56 : vector<8x512xf32>
    %58 = vector.extract_strided_slice %57 {offsets = [0, 0], sizes = [8, 128], strides = [1, 1]} : vector<8x512xf32> to vector<8x128xf32>
    %59 = arith.negf %58 : vector<8x128xf32>
    %60 = math.exp %59 : vector<8x128xf32>
    %cst_21 = arith.constant 1.000000e+00 : f32
    %61 = vector.broadcast %cst_21 : f32 to vector<8x128xf32>
    %62 = arith.addf %61, %60 : vector<8x128xf32>
    %63 = arith.divf %61, %62 : vector<8x128xf32>
    %64 = vector.extract_strided_slice %57 {offsets = [0, 128], sizes = [8, 128], strides = [1, 1]} : vector<8x512xf32> to vector<8x128xf32>
    %65 = arith.negf %64 : vector<8x128xf32>
    %66 = math.exp %65 : vector<8x128xf32>
    %cst_22 = arith.constant 1.000000e+00 : f32
    %67 = vector.broadcast %cst_22 : f32 to vector<8x128xf32>
    %68 = arith.addf %67, %66 : vector<8x128xf32>
    %69 = arith.divf %67, %68 : vector<8x128xf32>
    %70 = vector.extract_strided_slice %57 {offsets = [0, 256], sizes = [8, 128], strides = [1, 1]} : vector<8x512xf32> to vector<8x128xf32>
    %71 = math.tanh %70 : vector<8x128xf32>
    %72 = vector.extract_strided_slice %57 {offsets = [0, 384], sizes = [8, 128], strides = [1, 1]} : vector<8x512xf32> to vector<8x128xf32>
    %73 = arith.negf %72 : vector<8x128xf32>
    %74 = math.exp %73 : vector<8x128xf32>
    %cst_23 = arith.constant 1.000000e+00 : f32
    %75 = vector.broadcast %cst_23 : f32 to vector<8x128xf32>
    %76 = arith.addf %75, %74 : vector<8x128xf32>
    %77 = arith.divf %75, %76 : vector<8x128xf32>
    %78 = arith.mulf %69, %50 : vector<8x128xf32>
    %79 = arith.mulf %63, %71 : vector<8x128xf32>
    %80 = arith.addf %78, %79 : vector<8x128xf32>
    %81 = math.tanh %80 : vector<8x128xf32>
    %82 = arith.mulf %77, %81 : vector<8x128xf32>
    %83 = vector.broadcast %c1_i32 : i32 to vector<8x1xi32>
    %84 = arith.cmpi slt, %83, %7 : vector<8x1xi32>
    %85 = vector.shape_cast %84 : vector<8x1xi1> to vector<8x1xi1>
    %86 = vector.broadcast %85 : vector<8x1xi1> to vector<8x128xi1>
    %87 = arith.select %86, %82, %47 : vector<8x128xi1>, vector<8x128xf32>
    %88 = vector.shape_cast %84 : vector<8x1xi1> to vector<8x1xi1>
    %89 = vector.broadcast %88 : vector<8x1xi1> to vector<8x128xi1>
    %90 = arith.select %89, %80, %50 : vector<8x128xi1>, vector<8x128xf32>
    %c2_i32 = arith.constant 2 : i32
    %c8_i32_24 = arith.constant 8 : i32
    %91 = arith.muli %c2_i32, %c8_i32_24 : i32
    %92 = tpu.assume_multiple %91, 8 : i32
    %93 = arith.index_cast %92 : i32 to index
    %c0_25 = arith.constant 0 : index
    %94 = vector.load %arg11[%93, %c0_25] : memref<128x512xf32, #tpu.memory_space<vmem>>, vector<8x512xf32>
    %95 = arith.truncf %87 : vector<8x128xf32> to vector<8x128xbf16>
    %cst_26 = arith.constant dense<0.000000e+00> : vector<8x512xf32>
    %96 = tpu.matmul %95, %8, %cst_26 {dimension_numbers = #tpu.dot_dimension_numbers<[1], [0], [0], [1], [0, 0, 1, 1], [], []>} : vector<8x128xbf16>, vector<128x512xbf16>, vector<8x512xf32> -> vector<8x512xf32>
    %97 = arith.addf %94, %96 : vector<8x512xf32>
    %98 = vector.extract_strided_slice %97 {offsets = [0, 0], sizes = [8, 128], strides = [1, 1]} : vector<8x512xf32> to vector<8x128xf32>
    %99 = arith.negf %98 : vector<8x128xf32>
    %100 = math.exp %99 : vector<8x128xf32>
    %cst_27 = arith.constant 1.000000e+00 : f32
    %101 = vector.broadcast %cst_27 : f32 to vector<8x128xf32>
    %102 = arith.addf %101, %100 : vector<8x128xf32>
    %103 = arith.divf %101, %102 : vector<8x128xf32>
    %104 = vector.extract_strided_slice %97 {offsets = [0, 128], sizes = [8, 128], strides = [1, 1]} : vector<8x512xf32> to vector<8x128xf32>
    %105 = arith.negf %104 : vector<8x128xf32>
    %106 = math.exp %105 : vector<8x128xf32>
    %cst_28 = arith.constant 1.000000e+00 : f32
    %107 = vector.broadcast %cst_28 : f32 to vector<8x128xf32>
    %108 = arith.addf %107, %106 : vector<8x128xf32>
    %109 = arith.divf %107, %108 : vector<8x128xf32>
    %110 = vector.extract_strided_slice %97 {offsets = [0, 256], sizes = [8, 128], strides = [1, 1]} : vector<8x512xf32> to vector<8x128xf32>
    %111 = math.tanh %110 : vector<8x128xf32>
    %112 = vector.extract_strided_slice %97 {offsets = [0, 384], sizes = [8, 128], strides = [1, 1]} : vector<8x512xf32> to vector<8x128xf32>
    %113 = arith.negf %112 : vector<8x128xf32>
    %114 = math.exp %113 : vector<8x128xf32>
    %cst_29 = arith.constant 1.000000e+00 : f32
    %115 = vector.broadcast %cst_29 : f32 to vector<8x128xf32>
    %116 = arith.addf %115, %114 : vector<8x128xf32>
    %117 = arith.divf %115, %116 : vector<8x128xf32>
    %118 = arith.mulf %109, %90 : vector<8x128xf32>
    %119 = arith.mulf %103, %111 : vector<8x128xf32>
    %120 = arith.addf %118, %119 : vector<8x128xf32>
    %121 = math.tanh %120 : vector<8x128xf32>
    %122 = arith.mulf %117, %121 : vector<8x128xf32>
    %123 = vector.broadcast %c2_i32 : i32 to vector<8x1xi32>
    %124 = arith.cmpi slt, %123, %7 : vector<8x1xi32>
    %125 = vector.shape_cast %124 : vector<8x1xi1> to vector<8x1xi1>
    %126 = vector.broadcast %125 : vector<8x1xi1> to vector<8x128xi1>
    %127 = arith.select %126, %122, %87 : vector<8x128xi1>, vector<8x128xf32>
    %128 = vector.shape_cast %124 : vector<8x1xi1> to vector<8x1xi1>
    %129 = vector.broadcast %128 : vector<8x1xi1> to vector<8x128xi1>
    %130 = arith.select %129, %120, %90 : vector<8x128xi1>, vector<8x128xf32>
    %c3_i32 = arith.constant 3 : i32
    %c8_i32_30 = arith.constant 8 : i32
    %131 = arith.muli %c3_i32, %c8_i32_30 : i32
    %132 = tpu.assume_multiple %131, 8 : i32
    %133 = arith.index_cast %132 : i32 to index
    %c0_31 = arith.constant 0 : index
    %134 = vector.load %arg11[%133, %c0_31] : memref<128x512xf32, #tpu.memory_space<vmem>>, vector<8x512xf32>
    %135 = arith.truncf %127 : vector<8x128xf32> to vector<8x128xbf16>
    %cst_32 = arith.constant dense<0.000000e+00> : vector<8x512xf32>
    %136 = tpu.matmul %135, %8, %cst_32 {dimension_numbers = #tpu.dot_dimension_numbers<[1], [0], [0], [1], [0, 0, 1, 1], [], []>} : vector<8x128xbf16>, vector<128x512xbf16>, vector<8x512xf32> -> vector<8x512xf32>
    %137 = arith.addf %134, %136 : vector<8x512xf32>
    %138 = vector.extract_strided_slice %137 {offsets = [0, 0], sizes = [8, 128], strides = [1, 1]} : vector<8x512xf32> to vector<8x128xf32>
    %139 = arith.negf %138 : vector<8x128xf32>
    %140 = math.exp %139 : vector<8x128xf32>
    %cst_33 = arith.constant 1.000000e+00 : f32
    %141 = vector.broadcast %cst_33 : f32 to vector<8x128xf32>
    %142 = arith.addf %141, %140 : vector<8x128xf32>
    %143 = arith.divf %141, %142 : vector<8x128xf32>
    %144 = vector.extract_strided_slice %137 {offsets = [0, 128], sizes = [8, 128], strides = [1, 1]} : vector<8x512xf32> to vector<8x128xf32>
    %145 = arith.negf %144 : vector<8x128xf32>
    %146 = math.exp %145 : vector<8x128xf32>
    %cst_34 = arith.constant 1.000000e+00 : f32
    %147 = vector.broadcast %cst_34 : f32 to vector<8x128xf32>
    %148 = arith.addf %147, %146 : vector<8x128xf32>
    %149 = arith.divf %147, %148 : vector<8x128xf32>
    %150 = vector.extract_strided_slice %137 {offsets = [0, 256], sizes = [8, 128], strides = [1, 1]} : vector<8x512xf32> to vector<8x128xf32>
    %151 = math.tanh %150 : vector<8x128xf32>
    %152 = vector.extract_strided_slice %137 {offsets = [0, 384], sizes = [8, 128], strides = [1, 1]} : vector<8x512xf32> to vector<8x128xf32>
    %153 = arith.negf %152 : vector<8x128xf32>
    %154 = math.exp %153 : vector<8x128xf32>
    %cst_35 = arith.constant 1.000000e+00 : f32
    %155 = vector.broadcast %cst_35 : f32 to vector<8x128xf32>
    %156 = arith.addf %155, %154 : vector<8x128xf32>
    %157 = arith.divf %155, %156 : vector<8x128xf32>
    %158 = arith.mulf %149, %130 : vector<8x128xf32>
    %159 = arith.mulf %143, %151 : vector<8x128xf32>
    %160 = arith.addf %158, %159 : vector<8x128xf32>
    %161 = math.tanh %160 : vector<8x128xf32>
    %162 = arith.mulf %157, %161 : vector<8x128xf32>
    %163 = vector.broadcast %c3_i32 : i32 to vector<8x1xi32>
    %164 = arith.cmpi slt, %163, %7 : vector<8x1xi32>
    %165 = vector.shape_cast %164 : vector<8x1xi1> to vector<8x1xi1>
    %166 = vector.broadcast %165 : vector<8x1xi1> to vector<8x128xi1>
    %167 = arith.select %166, %162, %127 : vector<8x128xi1>, vector<8x128xf32>
    %168 = vector.shape_cast %164 : vector<8x1xi1> to vector<8x1xi1>
    %169 = vector.broadcast %168 : vector<8x1xi1> to vector<8x128xi1>
    %170 = arith.select %169, %160, %130 : vector<8x128xi1>, vector<8x128xf32>
    %c4_i32 = arith.constant 4 : i32
    %c8_i32_36 = arith.constant 8 : i32
    %171 = arith.muli %c4_i32, %c8_i32_36 : i32
    %172 = tpu.assume_multiple %171, 8 : i32
    %173 = arith.index_cast %172 : i32 to index
    %c0_37 = arith.constant 0 : index
    %174 = vector.load %arg11[%173, %c0_37] : memref<128x512xf32, #tpu.memory_space<vmem>>, vector<8x512xf32>
    %175 = arith.truncf %167 : vector<8x128xf32> to vector<8x128xbf16>
    %cst_38 = arith.constant dense<0.000000e+00> : vector<8x512xf32>
    %176 = tpu.matmul %175, %8, %cst_38 {dimension_numbers = #tpu.dot_dimension_numbers<[1], [0], [0], [1], [0, 0, 1, 1], [], []>} : vector<8x128xbf16>, vector<128x512xbf16>, vector<8x512xf32> -> vector<8x512xf32>
    %177 = arith.addf %174, %176 : vector<8x512xf32>
    %178 = vector.extract_strided_slice %177 {offsets = [0, 0], sizes = [8, 128], strides = [1, 1]} : vector<8x512xf32> to vector<8x128xf32>
    %179 = arith.negf %178 : vector<8x128xf32>
    %180 = math.exp %179 : vector<8x128xf32>
    %cst_39 = arith.constant 1.000000e+00 : f32
    %181 = vector.broadcast %cst_39 : f32 to vector<8x128xf32>
    %182 = arith.addf %181, %180 : vector<8x128xf32>
    %183 = arith.divf %181, %182 : vector<8x128xf32>
    %184 = vector.extract_strided_slice %177 {offsets = [0, 128], sizes = [8, 128], strides = [1, 1]} : vector<8x512xf32> to vector<8x128xf32>
    %185 = arith.negf %184 : vector<8x128xf32>
    %186 = math.exp %185 : vector<8x128xf32>
    %cst_40 = arith.constant 1.000000e+00 : f32
    %187 = vector.broadcast %cst_40 : f32 to vector<8x128xf32>
    %188 = arith.addf %187, %186 : vector<8x128xf32>
    %189 = arith.divf %187, %188 : vector<8x128xf32>
    %190 = vector.extract_strided_slice %177 {offsets = [0, 256], sizes = [8, 128], strides = [1, 1]} : vector<8x512xf32> to vector<8x128xf32>
    %191 = math.tanh %190 : vector<8x128xf32>
    %192 = vector.extract_strided_slice %177 {offsets = [0, 384], sizes = [8, 128], strides = [1, 1]} : vector<8x512xf32> to vector<8x128xf32>
    %193 = arith.negf %192 : vector<8x128xf32>
    %194 = math.exp %193 : vector<8x128xf32>
    %cst_41 = arith.constant 1.000000e+00 : f32
    %195 = vector.broadcast %cst_41 : f32 to vector<8x128xf32>
    %196 = arith.addf %195, %194 : vector<8x128xf32>
    %197 = arith.divf %195, %196 : vector<8x128xf32>
    %198 = arith.mulf %189, %170 : vector<8x128xf32>
    %199 = arith.mulf %183, %191 : vector<8x128xf32>
    %200 = arith.addf %198, %199 : vector<8x128xf32>
    %201 = math.tanh %200 : vector<8x128xf32>
    %202 = arith.mulf %197, %201 : vector<8x128xf32>
    %203 = vector.broadcast %c4_i32 : i32 to vector<8x1xi32>
    %204 = arith.cmpi slt, %203, %7 : vector<8x1xi32>
    %205 = vector.shape_cast %204 : vector<8x1xi1> to vector<8x1xi1>
    %206 = vector.broadcast %205 : vector<8x1xi1> to vector<8x128xi1>
    %207 = arith.select %206, %202, %167 : vector<8x128xi1>, vector<8x128xf32>
    %208 = vector.shape_cast %204 : vector<8x1xi1> to vector<8x1xi1>
    %209 = vector.broadcast %208 : vector<8x1xi1> to vector<8x128xi1>
    %210 = arith.select %209, %200, %170 : vector<8x128xi1>, vector<8x128xf32>
    %c5_i32 = arith.constant 5 : i32
    %c8_i32_42 = arith.constant 8 : i32
    %211 = arith.muli %c5_i32, %c8_i32_42 : i32
    %212 = tpu.assume_multiple %211, 8 : i32
    %213 = arith.index_cast %212 : i32 to index
    %c0_43 = arith.constant 0 : index
    %214 = vector.load %arg11[%213, %c0_43] : memref<128x512xf32, #tpu.memory_space<vmem>>, vector<8x512xf32>
    %215 = arith.truncf %207 : vector<8x128xf32> to vector<8x128xbf16>
    %cst_44 = arith.constant dense<0.000000e+00> : vector<8x512xf32>
    %216 = tpu.matmul %215, %8, %cst_44 {dimension_numbers = #tpu.dot_dimension_numbers<[1], [0], [0], [1], [0, 0, 1, 1], [], []>} : vector<8x128xbf16>, vector<128x512xbf16>, vector<8x512xf32> -> vector<8x512xf32>
    %217 = arith.addf %214, %216 : vector<8x512xf32>
    %218 = vector.extract_strided_slice %217 {offsets = [0, 0], sizes = [8, 128], strides = [1, 1]} : vector<8x512xf32> to vector<8x128xf32>
    %219 = arith.negf %218 : vector<8x128xf32>
    %220 = math.exp %219 : vector<8x128xf32>
    %cst_45 = arith.constant 1.000000e+00 : f32
    %221 = vector.broadcast %cst_45 : f32 to vector<8x128xf32>
    %222 = arith.addf %221, %220 : vector<8x128xf32>
    %223 = arith.divf %221, %222 : vector<8x128xf32>
    %224 = vector.extract_strided_slice %217 {offsets = [0, 128], sizes = [8, 128], strides = [1, 1]} : vector<8x512xf32> to vector<8x128xf32>
    %225 = arith.negf %224 : vector<8x128xf32>
    %226 = math.exp %225 : vector<8x128xf32>
    %cst_46 = arith.constant 1.000000e+00 : f32
    %227 = vector.broadcast %cst_46 : f32 to vector<8x128xf32>
    %228 = arith.addf %227, %226 : vector<8x128xf32>
    %229 = arith.divf %227, %228 : vector<8x128xf32>
    %230 = vector.extract_strided_slice %217 {offsets = [0, 256], sizes = [8, 128], strides = [1, 1]} : vector<8x512xf32> to vector<8x128xf32>
    %231 = math.tanh %230 : vector<8x128xf32>
    %232 = vector.extract_strided_slice %217 {offsets = [0, 384], sizes = [8, 128], strides = [1, 1]} : vector<8x512xf32> to vector<8x128xf32>
    %233 = arith.negf %232 : vector<8x128xf32>
    %234 = math.exp %233 : vector<8x128xf32>
    %cst_47 = arith.constant 1.000000e+00 : f32
    %235 = vector.broadcast %cst_47 : f32 to vector<8x128xf32>
    %236 = arith.addf %235, %234 : vector<8x128xf32>
    %237 = arith.divf %235, %236 : vector<8x128xf32>
    %238 = arith.mulf %229, %210 : vector<8x128xf32>
    %239 = arith.mulf %223, %231 : vector<8x128xf32>
    %240 = arith.addf %238, %239 : vector<8x128xf32>
    %241 = math.tanh %240 : vector<8x128xf32>
    %242 = arith.mulf %237, %241 : vector<8x128xf32>
    %243 = vector.broadcast %c5_i32 : i32 to vector<8x1xi32>
    %244 = arith.cmpi slt, %243, %7 : vector<8x1xi32>
    %245 = vector.shape_cast %244 : vector<8x1xi1> to vector<8x1xi1>
    %246 = vector.broadcast %245 : vector<8x1xi1> to vector<8x128xi1>
    %247 = arith.select %246, %242, %207 : vector<8x128xi1>, vector<8x128xf32>
    %248 = vector.shape_cast %244 : vector<8x1xi1> to vector<8x1xi1>
    %249 = vector.broadcast %248 : vector<8x1xi1> to vector<8x128xi1>
    %250 = arith.select %249, %240, %210 : vector<8x128xi1>, vector<8x128xf32>
    %c6_i32 = arith.constant 6 : i32
    %c8_i32_48 = arith.constant 8 : i32
    %251 = arith.muli %c6_i32, %c8_i32_48 : i32
    %252 = tpu.assume_multiple %251, 8 : i32
    %253 = arith.index_cast %252 : i32 to index
    %c0_49 = arith.constant 0 : index
    %254 = vector.load %arg11[%253, %c0_49] : memref<128x512xf32, #tpu.memory_space<vmem>>, vector<8x512xf32>
    %255 = arith.truncf %247 : vector<8x128xf32> to vector<8x128xbf16>
    %cst_50 = arith.constant dense<0.000000e+00> : vector<8x512xf32>
    %256 = tpu.matmul %255, %8, %cst_50 {dimension_numbers = #tpu.dot_dimension_numbers<[1], [0], [0], [1], [0, 0, 1, 1], [], []>} : vector<8x128xbf16>, vector<128x512xbf16>, vector<8x512xf32> -> vector<8x512xf32>
    %257 = arith.addf %254, %256 : vector<8x512xf32>
    %258 = vector.extract_strided_slice %257 {offsets = [0, 0], sizes = [8, 128], strides = [1, 1]} : vector<8x512xf32> to vector<8x128xf32>
    %259 = arith.negf %258 : vector<8x128xf32>
    %260 = math.exp %259 : vector<8x128xf32>
    %cst_51 = arith.constant 1.000000e+00 : f32
    %261 = vector.broadcast %cst_51 : f32 to vector<8x128xf32>
    %262 = arith.addf %261, %260 : vector<8x128xf32>
    %263 = arith.divf %261, %262 : vector<8x128xf32>
    %264 = vector.extract_strided_slice %257 {offsets = [0, 128], sizes = [8, 128], strides = [1, 1]} : vector<8x512xf32> to vector<8x128xf32>
    %265 = arith.negf %264 : vector<8x128xf32>
    %266 = math.exp %265 : vector<8x128xf32>
    %cst_52 = arith.constant 1.000000e+00 : f32
    %267 = vector.broadcast %cst_52 : f32 to vector<8x128xf32>
    %268 = arith.addf %267, %266 : vector<8x128xf32>
    %269 = arith.divf %267, %268 : vector<8x128xf32>
    %270 = vector.extract_strided_slice %257 {offsets = [0, 256], sizes = [8, 128], strides = [1, 1]} : vector<8x512xf32> to vector<8x128xf32>
    %271 = math.tanh %270 : vector<8x128xf32>
    %272 = vector.extract_strided_slice %257 {offsets = [0, 384], sizes = [8, 128], strides = [1, 1]} : vector<8x512xf32> to vector<8x128xf32>
    %273 = arith.negf %272 : vector<8x128xf32>
    %274 = math.exp %273 : vector<8x128xf32>
    %cst_53 = arith.constant 1.000000e+00 : f32
    %275 = vector.broadcast %cst_53 : f32 to vector<8x128xf32>
    %276 = arith.addf %275, %274 : vector<8x128xf32>
    %277 = arith.divf %275, %276 : vector<8x128xf32>
    %278 = arith.mulf %269, %250 : vector<8x128xf32>
    %279 = arith.mulf %263, %271 : vector<8x128xf32>
    %280 = arith.addf %278, %279 : vector<8x128xf32>
    %281 = math.tanh %280 : vector<8x128xf32>
    %282 = arith.mulf %277, %281 : vector<8x128xf32>
    %283 = vector.broadcast %c6_i32 : i32 to vector<8x1xi32>
    %284 = arith.cmpi slt, %283, %7 : vector<8x1xi32>
    %285 = vector.shape_cast %284 : vector<8x1xi1> to vector<8x1xi1>
    %286 = vector.broadcast %285 : vector<8x1xi1> to vector<8x128xi1>
    %287 = arith.select %286, %282, %247 : vector<8x128xi1>, vector<8x128xf32>
    %288 = vector.shape_cast %284 : vector<8x1xi1> to vector<8x1xi1>
    %289 = vector.broadcast %288 : vector<8x1xi1> to vector<8x128xi1>
    %290 = arith.select %289, %280, %250 : vector<8x128xi1>, vector<8x128xf32>
    %c7_i32 = arith.constant 7 : i32
    %c8_i32_54 = arith.constant 8 : i32
    %291 = arith.muli %c7_i32, %c8_i32_54 : i32
    %292 = tpu.assume_multiple %291, 8 : i32
    %293 = arith.index_cast %292 : i32 to index
    %c0_55 = arith.constant 0 : index
    %294 = vector.load %arg11[%293, %c0_55] : memref<128x512xf32, #tpu.memory_space<vmem>>, vector<8x512xf32>
    %295 = arith.truncf %287 : vector<8x128xf32> to vector<8x128xbf16>
    %cst_56 = arith.constant dense<0.000000e+00> : vector<8x512xf32>
    %296 = tpu.matmul %295, %8, %cst_56 {dimension_numbers = #tpu.dot_dimension_numbers<[1], [0], [0], [1], [0, 0, 1, 1], [], []>} : vector<8x128xbf16>, vector<128x512xbf16>, vector<8x512xf32> -> vector<8x512xf32>
    %297 = arith.addf %294, %296 : vector<8x512xf32>
    %298 = vector.extract_strided_slice %297 {offsets = [0, 0], sizes = [8, 128], strides = [1, 1]} : vector<8x512xf32> to vector<8x128xf32>
    %299 = arith.negf %298 : vector<8x128xf32>
    %300 = math.exp %299 : vector<8x128xf32>
    %cst_57 = arith.constant 1.000000e+00 : f32
    %301 = vector.broadcast %cst_57 : f32 to vector<8x128xf32>
    %302 = arith.addf %301, %300 : vector<8x128xf32>
    %303 = arith.divf %301, %302 : vector<8x128xf32>
    %304 = vector.extract_strided_slice %297 {offsets = [0, 128], sizes = [8, 128], strides = [1, 1]} : vector<8x512xf32> to vector<8x128xf32>
    %305 = arith.negf %304 : vector<8x128xf32>
    %306 = math.exp %305 : vector<8x128xf32>
    %cst_58 = arith.constant 1.000000e+00 : f32
    %307 = vector.broadcast %cst_58 : f32 to vector<8x128xf32>
    %308 = arith.addf %307, %306 : vector<8x128xf32>
    %309 = arith.divf %307, %308 : vector<8x128xf32>
    %310 = vector.extract_strided_slice %297 {offsets = [0, 256], sizes = [8, 128], strides = [1, 1]} : vector<8x512xf32> to vector<8x128xf32>
    %311 = math.tanh %310 : vector<8x128xf32>
    %312 = vector.extract_strided_slice %297 {offsets = [0, 384], sizes = [8, 128], strides = [1, 1]} : vector<8x512xf32> to vector<8x128xf32>
    %313 = arith.negf %312 : vector<8x128xf32>
    %314 = math.exp %313 : vector<8x128xf32>
    %cst_59 = arith.constant 1.000000e+00 : f32
    %315 = vector.broadcast %cst_59 : f32 to vector<8x128xf32>
    %316 = arith.addf %315, %314 : vector<8x128xf32>
    %317 = arith.divf %315, %316 : vector<8x128xf32>
    %318 = arith.mulf %309, %290 : vector<8x128xf32>
    %319 = arith.mulf %303, %311 : vector<8x128xf32>
    %320 = arith.addf %318, %319 : vector<8x128xf32>
    %321 = math.tanh %320 : vector<8x128xf32>
    %322 = arith.mulf %317, %321 : vector<8x128xf32>
    %323 = vector.broadcast %c7_i32 : i32 to vector<8x1xi32>
    %324 = arith.cmpi slt, %323, %7 : vector<8x1xi32>
    %325 = vector.shape_cast %324 : vector<8x1xi1> to vector<8x1xi1>
    %326 = vector.broadcast %325 : vector<8x1xi1> to vector<8x128xi1>
    %327 = arith.select %326, %322, %287 : vector<8x128xi1>, vector<8x128xf32>
    %328 = vector.shape_cast %324 : vector<8x1xi1> to vector<8x1xi1>
    %329 = vector.broadcast %328 : vector<8x1xi1> to vector<8x128xi1>
    %330 = arith.select %329, %320, %290 : vector<8x128xi1>, vector<8x128xf32>
    %c8_i32_60 = arith.constant 8 : i32
    %c8_i32_61 = arith.constant 8 : i32
    %331 = arith.muli %c8_i32_60, %c8_i32_61 : i32
    %332 = tpu.assume_multiple %331, 8 : i32
    %333 = arith.index_cast %332 : i32 to index
    %c0_62 = arith.constant 0 : index
    %334 = vector.load %arg11[%333, %c0_62] : memref<128x512xf32, #tpu.memory_space<vmem>>, vector<8x512xf32>
    %335 = arith.truncf %327 : vector<8x128xf32> to vector<8x128xbf16>
    %cst_63 = arith.constant dense<0.000000e+00> : vector<8x512xf32>
    %336 = tpu.matmul %335, %8, %cst_63 {dimension_numbers = #tpu.dot_dimension_numbers<[1], [0], [0], [1], [0, 0, 1, 1], [], []>} : vector<8x128xbf16>, vector<128x512xbf16>, vector<8x512xf32> -> vector<8x512xf32>
    %337 = arith.addf %334, %336 : vector<8x512xf32>
    %338 = vector.extract_strided_slice %337 {offsets = [0, 0], sizes = [8, 128], strides = [1, 1]} : vector<8x512xf32> to vector<8x128xf32>
    %339 = arith.negf %338 : vector<8x128xf32>
    %340 = math.exp %339 : vector<8x128xf32>
    %cst_64 = arith.constant 1.000000e+00 : f32
    %341 = vector.broadcast %cst_64 : f32 to vector<8x128xf32>
    %342 = arith.addf %341, %340 : vector<8x128xf32>
    %343 = arith.divf %341, %342 : vector<8x128xf32>
    %344 = vector.extract_strided_slice %337 {offsets = [0, 128], sizes = [8, 128], strides = [1, 1]} : vector<8x512xf32> to vector<8x128xf32>
    %345 = arith.negf %344 : vector<8x128xf32>
    %346 = math.exp %345 : vector<8x128xf32>
    %cst_65 = arith.constant 1.000000e+00 : f32
    %347 = vector.broadcast %cst_65 : f32 to vector<8x128xf32>
    %348 = arith.addf %347, %346 : vector<8x128xf32>
    %349 = arith.divf %347, %348 : vector<8x128xf32>
    %350 = vector.extract_strided_slice %337 {offsets = [0, 256], sizes = [8, 128], strides = [1, 1]} : vector<8x512xf32> to vector<8x128xf32>
    %351 = math.tanh %350 : vector<8x128xf32>
    %352 = vector.extract_strided_slice %337 {offsets = [0, 384], sizes = [8, 128], strides = [1, 1]} : vector<8x512xf32> to vector<8x128xf32>
    %353 = arith.negf %352 : vector<8x128xf32>
    %354 = math.exp %353 : vector<8x128xf32>
    %cst_66 = arith.constant 1.000000e+00 : f32
    %355 = vector.broadcast %cst_66 : f32 to vector<8x128xf32>
    %356 = arith.addf %355, %354 : vector<8x128xf32>
    %357 = arith.divf %355, %356 : vector<8x128xf32>
    %358 = arith.mulf %349, %330 : vector<8x128xf32>
    %359 = arith.mulf %343, %351 : vector<8x128xf32>
    %360 = arith.addf %358, %359 : vector<8x128xf32>
    %361 = math.tanh %360 : vector<8x128xf32>
    %362 = arith.mulf %357, %361 : vector<8x128xf32>
    %363 = vector.broadcast %c8_i32_60 : i32 to vector<8x1xi32>
    %364 = arith.cmpi slt, %363, %7 : vector<8x1xi32>
    %365 = vector.shape_cast %364 : vector<8x1xi1> to vector<8x1xi1>
    %366 = vector.broadcast %365 : vector<8x1xi1> to vector<8x128xi1>
    %367 = arith.select %366, %362, %327 : vector<8x128xi1>, vector<8x128xf32>
    %368 = vector.shape_cast %364 : vector<8x1xi1> to vector<8x1xi1>
    %369 = vector.broadcast %368 : vector<8x1xi1> to vector<8x128xi1>
    %370 = arith.select %369, %360, %330 : vector<8x128xi1>, vector<8x128xf32>
    %c9_i32 = arith.constant 9 : i32
    %c8_i32_67 = arith.constant 8 : i32
    %371 = arith.muli %c9_i32, %c8_i32_67 : i32
    %372 = tpu.assume_multiple %371, 8 : i32
    %373 = arith.index_cast %372 : i32 to index
    %c0_68 = arith.constant 0 : index
    %374 = vector.load %arg11[%373, %c0_68] : memref<128x512xf32, #tpu.memory_space<vmem>>, vector<8x512xf32>
    %375 = arith.truncf %367 : vector<8x128xf32> to vector<8x128xbf16>
    %cst_69 = arith.constant dense<0.000000e+00> : vector<8x512xf32>
    %376 = tpu.matmul %375, %8, %cst_69 {dimension_numbers = #tpu.dot_dimension_numbers<[1], [0], [0], [1], [0, 0, 1, 1], [], []>} : vector<8x128xbf16>, vector<128x512xbf16>, vector<8x512xf32> -> vector<8x512xf32>
    %377 = arith.addf %374, %376 : vector<8x512xf32>
    %378 = vector.extract_strided_slice %377 {offsets = [0, 0], sizes = [8, 128], strides = [1, 1]} : vector<8x512xf32> to vector<8x128xf32>
    %379 = arith.negf %378 : vector<8x128xf32>
    %380 = math.exp %379 : vector<8x128xf32>
    %cst_70 = arith.constant 1.000000e+00 : f32
    %381 = vector.broadcast %cst_70 : f32 to vector<8x128xf32>
    %382 = arith.addf %381, %380 : vector<8x128xf32>
    %383 = arith.divf %381, %382 : vector<8x128xf32>
    %384 = vector.extract_strided_slice %377 {offsets = [0, 128], sizes = [8, 128], strides = [1, 1]} : vector<8x512xf32> to vector<8x128xf32>
    %385 = arith.negf %384 : vector<8x128xf32>
    %386 = math.exp %385 : vector<8x128xf32>
    %cst_71 = arith.constant 1.000000e+00 : f32
    %387 = vector.broadcast %cst_71 : f32 to vector<8x128xf32>
    %388 = arith.addf %387, %386 : vector<8x128xf32>
    %389 = arith.divf %387, %388 : vector<8x128xf32>
    %390 = vector.extract_strided_slice %377 {offsets = [0, 256], sizes = [8, 128], strides = [1, 1]} : vector<8x512xf32> to vector<8x128xf32>
    %391 = math.tanh %390 : vector<8x128xf32>
    %392 = vector.extract_strided_slice %377 {offsets = [0, 384], sizes = [8, 128], strides = [1, 1]} : vector<8x512xf32> to vector<8x128xf32>
    %393 = arith.negf %392 : vector<8x128xf32>
    %394 = math.exp %393 : vector<8x128xf32>
    %cst_72 = arith.constant 1.000000e+00 : f32
    %395 = vector.broadcast %cst_72 : f32 to vector<8x128xf32>
    %396 = arith.addf %395, %394 : vector<8x128xf32>
    %397 = arith.divf %395, %396 : vector<8x128xf32>
    %398 = arith.mulf %389, %370 : vector<8x128xf32>
    %399 = arith.mulf %383, %391 : vector<8x128xf32>
    %400 = arith.addf %398, %399 : vector<8x128xf32>
    %401 = math.tanh %400 : vector<8x128xf32>
    %402 = arith.mulf %397, %401 : vector<8x128xf32>
    %403 = vector.broadcast %c9_i32 : i32 to vector<8x1xi32>
    %404 = arith.cmpi slt, %403, %7 : vector<8x1xi32>
    %405 = vector.shape_cast %404 : vector<8x1xi1> to vector<8x1xi1>
    %406 = vector.broadcast %405 : vector<8x1xi1> to vector<8x128xi1>
    %407 = arith.select %406, %402, %367 : vector<8x128xi1>, vector<8x128xf32>
    %408 = vector.shape_cast %404 : vector<8x1xi1> to vector<8x1xi1>
    %409 = vector.broadcast %408 : vector<8x1xi1> to vector<8x128xi1>
    %410 = arith.select %409, %400, %370 : vector<8x128xi1>, vector<8x128xf32>
    %c10_i32 = arith.constant 10 : i32
    %c8_i32_73 = arith.constant 8 : i32
    %411 = arith.muli %c10_i32, %c8_i32_73 : i32
    %412 = tpu.assume_multiple %411, 8 : i32
    %413 = arith.index_cast %412 : i32 to index
    %c0_74 = arith.constant 0 : index
    %414 = vector.load %arg11[%413, %c0_74] : memref<128x512xf32, #tpu.memory_space<vmem>>, vector<8x512xf32>
    %415 = arith.truncf %407 : vector<8x128xf32> to vector<8x128xbf16>
    %cst_75 = arith.constant dense<0.000000e+00> : vector<8x512xf32>
    %416 = tpu.matmul %415, %8, %cst_75 {dimension_numbers = #tpu.dot_dimension_numbers<[1], [0], [0], [1], [0, 0, 1, 1], [], []>} : vector<8x128xbf16>, vector<128x512xbf16>, vector<8x512xf32> -> vector<8x512xf32>
    %417 = arith.addf %414, %416 : vector<8x512xf32>
    %418 = vector.extract_strided_slice %417 {offsets = [0, 0], sizes = [8, 128], strides = [1, 1]} : vector<8x512xf32> to vector<8x128xf32>
    %419 = arith.negf %418 : vector<8x128xf32>
    %420 = math.exp %419 : vector<8x128xf32>
    %cst_76 = arith.constant 1.000000e+00 : f32
    %421 = vector.broadcast %cst_76 : f32 to vector<8x128xf32>
    %422 = arith.addf %421, %420 : vector<8x128xf32>
    %423 = arith.divf %421, %422 : vector<8x128xf32>
    %424 = vector.extract_strided_slice %417 {offsets = [0, 128], sizes = [8, 128], strides = [1, 1]} : vector<8x512xf32> to vector<8x128xf32>
    %425 = arith.negf %424 : vector<8x128xf32>
    %426 = math.exp %425 : vector<8x128xf32>
    %cst_77 = arith.constant 1.000000e+00 : f32
    %427 = vector.broadcast %cst_77 : f32 to vector<8x128xf32>
    %428 = arith.addf %427, %426 : vector<8x128xf32>
    %429 = arith.divf %427, %428 : vector<8x128xf32>
    %430 = vector.extract_strided_slice %417 {offsets = [0, 256], sizes = [8, 128], strides = [1, 1]} : vector<8x512xf32> to vector<8x128xf32>
    %431 = math.tanh %430 : vector<8x128xf32>
    %432 = vector.extract_strided_slice %417 {offsets = [0, 384], sizes = [8, 128], strides = [1, 1]} : vector<8x512xf32> to vector<8x128xf32>
    %433 = arith.negf %432 : vector<8x128xf32>
    %434 = math.exp %433 : vector<8x128xf32>
    %cst_78 = arith.constant 1.000000e+00 : f32
    %435 = vector.broadcast %cst_78 : f32 to vector<8x128xf32>
    %436 = arith.addf %435, %434 : vector<8x128xf32>
    %437 = arith.divf %435, %436 : vector<8x128xf32>
    %438 = arith.mulf %429, %410 : vector<8x128xf32>
    %439 = arith.mulf %423, %431 : vector<8x128xf32>
    %440 = arith.addf %438, %439 : vector<8x128xf32>
    %441 = math.tanh %440 : vector<8x128xf32>
    %442 = arith.mulf %437, %441 : vector<8x128xf32>
    %443 = vector.broadcast %c10_i32 : i32 to vector<8x1xi32>
    %444 = arith.cmpi slt, %443, %7 : vector<8x1xi32>
    %445 = vector.shape_cast %444 : vector<8x1xi1> to vector<8x1xi1>
    %446 = vector.broadcast %445 : vector<8x1xi1> to vector<8x128xi1>
    %447 = arith.select %446, %442, %407 : vector<8x128xi1>, vector<8x128xf32>
    %448 = vector.shape_cast %444 : vector<8x1xi1> to vector<8x1xi1>
    %449 = vector.broadcast %448 : vector<8x1xi1> to vector<8x128xi1>
    %450 = arith.select %449, %440, %410 : vector<8x128xi1>, vector<8x128xf32>
    %c11_i32 = arith.constant 11 : i32
    %c8_i32_79 = arith.constant 8 : i32
    %451 = arith.muli %c11_i32, %c8_i32_79 : i32
    %452 = tpu.assume_multiple %451, 8 : i32
    %453 = arith.index_cast %452 : i32 to index
    %c0_80 = arith.constant 0 : index
    %454 = vector.load %arg11[%453, %c0_80] : memref<128x512xf32, #tpu.memory_space<vmem>>, vector<8x512xf32>
    %455 = arith.truncf %447 : vector<8x128xf32> to vector<8x128xbf16>
    %cst_81 = arith.constant dense<0.000000e+00> : vector<8x512xf32>
    %456 = tpu.matmul %455, %8, %cst_81 {dimension_numbers = #tpu.dot_dimension_numbers<[1], [0], [0], [1], [0, 0, 1, 1], [], []>} : vector<8x128xbf16>, vector<128x512xbf16>, vector<8x512xf32> -> vector<8x512xf32>
    %457 = arith.addf %454, %456 : vector<8x512xf32>
    %458 = vector.extract_strided_slice %457 {offsets = [0, 0], sizes = [8, 128], strides = [1, 1]} : vector<8x512xf32> to vector<8x128xf32>
    %459 = arith.negf %458 : vector<8x128xf32>
    %460 = math.exp %459 : vector<8x128xf32>
    %cst_82 = arith.constant 1.000000e+00 : f32
    %461 = vector.broadcast %cst_82 : f32 to vector<8x128xf32>
    %462 = arith.addf %461, %460 : vector<8x128xf32>
    %463 = arith.divf %461, %462 : vector<8x128xf32>
    %464 = vector.extract_strided_slice %457 {offsets = [0, 128], sizes = [8, 128], strides = [1, 1]} : vector<8x512xf32> to vector<8x128xf32>
    %465 = arith.negf %464 : vector<8x128xf32>
    %466 = math.exp %465 : vector<8x128xf32>
    %cst_83 = arith.constant 1.000000e+00 : f32
    %467 = vector.broadcast %cst_83 : f32 to vector<8x128xf32>
    %468 = arith.addf %467, %466 : vector<8x128xf32>
    %469 = arith.divf %467, %468 : vector<8x128xf32>
    %470 = vector.extract_strided_slice %457 {offsets = [0, 256], sizes = [8, 128], strides = [1, 1]} : vector<8x512xf32> to vector<8x128xf32>
    %471 = math.tanh %470 : vector<8x128xf32>
    %472 = vector.extract_strided_slice %457 {offsets = [0, 384], sizes = [8, 128], strides = [1, 1]} : vector<8x512xf32> to vector<8x128xf32>
    %473 = arith.negf %472 : vector<8x128xf32>
    %474 = math.exp %473 : vector<8x128xf32>
    %cst_84 = arith.constant 1.000000e+00 : f32
    %475 = vector.broadcast %cst_84 : f32 to vector<8x128xf32>
    %476 = arith.addf %475, %474 : vector<8x128xf32>
    %477 = arith.divf %475, %476 : vector<8x128xf32>
    %478 = arith.mulf %469, %450 : vector<8x128xf32>
    %479 = arith.mulf %463, %471 : vector<8x128xf32>
    %480 = arith.addf %478, %479 : vector<8x128xf32>
    %481 = math.tanh %480 : vector<8x128xf32>
    %482 = arith.mulf %477, %481 : vector<8x128xf32>
    %483 = vector.broadcast %c11_i32 : i32 to vector<8x1xi32>
    %484 = arith.cmpi slt, %483, %7 : vector<8x1xi32>
    %485 = vector.shape_cast %484 : vector<8x1xi1> to vector<8x1xi1>
    %486 = vector.broadcast %485 : vector<8x1xi1> to vector<8x128xi1>
    %487 = arith.select %486, %482, %447 : vector<8x128xi1>, vector<8x128xf32>
    %488 = vector.shape_cast %484 : vector<8x1xi1> to vector<8x1xi1>
    %489 = vector.broadcast %488 : vector<8x1xi1> to vector<8x128xi1>
    %490 = arith.select %489, %480, %450 : vector<8x128xi1>, vector<8x128xf32>
    %c12_i32 = arith.constant 12 : i32
    %c8_i32_85 = arith.constant 8 : i32
    %491 = arith.muli %c12_i32, %c8_i32_85 : i32
    %492 = tpu.assume_multiple %491, 8 : i32
    %493 = arith.index_cast %492 : i32 to index
    %c0_86 = arith.constant 0 : index
    %494 = vector.load %arg11[%493, %c0_86] : memref<128x512xf32, #tpu.memory_space<vmem>>, vector<8x512xf32>
    %495 = arith.truncf %487 : vector<8x128xf32> to vector<8x128xbf16>
    %cst_87 = arith.constant dense<0.000000e+00> : vector<8x512xf32>
    %496 = tpu.matmul %495, %8, %cst_87 {dimension_numbers = #tpu.dot_dimension_numbers<[1], [0], [0], [1], [0, 0, 1, 1], [], []>} : vector<8x128xbf16>, vector<128x512xbf16>, vector<8x512xf32> -> vector<8x512xf32>
    %497 = arith.addf %494, %496 : vector<8x512xf32>
    %498 = vector.extract_strided_slice %497 {offsets = [0, 0], sizes = [8, 128], strides = [1, 1]} : vector<8x512xf32> to vector<8x128xf32>
    %499 = arith.negf %498 : vector<8x128xf32>
    %500 = math.exp %499 : vector<8x128xf32>
    %cst_88 = arith.constant 1.000000e+00 : f32
    %501 = vector.broadcast %cst_88 : f32 to vector<8x128xf32>
    %502 = arith.addf %501, %500 : vector<8x128xf32>
    %503 = arith.divf %501, %502 : vector<8x128xf32>
    %504 = vector.extract_strided_slice %497 {offsets = [0, 128], sizes = [8, 128], strides = [1, 1]} : vector<8x512xf32> to vector<8x128xf32>
    %505 = arith.negf %504 : vector<8x128xf32>
    %506 = math.exp %505 : vector<8x128xf32>
    %cst_89 = arith.constant 1.000000e+00 : f32
    %507 = vector.broadcast %cst_89 : f32 to vector<8x128xf32>
    %508 = arith.addf %507, %506 : vector<8x128xf32>
    %509 = arith.divf %507, %508 : vector<8x128xf32>
    %510 = vector.extract_strided_slice %497 {offsets = [0, 256], sizes = [8, 128], strides = [1, 1]} : vector<8x512xf32> to vector<8x128xf32>
    %511 = math.tanh %510 : vector<8x128xf32>
    %512 = vector.extract_strided_slice %497 {offsets = [0, 384], sizes = [8, 128], strides = [1, 1]} : vector<8x512xf32> to vector<8x128xf32>
    %513 = arith.negf %512 : vector<8x128xf32>
    %514 = math.exp %513 : vector<8x128xf32>
    %cst_90 = arith.constant 1.000000e+00 : f32
    %515 = vector.broadcast %cst_90 : f32 to vector<8x128xf32>
    %516 = arith.addf %515, %514 : vector<8x128xf32>
    %517 = arith.divf %515, %516 : vector<8x128xf32>
    %518 = arith.mulf %509, %490 : vector<8x128xf32>
    %519 = arith.mulf %503, %511 : vector<8x128xf32>
    %520 = arith.addf %518, %519 : vector<8x128xf32>
    %521 = math.tanh %520 : vector<8x128xf32>
    %522 = arith.mulf %517, %521 : vector<8x128xf32>
    %523 = vector.broadcast %c12_i32 : i32 to vector<8x1xi32>
    %524 = arith.cmpi slt, %523, %7 : vector<8x1xi32>
    %525 = vector.shape_cast %524 : vector<8x1xi1> to vector<8x1xi1>
    %526 = vector.broadcast %525 : vector<8x1xi1> to vector<8x128xi1>
    %527 = arith.select %526, %522, %487 : vector<8x128xi1>, vector<8x128xf32>
    %528 = vector.shape_cast %524 : vector<8x1xi1> to vector<8x1xi1>
    %529 = vector.broadcast %528 : vector<8x1xi1> to vector<8x128xi1>
    %530 = arith.select %529, %520, %490 : vector<8x128xi1>, vector<8x128xf32>
    %c13_i32 = arith.constant 13 : i32
    %c8_i32_91 = arith.constant 8 : i32
    %531 = arith.muli %c13_i32, %c8_i32_91 : i32
    %532 = tpu.assume_multiple %531, 8 : i32
    %533 = arith.index_cast %532 : i32 to index
    %c0_92 = arith.constant 0 : index
    %534 = vector.load %arg11[%533, %c0_92] : memref<128x512xf32, #tpu.memory_space<vmem>>, vector<8x512xf32>
    %535 = arith.truncf %527 : vector<8x128xf32> to vector<8x128xbf16>
    %cst_93 = arith.constant dense<0.000000e+00> : vector<8x512xf32>
    %536 = tpu.matmul %535, %8, %cst_93 {dimension_numbers = #tpu.dot_dimension_numbers<[1], [0], [0], [1], [0, 0, 1, 1], [], []>} : vector<8x128xbf16>, vector<128x512xbf16>, vector<8x512xf32> -> vector<8x512xf32>
    %537 = arith.addf %534, %536 : vector<8x512xf32>
    %538 = vector.extract_strided_slice %537 {offsets = [0, 0], sizes = [8, 128], strides = [1, 1]} : vector<8x512xf32> to vector<8x128xf32>
    %539 = arith.negf %538 : vector<8x128xf32>
    %540 = math.exp %539 : vector<8x128xf32>
    %cst_94 = arith.constant 1.000000e+00 : f32
    %541 = vector.broadcast %cst_94 : f32 to vector<8x128xf32>
    %542 = arith.addf %541, %540 : vector<8x128xf32>
    %543 = arith.divf %541, %542 : vector<8x128xf32>
    %544 = vector.extract_strided_slice %537 {offsets = [0, 128], sizes = [8, 128], strides = [1, 1]} : vector<8x512xf32> to vector<8x128xf32>
    %545 = arith.negf %544 : vector<8x128xf32>
    %546 = math.exp %545 : vector<8x128xf32>
    %cst_95 = arith.constant 1.000000e+00 : f32
    %547 = vector.broadcast %cst_95 : f32 to vector<8x128xf32>
    %548 = arith.addf %547, %546 : vector<8x128xf32>
    %549 = arith.divf %547, %548 : vector<8x128xf32>
    %550 = vector.extract_strided_slice %537 {offsets = [0, 256], sizes = [8, 128], strides = [1, 1]} : vector<8x512xf32> to vector<8x128xf32>
    %551 = math.tanh %550 : vector<8x128xf32>
    %552 = vector.extract_strided_slice %537 {offsets = [0, 384], sizes = [8, 128], strides = [1, 1]} : vector<8x512xf32> to vector<8x128xf32>
    %553 = arith.negf %552 : vector<8x128xf32>
    %554 = math.exp %553 : vector<8x128xf32>
    %cst_96 = arith.constant 1.000000e+00 : f32
    %555 = vector.broadcast %cst_96 : f32 to vector<8x128xf32>
    %556 = arith.addf %555, %554 : vector<8x128xf32>
    %557 = arith.divf %555, %556 : vector<8x128xf32>
    %558 = arith.mulf %549, %530 : vector<8x128xf32>
    %559 = arith.mulf %543, %551 : vector<8x128xf32>
    %560 = arith.addf %558, %559 : vector<8x128xf32>
    %561 = math.tanh %560 : vector<8x128xf32>
    %562 = arith.mulf %557, %561 : vector<8x128xf32>
    %563 = vector.broadcast %c13_i32 : i32 to vector<8x1xi32>
    %564 = arith.cmpi slt, %563, %7 : vector<8x1xi32>
    %565 = vector.shape_cast %564 : vector<8x1xi1> to vector<8x1xi1>
    %566 = vector.broadcast %565 : vector<8x1xi1> to vector<8x128xi1>
    %567 = arith.select %566, %562, %527 : vector<8x128xi1>, vector<8x128xf32>
    %568 = vector.shape_cast %564 : vector<8x1xi1> to vector<8x1xi1>
    %569 = vector.broadcast %568 : vector<8x1xi1> to vector<8x128xi1>
    %570 = arith.select %569, %560, %530 : vector<8x128xi1>, vector<8x128xf32>
    %c14_i32 = arith.constant 14 : i32
    %c8_i32_97 = arith.constant 8 : i32
    %571 = arith.muli %c14_i32, %c8_i32_97 : i32
    %572 = tpu.assume_multiple %571, 8 : i32
    %573 = arith.index_cast %572 : i32 to index
    %c0_98 = arith.constant 0 : index
    %574 = vector.load %arg11[%573, %c0_98] : memref<128x512xf32, #tpu.memory_space<vmem>>, vector<8x512xf32>
    %575 = arith.truncf %567 : vector<8x128xf32> to vector<8x128xbf16>
    %cst_99 = arith.constant dense<0.000000e+00> : vector<8x512xf32>
    %576 = tpu.matmul %575, %8, %cst_99 {dimension_numbers = #tpu.dot_dimension_numbers<[1], [0], [0], [1], [0, 0, 1, 1], [], []>} : vector<8x128xbf16>, vector<128x512xbf16>, vector<8x512xf32> -> vector<8x512xf32>
    %577 = arith.addf %574, %576 : vector<8x512xf32>
    %578 = vector.extract_strided_slice %577 {offsets = [0, 0], sizes = [8, 128], strides = [1, 1]} : vector<8x512xf32> to vector<8x128xf32>
    %579 = arith.negf %578 : vector<8x128xf32>
    %580 = math.exp %579 : vector<8x128xf32>
    %cst_100 = arith.constant 1.000000e+00 : f32
    %581 = vector.broadcast %cst_100 : f32 to vector<8x128xf32>
    %582 = arith.addf %581, %580 : vector<8x128xf32>
    %583 = arith.divf %581, %582 : vector<8x128xf32>
    %584 = vector.extract_strided_slice %577 {offsets = [0, 128], sizes = [8, 128], strides = [1, 1]} : vector<8x512xf32> to vector<8x128xf32>
    %585 = arith.negf %584 : vector<8x128xf32>
    %586 = math.exp %585 : vector<8x128xf32>
    %cst_101 = arith.constant 1.000000e+00 : f32
    %587 = vector.broadcast %cst_101 : f32 to vector<8x128xf32>
    %588 = arith.addf %587, %586 : vector<8x128xf32>
    %589 = arith.divf %587, %588 : vector<8x128xf32>
    %590 = vector.extract_strided_slice %577 {offsets = [0, 256], sizes = [8, 128], strides = [1, 1]} : vector<8x512xf32> to vector<8x128xf32>
    %591 = math.tanh %590 : vector<8x128xf32>
    %592 = vector.extract_strided_slice %577 {offsets = [0, 384], sizes = [8, 128], strides = [1, 1]} : vector<8x512xf32> to vector<8x128xf32>
    %593 = arith.negf %592 : vector<8x128xf32>
    %594 = math.exp %593 : vector<8x128xf32>
    %cst_102 = arith.constant 1.000000e+00 : f32
    %595 = vector.broadcast %cst_102 : f32 to vector<8x128xf32>
    %596 = arith.addf %595, %594 : vector<8x128xf32>
    %597 = arith.divf %595, %596 : vector<8x128xf32>
    %598 = arith.mulf %589, %570 : vector<8x128xf32>
    %599 = arith.mulf %583, %591 : vector<8x128xf32>
    %600 = arith.addf %598, %599 : vector<8x128xf32>
    %601 = math.tanh %600 : vector<8x128xf32>
    %602 = arith.mulf %597, %601 : vector<8x128xf32>
    %603 = vector.broadcast %c14_i32 : i32 to vector<8x1xi32>
    %604 = arith.cmpi slt, %603, %7 : vector<8x1xi32>
    %605 = vector.shape_cast %604 : vector<8x1xi1> to vector<8x1xi1>
    %606 = vector.broadcast %605 : vector<8x1xi1> to vector<8x128xi1>
    %607 = arith.select %606, %602, %567 : vector<8x128xi1>, vector<8x128xf32>
    %608 = vector.shape_cast %604 : vector<8x1xi1> to vector<8x1xi1>
    %609 = vector.broadcast %608 : vector<8x1xi1> to vector<8x128xi1>
    %610 = arith.select %609, %600, %570 : vector<8x128xi1>, vector<8x128xf32>
    %c15_i32 = arith.constant 15 : i32
    %c8_i32_103 = arith.constant 8 : i32
    %611 = arith.muli %c15_i32, %c8_i32_103 : i32
    %612 = tpu.assume_multiple %611, 8 : i32
    %613 = arith.index_cast %612 : i32 to index
    %c0_104 = arith.constant 0 : index
    %614 = vector.load %arg11[%613, %c0_104] : memref<128x512xf32, #tpu.memory_space<vmem>>, vector<8x512xf32>
    %615 = arith.truncf %607 : vector<8x128xf32> to vector<8x128xbf16>
    %cst_105 = arith.constant dense<0.000000e+00> : vector<8x512xf32>
    %616 = tpu.matmul %615, %8, %cst_105 {dimension_numbers = #tpu.dot_dimension_numbers<[1], [0], [0], [1], [0, 0, 1, 1], [], []>} : vector<8x128xbf16>, vector<128x512xbf16>, vector<8x512xf32> -> vector<8x512xf32>
    %617 = arith.addf %614, %616 : vector<8x512xf32>
    %618 = vector.extract_strided_slice %617 {offsets = [0, 0], sizes = [8, 128], strides = [1, 1]} : vector<8x512xf32> to vector<8x128xf32>
    %619 = arith.negf %618 : vector<8x128xf32>
    %620 = math.exp %619 : vector<8x128xf32>
    %cst_106 = arith.constant 1.000000e+00 : f32
    %621 = vector.broadcast %cst_106 : f32 to vector<8x128xf32>
    %622 = arith.addf %621, %620 : vector<8x128xf32>
    %623 = arith.divf %621, %622 : vector<8x128xf32>
    %624 = vector.extract_strided_slice %617 {offsets = [0, 128], sizes = [8, 128], strides = [1, 1]} : vector<8x512xf32> to vector<8x128xf32>
    %625 = arith.negf %624 : vector<8x128xf32>
    %626 = math.exp %625 : vector<8x128xf32>
    %cst_107 = arith.constant 1.000000e+00 : f32
    %627 = vector.broadcast %cst_107 : f32 to vector<8x128xf32>
    %628 = arith.addf %627, %626 : vector<8x128xf32>
    %629 = arith.divf %627, %628 : vector<8x128xf32>
    %630 = vector.extract_strided_slice %617 {offsets = [0, 256], sizes = [8, 128], strides = [1, 1]} : vector<8x512xf32> to vector<8x128xf32>
    %631 = math.tanh %630 : vector<8x128xf32>
    %632 = vector.extract_strided_slice %617 {offsets = [0, 384], sizes = [8, 128], strides = [1, 1]} : vector<8x512xf32> to vector<8x128xf32>
    %633 = arith.negf %632 : vector<8x128xf32>
    %634 = math.exp %633 : vector<8x128xf32>
    %cst_108 = arith.constant 1.000000e+00 : f32
    %635 = vector.broadcast %cst_108 : f32 to vector<8x128xf32>
    %636 = arith.addf %635, %634 : vector<8x128xf32>
    %637 = arith.divf %635, %636 : vector<8x128xf32>
    %638 = arith.mulf %629, %610 : vector<8x128xf32>
    %639 = arith.mulf %623, %631 : vector<8x128xf32>
    %640 = arith.addf %638, %639 : vector<8x128xf32>
    %641 = math.tanh %640 : vector<8x128xf32>
    %642 = arith.mulf %637, %641 : vector<8x128xf32>
    %643 = vector.broadcast %c15_i32 : i32 to vector<8x1xi32>
    %644 = arith.cmpi slt, %643, %7 : vector<8x1xi32>
    %645 = vector.shape_cast %644 : vector<8x1xi1> to vector<8x1xi1>
    %646 = vector.broadcast %645 : vector<8x1xi1> to vector<8x128xi1>
    %647 = arith.select %646, %642, %607 : vector<8x128xi1>, vector<8x128xf32>
    %648 = vector.shape_cast %644 : vector<8x1xi1> to vector<8x1xi1>
    %649 = vector.broadcast %648 : vector<8x1xi1> to vector<8x128xi1>
    %650 = arith.select %649, %640, %610 : vector<8x128xi1>, vector<8x128xf32>
    %c16_i32 = arith.constant 16 : i32
    %651 = arith.truncf %647 : vector<8x128xf32> to vector<8x128xbf16>
    %c0_109 = arith.constant 0 : index
    %c0_110 = arith.constant 0 : index
    %652 = vector.load %arg6[%c0_109, %c0_110] : memref<128x128xbf16, #tpu.memory_space<vmem>>, vector<128x128xbf16>
    %cst_111 = arith.constant dense<0.000000e+00> : vector<8x128xf32>
    %653 = tpu.matmul %651, %652, %cst_111 {dimension_numbers = #tpu.dot_dimension_numbers<[1], [0], [0], [1], [0, 0, 1, 1], [], []>} : vector<8x128xbf16>, vector<128x128xbf16>, vector<8x128xf32> -> vector<8x128xf32>
    %c0_112 = arith.constant 0 : index
    %c0_113 = arith.constant 0 : index
    %654 = vector.load %arg7[%c0_112, %c0_113] : memref<1x128xf32, #tpu.memory_space<vmem>>, vector<1x128xf32>
    %655 = vector.broadcast %654 : vector<1x128xf32> to vector<8x128xf32>
    %656 = arith.addf %653, %655 : vector<8x128xf32>
    %cst_114 = arith.constant 0.000000e+00 : f32
    %657 = vector.broadcast %cst_114 : f32 to vector<8x128xf32>
    %658 = arith.maximumf %656, %657 : vector<8x128xf32>
    %c0_115 = arith.constant 0 : index
    %c0_116 = arith.constant 0 : index
    %659 = vector.load %arg8[%c0_115, %c0_116] : memref<1x128xf32, #tpu.memory_space<vmem>>, vector<1x128xf32>
    %660 = vector.broadcast %659 : vector<1x128xf32> to vector<8x128xf32>
    %661 = arith.mulf %658, %660 : vector<8x128xf32>
    %cst_117 = arith.constant dense<0.000000e+00> : vector<8xf32>
    %662 = vector.multi_reduction <add>, %661, %cst_117 [1] : vector<8x128xf32> to vector<8xf32>
    %663 = vector.shape_cast %662 : vector<8xf32> to vector<8x1xf32>
    %c0_118 = arith.constant 0 : index
    %c0_119 = arith.constant 0 : index
    %664 = vector.load %arg9[%c0_118, %c0_119] : memref<1x1xf32, #tpu.memory_space<vmem>>, vector<1x1xf32>
    %665 = vector.broadcast %664 : vector<1x1xf32> to vector<8x1xf32>
    %666 = arith.addf %663, %665 : vector<8x1xf32>
    %667 = arith.negf %666 : vector<8x1xf32>
    %668 = math.exp %667 : vector<8x1xf32>
    %cst_120 = arith.constant 1.000000e+00 : f32
    %669 = vector.broadcast %cst_120 : f32 to vector<8x1xf32>
    %670 = arith.addf %669, %668 : vector<8x1xf32>
    %671 = arith.divf %669, %670 : vector<8x1xf32>
    %c0_121 = arith.constant 0 : index
    %c0_122 = arith.constant 0 : index
    %672 = vector.load %arg10[%c0_121, %c0_122] : memref<8x1xf32, #tpu.memory_space<vmem>>, vector<8x1xf32>
    tpu.vector_store %arg10[%c0_121, %c0_122], %671 {strides = array<i32>} : memref<8x1xf32, #tpu.memory_space<vmem>>, vector<8x1xf32>,
    return
  }
  func.func @transform_0(%arg0: i32) -> (i32, i32) {
    %c0_i32 = arith.constant 0 : i32
    %c0_i32_0 = arith.constant 0 : i32
    return %arg0, %c0_i32 : i32, i32
  }
  func.func @transform_1(%arg0: i32) -> (i32, i32) {
    %c0_i32 = arith.constant 0 : i32
    %c0_i32_0 = arith.constant 0 : i32
    return %arg0, %c0_i32 : i32, i32
  }
  func.func @transform_2(%arg0: i32) -> (i32, i32) {
    %c0_i32 = arith.constant 0 : i32
    %c0_i32_0 = arith.constant 0 : i32
    %c0_i32_1 = arith.constant 0 : i32
    return %c0_i32, %c0_i32_0 : i32, i32
  }
  func.func @transform_3(%arg0: i32) -> (i32, i32) {
    %c0_i32 = arith.constant 0 : i32
    %c0_i32_0 = arith.constant 0 : i32
    %c0_i32_1 = arith.constant 0 : i32
    return %c0_i32, %c0_i32_0 : i32, i32
  }
  func.func @transform_4(%arg0: i32) -> (i32, i32) {
    %c0_i32 = arith.constant 0 : i32
    %c0_i32_0 = arith.constant 0 : i32
    %c0_i32_1 = arith.constant 0 : i32
    return %c0_i32, %c0_i32_0 : i32, i32
  }
  func.func @transform_5(%arg0: i32) -> (i32, i32) {
    %c0_i32 = arith.constant 0 : i32
    %c0_i32_0 = arith.constant 0 : i32
    %c0_i32_1 = arith.constant 0 : i32
    return %c0_i32, %c0_i32_0 : i32, i32
  }
  func.func @transform_6(%arg0: i32) -> (i32, i32) {
    %c0_i32 = arith.constant 0 : i32
    %c0_i32_0 = arith.constant 0 : i32
    %c0_i32_1 = arith.constant 0 : i32
    return %c0_i32, %c0_i32_0 : i32, i32
  }
  func.func @transform_7(%arg0: i32) -> (i32, i32) {
    %c0_i32 = arith.constant 0 : i32
    %c0_i32_0 = arith.constant 0 : i32
    %c0_i32_1 = arith.constant 0 : i32
    return %c0_i32, %c0_i32_0 : i32, i32
  }
  func.func @transform_8(%arg0: i32) -> (i32, i32) {
    %c0_i32 = arith.constant 0 : i32
    %c0_i32_0 = arith.constant 0 : i32
    %c0_i32_1 = arith.constant 0 : i32
    return %c0_i32, %c0_i32_0 : i32, i32
  }
  func.func @transform_9(%arg0: i32) -> (i32, i32) {
    %c0_i32 = arith.constant 0 : i32
    %c0_i32_0 = arith.constant 0 : i32
    return %arg0, %c0_i32 : i32, i32
  }
}

</mosaic_0001>

<llo_original>
// kernel: rnn_forward.1
$region0: #{rnn_forward.1}
  #allocation0 [shape = 'u32[]', space=smem, size = 0x4, offset = 0x4, fixed_abs, tag = 'smem constant byte address 0x4 - core index']
  #allocation1 [shape = 'u32[144,128]{1,0:T(1,128)}', space=vmem, size = 0x12000, scoped, tag = 'internal scratch']
  #allocation2 [shape = 'f32[128,512]{1,0:T(8,128)}', space=vmem, size = 0x40000, scoped, tag = 'scratch operand']
  #allocation3 [shape = 'f32[1,1]{1,0:T(1,128)S(1)}', space=vmem, size = 0x200, scoped, tag = 'scoped memory for rnn_forward.1']
  %s0 = inlined_call_operand.vmem [shape: bf16[256,64], index: 0, kind: input, shape index: {}]
  %s1 = inlined_call_operand.vmem [shape: s32[16,1], index: 1, kind: input, shape index: {}]
  %s2 = inlined_call_operand.vmem [shape: bf16[64,512], index: 2, kind: input, shape index: {}]
  %s3 = inlined_call_operand.vmem [shape: bf16[128,512], index: 3, kind: input, shape index: {}]
  %s4 = inlined_call_operand.vmem [shape: f32[1,512], index: 4, kind: input, shape index: {}]
  %s5 = inlined_call_operand.vmem [shape: bf16[128,128], index: 5, kind: input, shape index: {}]
  %s6 = inlined_call_operand.vmem [shape: f32[1,128], index: 6, kind: input, shape index: {}]
  %s7 = inlined_call_operand.vmem [shape: f32[1,128], index: 7, kind: input, shape index: {}]
  %s8 = inlined_call_operand.<no memory space> [shape: f32[1,1], index: 8, kind: input, shape index: {}]
  %s9 = inlined_call_operand.vmem [shape: f32[16,1], index: 9, kind: output, shape index: {}]
  %s10 = sld [smem:[#allocation0]]
  $region69: #{rnn_forward.1} parent=0
    _
  %s12 = ssub.s32 1, %s10
  %s13 = scalar_select 0, %s12, %s10
  %v14 = vstv %s8
  %15 = vst [vmem:[#allocation3] sm:$0x1] %v14
  loop: start=0, step=1, limit=4
  $region2: #{rnn_forward.1} parent=0 // loop_pre_header
    _
  $region3: #{rnn_forward.1} parent=0 // loop_header
    %s17 = sphi 0, %s21
    %p18 = scmp.ge.s32.totalorder %s17, 4
    %s27 = sphi 0, %s29
    %s30 = sphi 0, %s27
    %s31 = sphi 0, %s30
    %s47 = sphi 0, %s31
    %s53 = sphi 0, %s55
    %s56 = sphi 0, %s53
    %s57 = sphi 0, %s56
    %s73 = sphi 0, %s57
    %s77 = sphi 0, %s77
    %s79 = sphi 0, %s77
    %s80 = sphi 0, %s79
    %s94 = sphi 0, %s80
    %s98 = sphi 0, %s98
    %s100 = sphi 0, %s98
    %s101 = sphi 0, %s100
    %s115 = sphi 0, %s101
    %s119 = sphi 0, %s119
    %s121 = sphi 0, %s119
    %s122 = sphi 0, %s121
    %s136 = sphi 0, %s122
    %s140 = sphi 0, %s140
    %s142 = sphi 0, %s140
    %s143 = sphi 0, %s142
    %s157 = sphi 0, %s143
    %s161 = sphi 0, %s161
    %s163 = sphi 0, %s161
    %s164 = sphi 0, %s163
    %s178 = sphi 0, %s164
    %s182 = sphi 0, %s182
    %s184 = sphi 0, %s182
    %s185 = sphi 0, %s184
    %s199 = sphi 0, %s185
    %s203 = sphi 0, %s203
    %s205 = sphi 0, %s203
    %s206 = sphi 0, %s205
    %s220 = sphi 0, %s206
    %s226 = sphi 0, %s228
    %s229 = sphi 0, %s226
    %s230 = sphi 0, %s229
    %s246 = sphi 0, %s230
  $region4: #{rnn_forward.1} parent=0 // loop_header_branch
    %20 = sbr.rel (%p18) target = $region8
  $region5: #{rnn_forward.1} parent=0 // loop_body
    %s22 = ssub.s32 %s17, 1
    %s23 = ssub.s32 %s17, 2
    %s24 = sadd.s32 %s17, 1
    %s25 = ssub.s32 %s17, %s24
    %p26 = scmp.eq.s32.totalorder %s25, 0
    %s28 = sadd.s32 %s27, 1
    %s29 = scalar_select %p26, %s27, %s28
    %p32 = pneg %p26
    %p33 = scmp.eq.s32.totalorder %s17, 1
    %p34 = por %p32, %p33
    %p35 = scmp.ne.s32.totalorder %s27, %s30
    %p36 = scmp.eq.s32.totalorder %s17, 0
    %p37 = por %p35, %p36
    %p38 = scmp.ne.s32.totalorder %s27, %s30
    %p39 = scmp.eq.s32.totalorder %s22, 1
    %p40 = por %p38, %p39
    %p41 = scmp.ne.s32.totalorder %s30, %s31
    %p42 = scmp.eq.s32.totalorder %s22, 0
    %p43 = por %p41, %p42
    %p44 = scmp.ne.s32.totalorder %s30, %s31
    %p45 = scmp.eq.s32.totalorder %s23, 1
    %p46 = por %p44, %p45
    %p48 = scmp.ne.s32.totalorder %s31, %s47
    %p49 = scmp.eq.s32.totalorder %s23, 0
    %p50 = por %p48, %p49
    %s51 = ssub.s32 %s17, %s24
    %p52 = scmp.eq.s32.totalorder %s51, 0
    %s54 = sadd.s32 %s53, 1
    %s55 = scalar_select %p52, %s53, %s54
    %p58 = pneg %p52
    %p59 = scmp.eq.s32.totalorder %s17, 1
    %p60 = por %p58, %p59
    %p61 = scmp.ne.s32.totalorder %s53, %s56
    %p62 = scmp.eq.s32.totalorder %s17, 0
    %p63 = por %p61, %p62
    %p64 = scmp.ne.s32.totalorder %s53, %s56
    %p65 = scmp.eq.s32.totalorder %s22, 1
    %p66 = por %p64, %p65
    %p67 = scmp.ne.s32.totalorder %s56, %s57
    %p68 = scmp.eq.s32.totalorder %s22, 0
    %p69 = por %p67, %p68
    %p70 = scmp.ne.s32.totalorder %s56, %s57
    %p71 = scmp.eq.s32.totalorder %s23, 1
    %p72 = por %p70, %p71
    %p74 = scmp.ne.s32.totalorder %s57, %s73
    %p75 = scmp.eq.s32.totalorder %s23, 0
    %p76 = por %p74, %p75
    %s78 = sadd.s32 %s77, 1
    %p81 = scmp.eq.s32.totalorder %s17, 1
    %p82 = scmp.ne.s32.totalorder %s77, %s79
    %p83 = scmp.eq.s32.totalorder %s17, 0
    %p84 = por %p82, %p83
    %p85 = scmp.ne.s32.totalorder %s77, %s79
    %p86 = scmp.eq.s32.totalorder %s22, 1
    %p87 = por %p85, %p86
    %p88 = scmp.ne.s32.totalorder %s79, %s80
    %p89 = scmp.eq.s32.totalorder %s22, 0
    %p90 = por %p88, %p89
    %p91 = scmp.ne.s32.totalorder %s79, %s80
    %p92 = scmp.eq.s32.totalorder %s23, 1
    %p93 = por %p91, %p92
    %p95 = scmp.ne.s32.totalorder %s80, %s94
    %p96 = scmp.eq.s32.totalorder %s23, 0
    %p97 = por %p95, %p96
    %s99 = sadd.s32 %s98, 1
    %p102 = scmp.eq.s32.totalorder %s17, 1
    %p103 = scmp.ne.s32.totalorder %s98, %s100
    %p104 = scmp.eq.s32.totalorder %s17, 0
    %p105 = por %p103, %p104
    %p106 = scmp.ne.s32.totalorder %s98, %s100
    %p107 = scmp.eq.s32.totalorder %s22, 1
    %p108 = por %p106, %p107
    %p109 = scmp.ne.s32.totalorder %s100, %s101
    %p110 = scmp.eq.s32.totalorder %s22, 0
    %p111 = por %p109, %p110
    %p112 = scmp.ne.s32.totalorder %s100, %s101
    %p113 = scmp.eq.s32.totalorder %s23, 1
    %p114 = por %p112, %p113
    %p116 = scmp.ne.s32.totalorder %s101, %s115
    %p117 = scmp.eq.s32.totalorder %s23, 0
    %p118 = por %p116, %p117
    %s120 = sadd.s32 %s119, 1
    %p123 = scmp.eq.s32.totalorder %s17, 1
    %p124 = scmp.ne.s32.totalorder %s119, %s121
    %p125 = scmp.eq.s32.totalorder %s17, 0
    %p126 = por %p124, %p125
    %p127 = scmp.ne.s32.totalorder %s119, %s121
    %p128 = scmp.eq.s32.totalorder %s22, 1
    %p129 = por %p127, %p128
    %p130 = scmp.ne.s32.totalorder %s121, %s122
    %p131 = scmp.eq.s32.totalorder %s22, 0
    %p132 = por %p130, %p131
    %p133 = scmp.ne.s32.totalorder %s121, %s122
    %p134 = scmp.eq.s32.totalorder %s23, 1
    %p135 = por %p133, %p134
    %p137 = scmp.ne.s32.totalorder %s122, %s136
    %p138 = scmp.eq.s32.totalorder %s23, 0
    %p139 = por %p137, %p138
    %s141 = sadd.s32 %s140, 1
    %p144 = scmp.eq.s32.totalorder %s17, 1
    %p145 = scmp.ne.s32.totalorder %s140, %s142
    %p146 = scmp.eq.s32.totalorder %s17, 0
    %p147 = por %p145, %p146
    %p148 = scmp.ne.s32.totalorder %s140, %s142
    %p149 = scmp.eq.s32.totalorder %s22, 1
    %p150 = por %p148, %p149
    %p151 = scmp.ne.s32.totalorder %s142, %s143
    %p152 = scmp.eq.s32.totalorder %s22, 0
    %p153 = por %p151, %p152
    %p154 = scmp.ne.s32.totalorder %s142, %s143
    %p155 = scmp.eq.s32.totalorder %s23, 1
    %p156 = por %p154, %p155
    %p158 = scmp.ne.s32.totalorder %s143, %s157
    %p159 = scmp.eq.s32.totalorder %s23, 0
    %p160 = por %p158, %p159
    %s162 = sadd.s32 %s161, 1
    %p165 = scmp.eq.s32.totalorder %s17, 1
    %p166 = scmp.ne.s32.totalorder %s161, %s163
    %p167 = scmp.eq.s32.totalorder %s17, 0
    %p168 = por %p166, %p167
    %p169 = scmp.ne.s32.totalorder %s161, %s163
    %p170 = scmp.eq.s32.totalorder %s22, 1
    %p171 = por %p169, %p170
    %p172 = scmp.ne.s32.totalorder %s163, %s164
    %p173 = scmp.eq.s32.totalorder %s22, 0
    %p174 = por %p172, %p173
    %p175 = scmp.ne.s32.totalorder %s163, %s164
    %p176 = scmp.eq.s32.totalorder %s23, 1
    %p177 = por %p175, %p176
    %p179 = scmp.ne.s32.totalorder %s164, %s178
    %p180 = scmp.eq.s32.totalorder %s23, 0
    %p181 = por %p179, %p180
    %s183 = sadd.s32 %s182, 1
    %p186 = scmp.eq.s32.totalorder %s17, 1
    %p187 = scmp.ne.s32.totalorder %s182, %s184
    %p188 = scmp.eq.s32.totalorder %s17, 0
    %p189 = por %p187, %p188
    %p190 = scmp.ne.s32.totalorder %s182, %s184
    %p191 = scmp.eq.s32.totalorder %s22, 1
    %p192 = por %p190, %p191
    %p193 = scmp.ne.s32.totalorder %s184, %s185
    %p194 = scmp.eq.s32.totalorder %s22, 0
    %p195 = por %p193, %p194
    %p196 = scmp.ne.s32.totalorder %s184, %s185
    %p197 = scmp.eq.s32.totalorder %s23, 1
    %p198 = por %p196, %p197
    %p200 = scmp.ne.s32.totalorder %s185, %s199
    %p201 = scmp.eq.s32.totalorder %s23, 0
    %p202 = por %p200, %p201
    %s204 = sadd.s32 %s203, 1
    %p207 = scmp.eq.s32.totalorder %s17, 1
    %p208 = scmp.ne.s32.totalorder %s203, %s205
    %p209 = scmp.eq.s32.totalorder %s17, 0
    %p210 = por %p208, %p209
    %p211 = scmp.ne.s32.totalorder %s203, %s205
    %p212 = scmp.eq.s32.totalorder %s22, 1
    %p213 = por %p211, %p212
    %p214 = scmp.ne.s32.totalorder %s205, %s206
    %p215 = scmp.eq.s32.totalorder %s22, 0
    %p216 = por %p214, %p215
    %p217 = scmp.ne.s32.totalorder %s205, %s206
    %p218 = scmp.eq.s32.totalorder %s23, 1
    %p219 = por %p217, %p218
    %p221 = scmp.ne.s32.totalorder %s206, %s220
    %p222 = scmp.eq.s32.totalorder %s23, 0
    %p223 = por %p221, %p222
    %s224 = ssub.s32 %s17, %s24
    %p225 = scmp.eq.s32.totalorder %s224, 0
    %s227 = sadd.s32 %s226, 1
    %s228 = scalar_select %p225, %s226, %s227
    %p231 = pneg %p225
    %p232 = scmp.eq.s32.totalorder %s17, 1
    %p233 = por %p231, %p232
    %p234 = scmp.ne.s32.totalorder %s226, %s229
    %p235 = scmp.eq.s32.totalorder %s17, 0
    %p236 = por %p234, %p235
    %p237 = scmp.ne.s32.totalorder %s226, %s229
    %p238 = scmp.eq.s32.totalorder %s22, 1
    %p239 = por %p237, %p238
    %p240 = scmp.ne.s32.totalorder %s229, %s230
    %p241 = scmp.eq.s32.totalorder %s22, 0
    %p242 = por %p240, %p241
    %p243 = scmp.ne.s32.totalorder %s229, %s230
    %p244 = scmp.eq.s32.totalorder %s23, 1
    %p245 = por %p243, %p244
    %p247 = scmp.ne.s32.totalorder %s230, %s246
    %p248 = scmp.eq.s32.totalorder %s23, 0
    %p249 = por %p247, %p248
    %p250 = scmp.le.s32.totalorder 1, %s17
    %p251 = scmp.lt.s32.totalorder %s17, 3
    %p252 = pnand %p250, %p251
    %p253 = pneg %p252
    // Predicated region
    $region9: #{rnn_forward.1} parent=5 // pred_check
      _
    $region10: #{rnn_forward.1} parent=5 // pred_check_branch
      %255 = sbr.rel (%p252) target = $region12
    $region11: #{rnn_forward.1} parent=5 // pred_region
      %s256 = ssub.s32 %s17, 1
      // Predicated region
      $region13: #{rnn_forward.1} parent=11 // pred_check
        %p257 = pneg %p90
      $region14: #{rnn_forward.1} parent=11 // pred_check_branch
        %259 = sbr.rel (%p257) target = $region16
      $region15: #{rnn_forward.1} parent=11 // pred_region
        _
      $region16: #{rnn_forward.1} parent=11 // pred_fallthru
        _
      // Predicated region
      $region17: #{rnn_forward.1} parent=11 // pred_check
        %p260 = pneg %p111
      $region18: #{rnn_forward.1} parent=11 // pred_check_branch
        %262 = sbr.rel (%p260) target = $region20
      $region19: #{rnn_forward.1} parent=11 // pred_region
        _
      $region20: #{rnn_forward.1} parent=11 // pred_fallthru
        _
      // Predicated region
      $region21: #{rnn_forward.1} parent=11 // pred_check
        %p263 = pneg %p132
      $region22: #{rnn_forward.1} parent=11 // pred_check_branch
        %265 = sbr.rel (%p263) target = $region24
      $region23: #{rnn_forward.1} parent=11 // pred_region
        _
      $region24: #{rnn_forward.1} parent=11 // pred_fallthru
        _
      // Predicated region
      $region25: #{rnn_forward.1} parent=11 // pred_check
        %p266 = pneg %p153
      $region26: #{rnn_forward.1} parent=11 // pred_check_branch
        %268 = sbr.rel (%p266) target = $region28
      $region27: #{rnn_forward.1} parent=11 // pred_region
        _
      $region28: #{rnn_forward.1} parent=11 // pred_fallthru
        _
      // Predicated region
      $region29: #{rnn_forward.1} parent=11 // pred_check
        %p269 = pneg %p174
      $region30: #{rnn_forward.1} parent=11 // pred_check_branch
        %271 = sbr.rel (%p269) target = $region32
      $region31: #{rnn_forward.1} parent=11 // pred_region
        _
      $region32: #{rnn_forward.1} parent=11 // pred_fallthru
        _
      // Predicated region
      $region33: #{rnn_forward.1} parent=11 // pred_check
        %p272 = pneg %p195
      $region34: #{rnn_forward.1} parent=11 // pred_check_branch
        %274 = sbr.rel (%p272) target = $region36
      $region35: #{rnn_forward.1} parent=11 // pred_region
        _
      $region36: #{rnn_forward.1} parent=11 // pred_fallthru
        _
      // Predicated region
      $region37: #{rnn_forward.1} parent=11 // pred_check
        %p275 = pneg %p216
      $region38: #{rnn_forward.1} parent=11 // pred_check_branch
        %277 = sbr.rel (%p275) target = $region40
      $region39: #{rnn_forward.1} parent=11 // pred_region
        _
      $region40: #{rnn_forward.1} parent=11 // pred_fallthru
        _
    $region12: #{rnn_forward.1} parent=5 // pred_fallthru
      _
    %p278 = scmp.lt.s32.totalorder %s17, 2
    // Predicated region
    $region41: #{rnn_forward.1} parent=5 // pred_check
      %p279 = pneg %p278
    $region42: #{rnn_forward.1} parent=5 // pred_check_branch
      %281 = sbr.rel (%p279) target = $region44
    $region43: #{rnn_forward.1} parent=5 // pred_region
      // Predicated region
      $region45: #{rnn_forward.1} parent=43 // pred_check
        %p282 = pneg %p37
      $region46: #{rnn_forward.1} parent=43 // pred_check_branch
        %284 = sbr.rel (%p282) target = $region48
      $region47: #{rnn_forward.1} parent=43 // pred_region
        %s285 = smul.u32 16, %s17
        %p286 = scmp.lt.s32.totalorder %s285, 31
        %s287 = scalar_select %p286, %s285, 31
        %s288 = smul.addr %s287, 4
        %s289 = scalar_lea.vmem %s0, %s288
        %s290 = smul.u32 16, %s17
      $region48: #{rnn_forward.1} parent=43 // pred_fallthru
        _
      // Predicated region
      $region49: #{rnn_forward.1} parent=43 // pred_check
        %p291 = pneg %p63
      $region50: #{rnn_forward.1} parent=43 // pred_check_branch
        %293 = sbr.rel (%p291) target = $region52
      $region51: #{rnn_forward.1} parent=43 // pred_region
        %p294 = scmp.lt.s32.totalorder %s17, 1
        %s295 = scalar_select %p294, %s17, 1
        %s296 = smul.addr %s295, 8
        %s297 = scalar_lea.vmem %s1, %s296
      $region52: #{rnn_forward.1} parent=43 // pred_fallthru
        _
    $region44: #{rnn_forward.1} parent=5 // pred_fallthru
      _
    %p298 = scmp.le.s32.totalorder 1, %s17
    %p299 = scmp.lt.s32.totalorder %s17, 3
    %p300 = pnand %p298, %p299
    %p301 = pneg %p300
    // Predicated region
    $region53: #{rnn_forward.1} parent=5 // pred_check
      _
    $region54: #{rnn_forward.1} parent=5 // pred_check_branch
      %303 = sbr.rel (%p300) target = $region56
    $region55: #{rnn_forward.1} parent=5 // pred_region
      %s304 = ssub.s32 %s17, 1
      %s305 = smul.u32 16, %s22
      %p306 = scmp.lt.s32.totalorder %s305, 31
      %s307 = scalar_select %p306, %s305, 31
      %s308 = smul.addr %s307, 4
      %s309 = scalar_lea.vmem %s0, %s308
      %p310 = pneg %p43
      %p311 = pneg %p40
      %p312 = scmp.lt.s32.totalorder %s22, 1
      %s313 = scalar_select %p312, %s22, 1
      %s314 = smul.addr %s313, 8
      %s315 = scalar_lea.vmem %s1, %s314
      %p316 = pneg %p69
      %p317 = pneg %p66
      %p318 = pneg %p90
      %p319 = pneg %p87
      %p320 = pneg %p111
      %p321 = pneg %p108
      %p322 = pneg %p132
      %p323 = pneg %p129
      %p324 = pneg %p153
      %p325 = pneg %p150
      %p326 = pneg %p174
      %p327 = pneg %p171
      %p328 = pneg %p195
      %p329 = pneg %p192
      %p330 = pneg %p216
      %p331 = pneg %p213
      %p332 = pneg %p242
      %p333 = pneg %p239
      %p334 = scmp.lt.s32.totalorder %s22, 1
      %s335 = scalar_select %p334, %s22, 1
      %s336 = smul.addr %s335, 8
      %s337 = scalar_lea.vmem %s9, %s336
      %s338 = smul.u32 16, %s22
      %p339 = scmp.lt.s32.totalorder %s338, 31
      %s340 = scalar_select %p339, %s338, 31
      %s341 = smul.addr %s340, 4
      %s342 = scalar_lea.vmem %s0, %s341
      %s343 = smul.u32 16, %s22
      %p344 = scmp.lt.s32.totalorder %s22, 1
      %s345 = scalar_select %p344, %s22, 1
      %s346 = smul.addr %s345, 8
      %s347 = scalar_lea.vmem %s1, %s346
      %p348 = scmp.lt.s32.totalorder %s22, 1
      %s349 = scalar_select %p348, %s22, 1
      %s350 = smul.addr %s349, 8
      %s351 = scalar_lea.vmem %s9, %s350
      %v353 = vld [vmem:[%s342] sm:$0xf]
      %v354 = vld [vmem:[%s342 + $0x4] sm:$0xf]
      %v355 = vld [vmem:[%s342 + $0x8] sm:$0xf]
      %v356 = vld [vmem:[%s342 + $0xc] sm:$0xf]
      %v357 = vld [vmem:[%s342 + $0x10] sm:$0xf]
      %v358 = vld [vmem:[%s342 + $0x14] sm:$0xf]
      %v359 = vld [vmem:[%s342 + $0x18] sm:$0xf]
      %v360 = vld [vmem:[%s342 + $0x1c] sm:$0xf]
      %v361 = vld [vmem:[%s342 + $0x20] sm:$0xf]
      %v362 = vld [vmem:[%s342 + $0x24] sm:$0xf]
      %v363 = vld [vmem:[%s342 + $0x28] sm:$0xf]
      %v364 = vld [vmem:[%s342 + $0x2c] sm:$0xf]
      %v365 = vld [vmem:[%s342 + $0x30] sm:$0xf]
      %v366 = vld [vmem:[%s342 + $0x34] sm:$0xf]
      %v367 = vld [vmem:[%s342 + $0x38] sm:$0xf]
      %v368 = vld [vmem:[%s342 + $0x3c] sm:$0xf]
      %v369 = vld [vmem:[%s2] sm:$0xff]
      %v370 = vld [vmem:[%s2 + $0x8] sm:$0xff]
      %v371 = vld [vmem:[%s2 + $0x10] sm:$0xff]
      %v372 = vld [vmem:[%s2 + $0x18] sm:$0xff]
      %v373 = vld [vmem:[%s2 + $0x20] sm:$0xff]
      %v374 = vld [vmem:[%s2 + $0x28] sm:$0xff]
      %v375 = vld [vmem:[%s2 + $0x30] sm:$0xff]
      %v376 = vld [vmem:[%s2 + $0x38] sm:$0xff]
      %v377 = vld [vmem:[%s2 + $0x40] sm:$0xff]
      %v378 = vld [vmem:[%s2 + $0x48] sm:$0xff]
      %v379 = vld [vmem:[%s2 + $0x50] sm:$0xff]
      %v380 = vld [vmem:[%s2 + $0x58] sm:$0xff]
      %v381 = vld [vmem:[%s2 + $0x60] sm:$0xff]
      %v382 = vld [vmem:[%s2 + $0x68] sm:$0xff]
      %v383 = vld [vmem:[%s2 + $0x70] sm:$0xff]
      %v384 = vld [vmem:[%s2 + $0x78] sm:$0xff]
      %v385 = vld [vmem:[%s4] sm:$0xf]
      %v387 = vlaneseq
      %v388 = vshrl.u32 %v387, 7
      %v389 = vsub.s32 0, %v388
      %v390 = vrot.slane %v385, %v389
      %v391 = vlaneseq
      %v392 = vshrl.u32 %v391, 7
      %v393 = vsub.s32 1, %v392
      %v394 = vrot.slane %v385, %v393
      %v395 = vlaneseq
      %v396 = vshrl.u32 %v395, 7
      %v397 = vsub.s32 2, %v396
      %v398 = vrot.slane %v385, %v397
      %v399 = vlaneseq
      %v400 = vshrl.u32 %v399, 7
      %v401 = vsub.s32 3, %v400
      %v402 = vrot.slane %v385, %v401
      %v423 = vunpack.c.l.b16 %v353
      %v424 = vunpack.c.l.b16 %v354
      %v425 = vunpack.c.l.b16 %v355
      %v426 = vunpack.c.l.b16 %v356
      %v427 = vunpack.c.l.b16 %v357
      %v428 = vunpack.c.l.b16 %v358
      %v429 = vunpack.c.l.b16 %v359
      %v430 = vunpack.c.l.b16 %v360
      %v431 = vunpack.c.l.b16 %v361
      %v432 = vunpack.c.l.b16 %v362
      %v433 = vunpack.c.l.b16 %v363
      %v434 = vunpack.c.l.b16 %v364
      %v435 = vunpack.c.l.b16 %v365
      %v436 = vunpack.c.l.b16 %v366
      %v437 = vunpack.c.l.b16 %v367
      %v438 = vunpack.c.l.b16 %v368
      %v439 = vpack.c.b16 %v424, %v423
      %v440 = vpack.c.b16 %v426, %v425
      %v441 = vpack.c.b16 %v428, %v427
      %v442 = vpack.c.b16 %v430, %v429
      %v443 = vpack.c.b16 %v432, %v431
      %v444 = vpack.c.b16 %v434, %v433
      %v445 = vpack.c.b16 %v436, %v435
      %v446 = vpack.c.b16 %v438, %v437
      %v463 = vunpack.c.l.b16 %v369
      %v464 = vunpack.c.h.b16 %v369
      %v465 = vunpack.c.l.b16 %v370
      %v466 = vunpack.c.h.b16 %v370
      %v467 = vunpack.c.l.b16 %v371
      %v468 = vunpack.c.h.b16 %v371
      %v469 = vunpack.c.l.b16 %v372
      %v470 = vunpack.c.h.b16 %v372
      %v471 = vunpack.c.l.b16 %v373
      %v472 = vunpack.c.h.b16 %v373
      %v473 = vunpack.c.l.b16 %v374
      %v474 = vunpack.c.h.b16 %v374
      %v475 = vunpack.c.l.b16 %v375
      %v476 = vunpack.c.h.b16 %v375
      %v477 = vunpack.c.l.b16 %v376
      %v478 = vunpack.c.h.b16 %v376
      %v479 = vunpack.c.l.b16 %v377
      %v480 = vunpack.c.h.b16 %v377
      %v481 = vunpack.c.l.b16 %v378
      %v482 = vunpack.c.h.b16 %v378
      %v483 = vunpack.c.l.b16 %v379
      %v484 = vunpack.c.h.b16 %v379
      %v485 = vunpack.c.l.b16 %v380
      %v486 = vunpack.c.h.b16 %v380
      %v487 = vunpack.c.l.b16 %v381
      %v488 = vunpack.c.h.b16 %v381
      %v489 = vunpack.c.l.b16 %v382
      %v490 = vunpack.c.h.b16 %v382
      %v491 = vunpack.c.l.b16 %v383
      %v492 = vunpack.c.h.b16 %v383
      %v493 = vunpack.c.l.b16 %v384
      %v494 = vunpack.c.h.b16 %v384
      %v495 = vpack.c.b16 %v467, %v463
      %v496 = vpack.c.b16 %v468, %v464
      %v497 = vpack.c.b16 %v469, %v465
      %v498 = vpack.c.b16 %v470, %v466
      %v499 = vpack.c.b16 %v475, %v471
      %v500 = vpack.c.b16 %v476, %v472
      %v501 = vpack.c.b16 %v477, %v473
      %v502 = vpack.c.b16 %v478, %v474
      %v503 = vpack.c.b16 %v483, %v479
      %v504 = vpack.c.b16 %v484, %v480
      %v505 = vpack.c.b16 %v485, %v481
      %v506 = vpack.c.b16 %v486, %v482
      %v507 = vpack.c.b16 %v491, %v487
      %v508 = vpack.c.b16 %v492, %v488
      %v509 = vpack.c.b16 %v493, %v489
      %v510 = vpack.c.b16 %v494, %v490
      %vm527 = vcmask 523264
      %v529 = vsel %vm527, %v439, 0
      %v532 = vsel %vm527, %v440, 0
      %v535 = vsel %vm527, %v441, 0
      %v538 = vsel %vm527, %v442, 0
      %v541 = vsel %vm527, %v443, 0
      %v544 = vsel %vm527, %v444, 0
      %v547 = vsel %vm527, %v445, 0
      %v550 = vsel %vm527, %v446, 0
      %552 = vmatprep.subr.bf16.mxu0 0
      %553 = vmatpush1.bf16.msra.mxu0 0
      %554 = vmatprep.subr.bf16.mxu0 0
      %555 = vmatpush1.bf16.msra.mxu0 0
      %556 = vmatprep.subr.bf16.mxu0 0
      %557 = vmatpush1.bf16.msra.mxu0 0
      %558 = vmatprep.subr.bf16.mxu0 0
      %559 = vmatpush1.bf16.msra.mxu0 0
      %560 = vmatprep.subr.bf16.mxu0 %v508
      %561 = vmatpush1.bf16.msra.mxu0 %v507
      %562 = vmatprep.subr.bf16.mxu0 %v504
      %563 = vmatpush1.bf16.msra.mxu0 %v503
      %564 = vmatprep.subr.bf16.mxu0 %v500
      %565 = vmatpush1.bf16.msra.mxu0 %v499
      %566 = vmatprep.subr.bf16.mxu0 %v496
      %567 = vmatpush1.bf16.msra.mxu0 %v495
      %568 = vmatprep.subr.bf16.mxu0 0
      %569 = vmatpush2.bf16.msra.mxu0 0
      %570 = vmatprep.subr.bf16.mxu0 0
      %571 = vmatpush2.bf16.msra.mxu0 0
      %572 = vmatprep.subr.bf16.mxu0 0
      %573 = vmatpush2.bf16.msra.mxu0 0
      %574 = vmatprep.subr.bf16.mxu0 0
      %575 = vmatpush2.bf16.msra.mxu0 0
      %576 = vmatprep.subr.bf16.mxu0 0
      %577 = vmatpush2.bf16.msra.mxu0 0
      %578 = vmatprep.subr.bf16.mxu0 0
      %579 = vmatpush2.bf16.msra.mxu0 0
      %580 = vmatprep.subr.bf16.mxu0 0
      %581 = vmatpush2.bf16.msra.mxu0 0
      %582 = vmatprep.subr.bf16.mxu0 0
      %583 = vmatpush2.bf16.msra.mxu0 0
      %584 = vmatprep.mubr.bf16.mxu0 0
      %585 = vmatmul.mubr.bf16.gmra.mxu0 %v529
      %v586 = vpop.f32.mrf.mxu0
      %v587 = vadd.f32 %v390, %v586
      %v588 = vpop.f32.mrf.mxu0
      %v589 = vadd.f32 %v394, %v588
      %v590 = vpop.f32.mrf.mxu0
      %v591 = vadd.f32 %v390, %v590
      %v592 = vpop.f32.mrf.mxu0
      %v593 = vadd.f32 %v394, %v592
      %594 = vmatprep.mubr.bf16.mxu0 0
      %595 = vmatmul.mubr.bf16.gmra.mxu0 %v532
      %v596 = vpop.f32.mrf.mxu0
      %v597 = vadd.f32 %v390, %v596
      %v598 = vpop.f32.mrf.mxu0
      %v599 = vadd.f32 %v394, %v598
      %v600 = vpop.f32.mrf.mxu0
      %v601 = vadd.f32 %v390, %v600
      %v602 = vpop.f32.mrf.mxu0
      %v603 = vadd.f32 %v394, %v602
      %604 = vmatprep.mubr.bf16.mxu0 0
      %605 = vmatmul.mubr.bf16.gmra.mxu0 %v535
      %v606 = vpop.f32.mrf.mxu0
      %v607 = vadd.f32 %v390, %v606
      %v608 = vpop.f32.mrf.mxu0
      %v609 = vadd.f32 %v394, %v608
      %v610 = vpop.f32.mrf.mxu0
      %v611 = vadd.f32 %v390, %v610
      %v612 = vpop.f32.mrf.mxu0
      %v613 = vadd.f32 %v394, %v612
      %614 = vmatprep.mubr.bf16.mxu0 0
      %615 = vmatmul.mubr.bf16.gmra.mxu0 %v538
      %v616 = vpop.f32.mrf.mxu0
      %v617 = vadd.f32 %v390, %v616
      %v618 = vpop.f32.mrf.mxu0
      %v619 = vadd.f32 %v394, %v618
      %v620 = vpop.f32.mrf.mxu0
      %v621 = vadd.f32 %v390, %v620
      %v622 = vpop.f32.mrf.mxu0
      %v623 = vadd.f32 %v394, %v622
      %624 = vmatprep.mubr.bf16.mxu0 0
      %625 = vmatmul.mubr.bf16.gmra.mxu0 %v541
      %v626 = vpop.f32.mrf.mxu0
      %v627 = vadd.f32 %v390, %v626
      %v628 = vpop.f32.mrf.mxu0
      %v629 = vadd.f32 %v394, %v628
      %v630 = vpop.f32.mrf.mxu0
      %v631 = vadd.f32 %v390, %v630
      %v632 = vpop.f32.mrf.mxu0
      %v633 = vadd.f32 %v394, %v632
      %634 = vmatprep.mubr.bf16.mxu0 0
      %635 = vmatmul.mubr.bf16.gmra.mxu0 %v544
      %v636 = vpop.f32.mrf.mxu0
      %v637 = vadd.f32 %v390, %v636
      %v638 = vpop.f32.mrf.mxu0
      %v639 = vadd.f32 %v394, %v638
      %v640 = vpop.f32.mrf.mxu0
      %v641 = vadd.f32 %v390, %v640
      %v642 = vpop.f32.mrf.mxu0
      %v643 = vadd.f32 %v394, %v642
      %644 = vmatprep.mubr.bf16.mxu0 0
      %645 = vmatmul.mubr.bf16.gmra.mxu0 %v547
      %v646 = vpop.f32.mrf.mxu0
      %v647 = vadd.f32 %v390, %v646
      %v648 = vpop.f32.mrf.mxu0
      %v649 = vadd.f32 %v394, %v648
      %v650 = vpop.f32.mrf.mxu0
      %v651 = vadd.f32 %v390, %v650
      %v652 = vpop.f32.mrf.mxu0
      %v653 = vadd.f32 %v394, %v652
      %654 = vmatprep.mubr.bf16.mxu0 0
      %655 = vmatmul.mubr.bf16.gmra.mxu0 %v550
      %v656 = vpop.f32.mrf.mxu0
      %v657 = vadd.f32 %v390, %v656
      %v658 = vpop.f32.mrf.mxu0
      %v659 = vadd.f32 %v394, %v658
      %v660 = vpop.f32.mrf.mxu0
      %v661 = vadd.f32 %v390, %v660
      %v662 = vpop.f32.mrf.mxu0
      %v663 = vadd.f32 %v394, %v662
      %664 = vdwg.mxu0
      %665 = vmatprep.subr.bf16.mxu0 0
      %666 = vmatpush1.bf16.msra.mxu0 0
      %667 = vmatprep.subr.bf16.mxu0 0
      %668 = vmatpush1.bf16.msra.mxu0 0
      %669 = vmatprep.subr.bf16.mxu0 0
      %670 = vmatpush1.bf16.msra.mxu0 0
      %671 = vmatprep.subr.bf16.mxu0 0
      %672 = vmatpush1.bf16.msra.mxu0 0
      %673 = vmatprep.subr.bf16.mxu0 %v510
      %674 = vmatpush1.bf16.msra.mxu0 %v509
      %675 = vmatprep.subr.bf16.mxu0 %v506
      %676 = vmatpush1.bf16.msra.mxu0 %v505
      %677 = vmatprep.subr.bf16.mxu0 %v502
      %678 = vmatpush1.bf16.msra.mxu0 %v501
      %679 = vmatprep.subr.bf16.mxu0 %v498
      %680 = vmatpush1.bf16.msra.mxu0 %v497
      %681 = vmatprep.subr.bf16.mxu0 0
      %682 = vmatpush2.bf16.msra.mxu0 0
      %683 = vmatprep.subr.bf16.mxu0 0
      %684 = vmatpush2.bf16.msra.mxu0 0
      %685 = vmatprep.subr.bf16.mxu0 0
      %686 = vmatpush2.bf16.msra.mxu0 0
      %687 = vmatprep.subr.bf16.mxu0 0
      %688 = vmatpush2.bf16.msra.mxu0 0
      %689 = vmatprep.subr.bf16.mxu0 0
      %690 = vmatpush2.bf16.msra.mxu0 0
      %691 = vmatprep.subr.bf16.mxu0 0
      %692 = vmatpush2.bf16.msra.mxu0 0
      %693 = vmatprep.subr.bf16.mxu0 0
      %694 = vmatpush2.bf16.msra.mxu0 0
      %695 = vmatprep.subr.bf16.mxu0 0
      %696 = vmatpush2.bf16.msra.mxu0 0
      %697 = vmatprep.mubr.bf16.mxu0 0
      %698 = vmatmul.mubr.bf16.gmra.mxu0 %v529
      %v699 = vpop.f32.mrf.mxu0
      %v700 = vadd.f32 %v398, %v699
      %v701 = vpop.f32.mrf.mxu0
      %v702 = vadd.f32 %v402, %v701
      %v703 = vpop.f32.mrf.mxu0
      %v704 = vadd.f32 %v398, %v703
      %v705 = vpop.f32.mrf.mxu0
      %v706 = vadd.f32 %v402, %v705
      %707 = vmatprep.mubr.bf16.mxu0 0
      %708 = vmatmul.mubr.bf16.gmra.mxu0 %v532
      %v709 = vpop.f32.mrf.mxu0
      %v710 = vadd.f32 %v398, %v709
      %v711 = vpop.f32.mrf.mxu0
      %v712 = vadd.f32 %v402, %v711
      %v713 = vpop.f32.mrf.mxu0
      %v714 = vadd.f32 %v398, %v713
      %v715 = vpop.f32.mrf.mxu0
      %v716 = vadd.f32 %v402, %v715
      %717 = vmatprep.mubr.bf16.mxu0 0
      %718 = vmatmul.mubr.bf16.gmra.mxu0 %v535
      %v719 = vpop.f32.mrf.mxu0
      %v720 = vadd.f32 %v398, %v719
      %v721 = vpop.f32.mrf.mxu0
      %v722 = vadd.f32 %v402, %v721
      %v723 = vpop.f32.mrf.mxu0
      %v724 = vadd.f32 %v398, %v723
      %v725 = vpop.f32.mrf.mxu0
      %v726 = vadd.f32 %v402, %v725
      %727 = vmatprep.mubr.bf16.mxu0 0
      %728 = vmatmul.mubr.bf16.gmra.mxu0 %v538
      %v729 = vpop.f32.mrf.mxu0
      %v730 = vadd.f32 %v398, %v729
      %v731 = vpop.f32.mrf.mxu0
      %v732 = vadd.f32 %v402, %v731
      %v733 = vpop.f32.mrf.mxu0
      %v734 = vadd.f32 %v398, %v733
      %v735 = vpop.f32.mrf.mxu0
      %v736 = vadd.f32 %v402, %v735
      %737 = vmatprep.mubr.bf16.mxu0 0
      %738 = vmatmul.mubr.bf16.gmra.mxu0 %v541
      %v739 = vpop.f32.mrf.mxu0
      %v740 = vadd.f32 %v398, %v739
      %v741 = vpop.f32.mrf.mxu0
      %v742 = vadd.f32 %v402, %v741
      %v743 = vpop.f32.mrf.mxu0
      %v744 = vadd.f32 %v398, %v743
      %v745 = vpop.f32.mrf.mxu0
      %v746 = vadd.f32 %v402, %v745
      %747 = vmatprep.mubr.bf16.mxu0 0
      %748 = vmatmul.mubr.bf16.gmra.mxu0 %v544
      %v749 = vpop.f32.mrf.mxu0
      %v750 = vadd.f32 %v398, %v749
      %v751 = vpop.f32.mrf.mxu0
      %v752 = vadd.f32 %v402, %v751
      %v753 = vpop.f32.mrf.mxu0
      %v754 = vadd.f32 %v398, %v753
      %v755 = vpop.f32.mrf.mxu0
      %v756 = vadd.f32 %v402, %v755
      %757 = vmatprep.mubr.bf16.mxu0 0
      %758 = vmatmul.mubr.bf16.gmra.mxu0 %v547
      %v759 = vpop.f32.mrf.mxu0
      %v760 = vadd.f32 %v398, %v759
      %v761 = vpop.f32.mrf.mxu0
      %v762 = vadd.f32 %v402, %v761
      %v763 = vpop.f32.mrf.mxu0
      %v764 = vadd.f32 %v398, %v763
      %v765 = vpop.f32.mrf.mxu0
      %v766 = vadd.f32 %v402, %v765
      %767 = vmatprep.mubr.bf16.mxu0 0
      %768 = vmatmul.mubr.bf16.gmra.mxu0 %v550
      %v769 = vpop.f32.mrf.mxu0
      %v770 = vadd.f32 %v398, %v769
      %v771 = vpop.f32.mrf.mxu0
      %v772 = vadd.f32 %v402, %v771
      %v773 = vpop.f32.mrf.mxu0
      %v774 = vadd.f32 %v398, %v773
      %v775 = vpop.f32.mrf.mxu0
      %v776 = vadd.f32 %v402, %v775
      %777 = vdwg.mxu0
      %778 = vst [vmem:[#allocation2] sm:$0xff] %v587
      %779 = vst [vmem:[#allocation2 + $0x8] sm:$0xff] %v589
      %780 = vst [vmem:[#allocation2 + $0x10] sm:$0xff] %v700
      %781 = vst [vmem:[#allocation2 + $0x18] sm:$0xff] %v702
      %782 = vst [vmem:[#allocation2 + $0x20] sm:$0xff] %v591
      %783 = vst [vmem:[#allocation2 + $0x28] sm:$0xff] %v593
      %784 = vst [vmem:[#allocation2 + $0x30] sm:$0xff] %v704
      %785 = vst [vmem:[#allocation2 + $0x38] sm:$0xff] %v706
      %786 = vst [vmem:[#allocation2 + $0x40] sm:$0xff] %v597
      %787 = vst [vmem:[#allocation2 + $0x48] sm:$0xff] %v599
      %788 = vst [vmem:[#allocation2 + $0x50] sm:$0xff] %v710
      %789 = vst [vmem:[#allocation2 + $0x58] sm:$0xff] %v712
      %790 = vst [vmem:[#allocation2 + $0x60] sm:$0xff] %v601
      %791 = vst [vmem:[#allocation2 + $0x68] sm:$0xff] %v603
      %792 = vst [vmem:[#allocation2 + $0x70] sm:$0xff] %v714
      %793 = vst [vmem:[#allocation2 + $0x78] sm:$0xff] %v716
      %794 = vst [vmem:[#allocation2 + $0x80] sm:$0xff] %v607
      %795 = vst [vmem:[#allocation2 + $0x88] sm:$0xff] %v609
      %796 = vst [vmem:[#allocation2 + $0x90] sm:$0xff] %v720
      %797 = vst [vmem:[#allocation2 + $0x98] sm:$0xff] %v722
      %798 = vst [vmem:[#allocation2 + $0xa0] sm:$0xff] %v611
      %799 = vst [vmem:[#allocation2 + $0xa8] sm:$0xff] %v613
      %800 = vst [vmem:[#allocation2 + $0xb0] sm:$0xff] %v724
      %801 = vst [vmem:[#allocation2 + $0xb8] sm:$0xff] %v726
      %802 = vst [vmem:[#allocation2 + $0xc0] sm:$0xff] %v617
      %803 = vst [vmem:[#allocation2 + $0xc8] sm:$0xff] %v619
      %804 = vst [vmem:[#allocation2 + $0xd0] sm:$0xff] %v730
      %805 = vst [vmem:[#allocation2 + $0xd8] sm:$0xff] %v732
      %806 = vst [vmem:[#allocation2 + $0xe0] sm:$0xff] %v621
      %807 = vst [vmem:[#allocation2 + $0xe8] sm:$0xff] %v623
      %808 = vst [vmem:[#allocation2 + $0xf0] sm:$0xff] %v734
      %809 = vst [vmem:[#allocation2 + $0xf8] sm:$0xff] %v736
      %810 = vst [vmem:[#allocation2 + $0x100] sm:$0xff] %v627
      %811 = vst [vmem:[#allocation2 + $0x108] sm:$0xff] %v629
      %812 = vst [vmem:[#allocation2 + $0x110] sm:$0xff] %v740
      %813 = vst [vmem:[#allocation2 + $0x118] sm:$0xff] %v742
      %814 = vst [vmem:[#allocation2 + $0x120] sm:$0xff] %v631
      %815 = vst [vmem:[#allocation2 + $0x128] sm:$0xff] %v633
      %816 = vst [vmem:[#allocation2 + $0x130] sm:$0xff] %v744
      %817 = vst [vmem:[#allocation2 + $0x138] sm:$0xff] %v746
      %818 = vst [vmem:[#allocation2 + $0x140] sm:$0xff] %v637
      %819 = vst [vmem:[#allocation2 + $0x148] sm:$0xff] %v639
      %820 = vst [vmem:[#allocation2 + $0x150] sm:$0xff] %v750
      %821 = vst [vmem:[#allocation2 + $0x158] sm:$0xff] %v752
      %822 = vst [vmem:[#allocation2 + $0x160] sm:$0xff] %v641
      %823 = vst [vmem:[#allocation2 + $0x168] sm:$0xff] %v643
      %824 = vst [vmem:[#allocation2 + $0x170] sm:$0xff] %v754
      %825 = vst [vmem:[#allocation2 + $0x178] sm:$0xff] %v756
      %826 = vst [vmem:[#allocation2 + $0x180] sm:$0xff] %v647
      %827 = vst [vmem:[#allocation2 + $0x188] sm:$0xff] %v649
      %828 = vst [vmem:[#allocation2 + $0x190] sm:$0xff] %v760
      %829 = vst [vmem:[#allocation2 + $0x198] sm:$0xff] %v762
      %830 = vst [vmem:[#allocation2 + $0x1a0] sm:$0xff] %v651
      %831 = vst [vmem:[#allocation2 + $0x1a8] sm:$0xff] %v653
      %832 = vst [vmem:[#allocation2 + $0x1b0] sm:$0xff] %v764
      %833 = vst [vmem:[#allocation2 + $0x1b8] sm:$0xff] %v766
      %834 = vst [vmem:[#allocation2 + $0x1c0] sm:$0xff] %v657
      %835 = vst [vmem:[#allocation2 + $0x1c8] sm:$0xff] %v659
      %836 = vst [vmem:[#allocation2 + $0x1d0] sm:$0xff] %v770
      %837 = vst [vmem:[#allocation2 + $0x1d8] sm:$0xff] %v772
      %838 = vst [vmem:[#allocation2 + $0x1e0] sm:$0xff] %v661
      %839 = vst [vmem:[#allocation2 + $0x1e8] sm:$0xff] %v663
      %840 = vst [vmem:[#allocation2 + $0x1f0] sm:$0xff] %v774
      %841 = vst [vmem:[#allocation2 + $0x1f8] sm:$0xff] %v776
      %v842 = vld [vmem:[%s347] sm:$0xff]
      %v843 = vld [vmem:[%s3] sm:$0xff]
      %v844 = vld [vmem:[%s3 + $0x8] sm:$0xff]
      %v845 = vld [vmem:[%s3 + $0x10] sm:$0xff]
      %v846 = vld [vmem:[%s3 + $0x18] sm:$0xff]
      %v847 = vld [vmem:[%s3 + $0x20] sm:$0xff]
      %v848 = vld [vmem:[%s3 + $0x28] sm:$0xff]
      %v849 = vld [vmem:[%s3 + $0x30] sm:$0xff]
      %v850 = vld [vmem:[%s3 + $0x38] sm:$0xff]
      %v851 = vld [vmem:[%s3 + $0x40] sm:$0xff]
      %v852 = vld [vmem:[%s3 + $0x48] sm:$0xff]
      %v853 = vld [vmem:[%s3 + $0x50] sm:$0xff]
      %v854 = vld [vmem:[%s3 + $0x58] sm:$0xff]
      %v855 = vld [vmem:[%s3 + $0x60] sm:$0xff]
      %v856 = vld [vmem:[%s3 + $0x68] sm:$0xff]
      %v857 = vld [vmem:[%s3 + $0x70] sm:$0xff]
      %v858 = vld [vmem:[%s3 + $0x78] sm:$0xff]
      %v859 = vld [vmem:[%s3 + $0x80] sm:$0xff]
      %v860 = vld [vmem:[%s3 + $0x88] sm:$0xff]
      %v861 = vld [vmem:[%s3 + $0x90] sm:$0xff]
      %v862 = vld [vmem:[%s3 + $0x98] sm:$0xff]
      %v863 = vld [vmem:[%s3 + $0xa0] sm:$0xff]
      %v864 = vld [vmem:[%s3 + $0xa8] sm:$0xff]
      %v865 = vld [vmem:[%s3 + $0xb0] sm:$0xff]
      %v866 = vld [vmem:[%s3 + $0xb8] sm:$0xff]
      %v867 = vld [vmem:[%s3 + $0xc0] sm:$0xff]
      %v868 = vld [vmem:[%s3 + $0xc8] sm:$0xff]
      %v869 = vld [vmem:[%s3 + $0xd0] sm:$0xff]
      %v870 = vld [vmem:[%s3 + $0xd8] sm:$0xff]
      %v871 = vld [vmem:[%s3 + $0xe0] sm:$0xff]
      %v872 = vld [vmem:[%s3 + $0xe8] sm:$0xff]
      %v873 = vld [vmem:[%s3 + $0xf0] sm:$0xff]
      %v874 = vld [vmem:[%s3 + $0xf8] sm:$0xff]
      %s875 = smul.u32 0, 4
      %s876 = smul.addr %s875, 8
      %s877 = scalar_lea.vmem [#allocation2], %s876
      %v878 = vld [vmem:[%s877] sm:$0xff]
      %v879 = vld [vmem:[%s877 + $0x8] sm:$0xff]
      %v880 = vld [vmem:[%s877 + $0x10] sm:$0xff]
      %v881 = vld [vmem:[%s877 + $0x18] sm:$0xff]
      %v914 = vunpack.c.l.b16 %v843
      %v915 = vunpack.c.h.b16 %v843
      %v916 = vunpack.c.l.b16 %v844
      %v917 = vunpack.c.h.b16 %v844
      %v918 = vunpack.c.l.b16 %v845
      %v919 = vunpack.c.h.b16 %v845
      %v920 = vunpack.c.l.b16 %v846
      %v921 = vunpack.c.h.b16 %v846
      %v922 = vunpack.c.l.b16 %v847
      %v923 = vunpack.c.h.b16 %v847
      %v924 = vunpack.c.l.b16 %v848
      %v925 = vunpack.c.h.b16 %v848
      %v926 = vunpack.c.l.b16 %v849
      %v927 = vunpack.c.h.b16 %v849
      %v928 = vunpack.c.l.b16 %v850
      %v929 = vunpack.c.h.b16 %v850
      %v930 = vunpack.c.l.b16 %v851
      %v931 = vunpack.c.h.b16 %v851
      %v932 = vunpack.c.l.b16 %v852
      %v933 = vunpack.c.h.b16 %v852
      %v934 = vunpack.c.l.b16 %v853
      %v935 = vunpack.c.h.b16 %v853
      %v936 = vunpack.c.l.b16 %v854
      %v937 = vunpack.c.h.b16 %v854
      %v938 = vunpack.c.l.b16 %v855
      %v939 = vunpack.c.h.b16 %v855
      %v940 = vunpack.c.l.b16 %v856
      %v941 = vunpack.c.h.b16 %v856
      %v942 = vunpack.c.l.b16 %v857
      %v943 = vunpack.c.h.b16 %v857
      %v944 = vunpack.c.l.b16 %v858
      %v945 = vunpack.c.h.b16 %v858
      %v946 = vunpack.c.l.b16 %v859
      %v947 = vunpack.c.h.b16 %v859
      %v948 = vunpack.c.l.b16 %v860
      %v949 = vunpack.c.h.b16 %v860
      %v950 = vunpack.c.l.b16 %v861
      %v951 = vunpack.c.h.b16 %v861
      %v952 = vunpack.c.l.b16 %v862
      %v953 = vunpack.c.h.b16 %v862
      %v954 = vunpack.c.l.b16 %v863
      %v955 = vunpack.c.h.b16 %v863
      %v956 = vunpack.c.l.b16 %v864
      %v957 = vunpack.c.h.b16 %v864
      %v958 = vunpack.c.l.b16 %v865
      %v959 = vunpack.c.h.b16 %v865
      %v960 = vunpack.c.l.b16 %v866
      %v961 = vunpack.c.h.b16 %v866
      %v962 = vunpack.c.l.b16 %v867
      %v963 = vunpack.c.h.b16 %v867
      %v964 = vunpack.c.l.b16 %v868
      %v965 = vunpack.c.h.b16 %v868
      %v966 = vunpack.c.l.b16 %v869
      %v967 = vunpack.c.h.b16 %v869
      %v968 = vunpack.c.l.b16 %v870
      %v969 = vunpack.c.h.b16 %v870
      %v970 = vunpack.c.l.b16 %v871
      %v971 = vunpack.c.h.b16 %v871
      %v972 = vunpack.c.l.b16 %v872
      %v973 = vunpack.c.h.b16 %v872
      %v974 = vunpack.c.l.b16 %v873
      %v975 = vunpack.c.h.b16 %v873
      %v976 = vunpack.c.l.b16 %v874
      %v977 = vunpack.c.h.b16 %v874
      %v978 = vpack.c.b16 %v918, %v914
      %v979 = vpack.c.b16 %v919, %v915
      %v980 = vpack.c.b16 %v920, %v916
      %v981 = vpack.c.b16 %v921, %v917
      %v982 = vpack.c.b16 %v926, %v922
      %v983 = vpack.c.b16 %v927, %v923
      %v984 = vpack.c.b16 %v928, %v924
      %v985 = vpack.c.b16 %v929, %v925
      %v986 = vpack.c.b16 %v934, %v930
      %v987 = vpack.c.b16 %v935, %v931
      %v988 = vpack.c.b16 %v936, %v932
      %v989 = vpack.c.b16 %v937, %v933
      %v990 = vpack.c.b16 %v942, %v938
      %v991 = vpack.c.b16 %v943, %v939
      %v992 = vpack.c.b16 %v944, %v940
      %v993 = vpack.c.b16 %v945, %v941
      %v994 = vpack.c.b16 %v950, %v946
      %v995 = vpack.c.b16 %v951, %v947
      %v996 = vpack.c.b16 %v952, %v948
      %v997 = vpack.c.b16 %v953, %v949
      %v998 = vpack.c.b16 %v958, %v954
      %v999 = vpack.c.b16 %v959, %v955
      %v1000 = vpack.c.b16 %v960, %v956
      %v1001 = vpack.c.b16 %v961, %v957
      %v1002 = vpack.c.b16 %v966, %v962
      %v1003 = vpack.c.b16 %v967, %v963
      %v1004 = vpack.c.b16 %v968, %v964
      %v1005 = vpack.c.b16 %v969, %v965
      %v1006 = vpack.c.b16 %v974, %v970
      %v1007 = vpack.c.b16 %v975, %v971
      %v1008 = vpack.c.b16 %v976, %v972
      %v1009 = vpack.c.b16 %v977, %v973
      %1042 = vmatprep.subr.bf16.mxu0 %v1007
      %1043 = vmatpush1.bf16.msra.mxu0 %v1006
      %1044 = vmatprep.subr.bf16.mxu0 %v1003
      %1045 = vmatpush1.bf16.msra.mxu0 %v1002
      %1046 = vmatprep.subr.bf16.mxu0 %v999
      %1047 = vmatpush1.bf16.msra.mxu0 %v998
      %1048 = vmatprep.subr.bf16.mxu0 %v995
      %1049 = vmatpush1.bf16.msra.mxu0 %v994
      %1050 = vmatprep.subr.bf16.mxu0 %v991
      %1051 = vmatpush1.bf16.msra.mxu0 %v990
      %1052 = vmatprep.subr.bf16.mxu0 %v987
      %1053 = vmatpush1.bf16.msra.mxu0 %v986
      %1054 = vmatprep.subr.bf16.mxu0 %v983
      %1055 = vmatpush1.bf16.msra.mxu0 %v982
      %1056 = vmatprep.subr.bf16.mxu0 %v979
      %1057 = vmatpush1.bf16.msra.mxu0 %v978
      %1058 = vmatprep.subr.bf16.mxu0 0
      %1059 = vmatpush2.bf16.msra.mxu0 0
      %1060 = vmatprep.subr.bf16.mxu0 0
      %1061 = vmatpush2.bf16.msra.mxu0 0
      %1062 = vmatprep.subr.bf16.mxu0 0
      %1063 = vmatpush2.bf16.msra.mxu0 0
      %1064 = vmatprep.subr.bf16.mxu0 0
      %1065 = vmatpush2.bf16.msra.mxu0 0
      %1066 = vmatprep.subr.bf16.mxu0 0
      %1067 = vmatpush2.bf16.msra.mxu0 0
      %1068 = vmatprep.subr.bf16.mxu0 0
      %1069 = vmatpush2.bf16.msra.mxu0 0
      %1070 = vmatprep.subr.bf16.mxu0 0
      %1071 = vmatpush2.bf16.msra.mxu0 0
      %1072 = vmatprep.subr.bf16.mxu0 0
      %1073 = vmatpush2.bf16.msra.mxu0 0
      %1074 = vmatprep.mubr.bf16.mxu0 0
      %1075 = vmatmul.mubr.bf16.gmra.mxu0 0
      %v1076 = vpop.f32.mrf.mxu0
      %v1077 = vadd.f32 0.0, %v1076
      %v1078 = vpop.f32.mrf.mxu0
      %v1079 = vadd.f32 0.0, %v1078
      %v1080 = vpop.f32.mrf.mxu0
      %v1081 = vpop.f32.mrf.mxu0
      %1082 = vdwg.mxu0
      %1083 = vmatprep.subr.bf16.mxu0 %v1009
      %1084 = vmatpush1.bf16.msra.mxu0 %v1008
      %1085 = vmatprep.subr.bf16.mxu0 %v1005
      %1086 = vmatpush1.bf16.msra.mxu0 %v1004
      %1087 = vmatprep.subr.bf16.mxu0 %v1001
      %1088 = vmatpush1.bf16.msra.mxu0 %v1000
      %1089 = vmatprep.subr.bf16.mxu0 %v997
      %1090 = vmatpush1.bf16.msra.mxu0 %v996
      %1091 = vmatprep.subr.bf16.mxu0 %v993
      %1092 = vmatpush1.bf16.msra.mxu0 %v992
      %1093 = vmatprep.subr.bf16.mxu0 %v989
      %1094 = vmatpush1.bf16.msra.mxu0 %v988
      %1095 = vmatprep.subr.bf16.mxu0 %v985
      %1096 = vmatpush1.bf16.msra.mxu0 %v984
      %1097 = vmatprep.subr.bf16.mxu0 %v981
      %1098 = vmatpush1.bf16.msra.mxu0 %v980
      %1099 = vmatprep.subr.bf16.mxu0 0
      %1100 = vmatpush2.bf16.msra.mxu0 0
      %1101 = vmatprep.subr.bf16.mxu0 0
      %1102 = vmatpush2.bf16.msra.mxu0 0
      %1103 = vmatprep.subr.bf16.mxu0 0
      %1104 = vmatpush2.bf16.msra.mxu0 0
      %1105 = vmatprep.subr.bf16.mxu0 0
      %1106 = vmatpush2.bf16.msra.mxu0 0
      %1107 = vmatprep.subr.bf16.mxu0 0
      %1108 = vmatpush2.bf16.msra.mxu0 0
      %1109 = vmatprep.subr.bf16.mxu0 0
      %1110 = vmatpush2.bf16.msra.mxu0 0
      %1111 = vmatprep.subr.bf16.mxu0 0
      %1112 = vmatpush2.bf16.msra.mxu0 0
      %1113 = vmatprep.subr.bf16.mxu0 0
      %1114 = vmatpush2.bf16.msra.mxu0 0
      %1115 = vmatprep.mubr.bf16.mxu0 0
      %1116 = vmatmul.mubr.bf16.gmra.mxu0 0
      %v1117 = vpop.f32.mrf.mxu0
      %v1118 = vadd.f32 0.0, %v1117
      %v1119 = vpop.f32.mrf.mxu0
      %v1120 = vadd.f32 0.0, %v1119
      %v1121 = vpop.f32.mrf.mxu0
      %v1122 = vpop.f32.mrf.mxu0
      %1123 = vdwg.mxu0
      %v1124 = vadd.f32 %v878, %v1077
      %v1125 = vadd.f32 %v879, %v1079
      %v1126 = vadd.f32 %v880, %v1118
      %v1127 = vadd.f32 %v881, %v1120
      %v1128 = vxor.u32 %v1124, 2147483648
      %v1129 = vmul.f32 %v1128, 1.442695
      %v1130 = vpow.pop %v1129
      %v1131 = vadd.f32 %v1130, 1.0
      %v1132 = vrcp.pop %v1131
      %v1133 = vmul.f32 1.0, %v1132
      %v1134 = vxor.u32 %v1125, 2147483648
      %v1135 = vmul.f32 %v1134, 1.442695
      %v1136 = vpow.pop %v1135
      %v1137 = vadd.f32 %v1136, 1.0
      %v1138 = vrcp.pop %v1137
      %v1139 = vmul.f32 1.0, %v1138
      %v1140 = vtanh.pop %v1126
      %v1141 = vxor.u32 %v1127, 2147483648
      %v1142 = vmul.f32 %v1141, 1.442695
      %v1143 = vpow.pop %v1142
      %v1144 = vadd.f32 %v1143, 1.0
      %v1145 = vrcp.pop %v1144
      %v1146 = vmul.f32 1.0, %v1145
      %v1147 = vmul.f32 %v1139, 0.0
      %v1148 = vmul.f32 %v1133, %v1140
      %v1149 = vadd.f32 %v1147, %v1148
      %v1150 = vtanh.pop %v1149
      %v1151 = vmul.f32 %v1146, %v1150
      %vm1152 = vcmp.gt.s32.totalorder %v842, 0
      %v1153 = vsel %vm1152, 1, 0
      %1154 = vset.pattern.permute.xlu0 0
      %1155 = vperm.xlu0 %1154, %v1153
      %v1156 = vpop.permute.xlu0 %1155
      %vm1157 = vcmp.eq.s32.totalorder %v1156, 1
      %v1158 = vsel %vm1157, %v1151, 0.0
      %v1159 = vsel %vm1157, %v1149, 0.0
      %s1160 = smul.u32 1, 4
      %s1161 = smul.addr %s1160, 8
      %s1162 = scalar_lea.vmem [#allocation2], %s1161
      %v1163 = vld [vmem:[%s1162] sm:$0xff]
      %v1164 = vld [vmem:[%s1162 + $0x8] sm:$0xff]
      %v1165 = vld [vmem:[%s1162 + $0x10] sm:$0xff]
      %v1166 = vld [vmem:[%s1162 + $0x18] sm:$0xff]
      %v1167 = vpack.c.bf16 %v1158, %v1158
      %1168 = vmatprep.subr.bf16.mxu0 %v1007
      %1169 = vmatpush1.bf16.msra.mxu0 %v1006
      %1170 = vmatprep.subr.bf16.mxu0 %v1003
      %1171 = vmatpush1.bf16.msra.mxu0 %v1002
      %1172 = vmatprep.subr.bf16.mxu0 %v999
      %1173 = vmatpush1.bf16.msra.mxu0 %v998
      %1174 = vmatprep.subr.bf16.mxu0 %v995
      %1175 = vmatpush1.bf16.msra.mxu0 %v994
      %1176 = vmatprep.subr.bf16.mxu0 %v991
      %1177 = vmatpush1.bf16.msra.mxu0 %v990
      %1178 = vmatprep.subr.bf16.mxu0 %v987
      %1179 = vmatpush1.bf16.msra.mxu0 %v986
      %1180 = vmatprep.subr.bf16.mxu0 %v983
      %1181 = vmatpush1.bf16.msra.mxu0 %v982
      %1182 = vmatprep.subr.bf16.mxu0 %v979
      %1183 = vmatpush1.bf16.msra.mxu0 %v978
      %1184 = vmatprep.subr.bf16.mxu0 0
      %1185 = vmatpush2.bf16.msra.mxu0 0
      %1186 = vmatprep.subr.bf16.mxu0 0
      %1187 = vmatpush2.bf16.msra.mxu0 0
      %1188 = vmatprep.subr.bf16.mxu0 0
      %1189 = vmatpush2.bf16.msra.mxu0 0
      %1190 = vmatprep.subr.bf16.mxu0 0
      %1191 = vmatpush2.bf16.msra.mxu0 0
      %1192 = vmatprep.subr.bf16.mxu0 0
      %1193 = vmatpush2.bf16.msra.mxu0 0
      %1194 = vmatprep.subr.bf16.mxu0 0
      %1195 = vmatpush2.bf16.msra.mxu0 0
      %1196 = vmatprep.subr.bf16.mxu0 0
      %1197 = vmatpush2.bf16.msra.mxu0 0
      %1198 = vmatprep.subr.bf16.mxu0 0
      %1199 = vmatpush2.bf16.msra.mxu0 0
      %1200 = vmatprep.mubr.bf16.mxu0 0
      %1201 = vmatmul.mubr.bf16.gmra.mxu0 %v1167
      %v1202 = vpop.f32.mrf.mxu0
      %v1203 = vadd.f32 0.0, %v1202
      %v1204 = vpop.f32.mrf.mxu0
      %v1205 = vadd.f32 0.0, %v1204
      %v1206 = vpop.f32.mrf.mxu0
      %v1207 = vpop.f32.mrf.mxu0
      %1208 = vdwg.mxu0
      %1209 = vmatprep.subr.bf16.mxu0 %v1009
      %1210 = vmatpush1.bf16.msra.mxu0 %v1008
      %1211 = vmatprep.subr.bf16.mxu0 %v1005
      %1212 = vmatpush1.bf16.msra.mxu0 %v1004
      %1213 = vmatprep.subr.bf16.mxu0 %v1001
      %1214 = vmatpush1.bf16.msra.mxu0 %v1000
      %1215 = vmatprep.subr.bf16.mxu0 %v997
      %1216 = vmatpush1.bf16.msra.mxu0 %v996
      %1217 = vmatprep.subr.bf16.mxu0 %v993
      %1218 = vmatpush1.bf16.msra.mxu0 %v992
      %1219 = vmatprep.subr.bf16.mxu0 %v989
      %1220 = vmatpush1.bf16.msra.mxu0 %v988
      %1221 = vmatprep.subr.bf16.mxu0 %v985
      %1222 = vmatpush1.bf16.msra.mxu0 %v984
      %1223 = vmatprep.subr.bf16.mxu0 %v981
      %1224 = vmatpush1.bf16.msra.mxu0 %v980
      %1225 = vmatprep.subr.bf16.mxu0 0
      %1226 = vmatpush2.bf16.msra.mxu0 0
      %1227 = vmatprep.subr.bf16.mxu0 0
      %1228 = vmatpush2.bf16.msra.mxu0 0
      %1229 = vmatprep.subr.bf16.mxu0 0
      %1230 = vmatpush2.bf16.msra.mxu0 0
      %1231 = vmatprep.subr.bf16.mxu0 0
      %1232 = vmatpush2.bf16.msra.mxu0 0
      %1233 = vmatprep.subr.bf16.mxu0 0
      %1234 = vmatpush2.bf16.msra.mxu0 0
      %1235 = vmatprep.subr.bf16.mxu0 0
      %1236 = vmatpush2.bf16.msra.mxu0 0
      %1237 = vmatprep.subr.bf16.mxu0 0
      %1238 = vmatpush2.bf16.msra.mxu0 0
      %1239 = vmatprep.subr.bf16.mxu0 0
      %1240 = vmatpush2.bf16.msra.mxu0 0
      %1241 = vmatprep.mubr.bf16.mxu0 0
      %1242 = vmatmul.mubr.bf16.gmra.mxu0 %v1167
      %v1243 = vpop.f32.mrf.mxu0
      %v1244 = vadd.f32 0.0, %v1243
      %v1245 = vpop.f32.mrf.mxu0
      %v1246 = vadd.f32 0.0, %v1245
      %v1247 = vpop.f32.mrf.mxu0
      %v1248 = vpop.f32.mrf.mxu0
      %1249 = vdwg.mxu0
      %v1250 = vadd.f32 %v1163, %v1203
      %v1251 = vadd.f32 %v1164, %v1205
      %v1252 = vadd.f32 %v1165, %v1244
      %v1253 = vadd.f32 %v1166, %v1246
      %v1254 = vxor.u32 %v1250, 2147483648
      %v1255 = vmul.f32 %v1254, 1.442695
      %v1256 = vpow.pop %v1255
      %v1257 = vadd.f32 %v1256, 1.0
      %v1258 = vrcp.pop %v1257
      %v1259 = vmul.f32 1.0, %v1258
      %v1260 = vxor.u32 %v1251, 2147483648
      %v1261 = vmul.f32 %v1260, 1.442695
      %v1262 = vpow.pop %v1261
      %v1263 = vadd.f32 %v1262, 1.0
      %v1264 = vrcp.pop %v1263
      %v1265 = vmul.f32 1.0, %v1264
      %v1266 = vtanh.pop %v1252
      %v1267 = vxor.u32 %v1253, 2147483648
      %v1268 = vmul.f32 %v1267, 1.442695
      %v1269 = vpow.pop %v1268
      %v1270 = vadd.f32 %v1269, 1.0
      %v1271 = vrcp.pop %v1270
      %v1272 = vmul.f32 1.0, %v1271
      %v1273 = vmul.f32 %v1265, %v1159
      %v1274 = vmul.f32 %v1259, %v1266
      %v1275 = vadd.f32 %v1273, %v1274
      %v1276 = vtanh.pop %v1275
      %v1277 = vmul.f32 %v1272, %v1276
      %vm1278 = vcmp.gt.s32.totalorder %v842, 1
      %v1279 = vsel %vm1278, 1, 0
      %1280 = vset.pattern.permute.xlu0 0
      %1281 = vperm.xlu0 %1280, %v1279
      %v1282 = vpop.permute.xlu0 %1281
      %vm1283 = vcmp.eq.s32.totalorder %v1282, 1
      %v1284 = vsel %vm1283, %v1277, %v1158
      %v1285 = vsel %vm1283, %v1275, %v1159
      %s1286 = smul.u32 2, 4
      %s1287 = smul.addr %s1286, 8
      %s1288 = scalar_lea.vmem [#allocation2], %s1287
      %v1289 = vld [vmem:[%s1288] sm:$0xff]
      %v1290 = vld [vmem:[%s1288 + $0x8] sm:$0xff]
      %v1291 = vld [vmem:[%s1288 + $0x10] sm:$0xff]
      %v1292 = vld [vmem:[%s1288 + $0x18] sm:$0xff]
      %v1293 = vpack.c.bf16 %v1284, %v1284
      %1294 = vmatprep.subr.bf16.mxu0 %v1007
      %1295 = vmatpush1.bf16.msra.mxu0 %v1006
      %1296 = vmatprep.subr.bf16.mxu0 %v1003
      %1297 = vmatpush1.bf16.msra.mxu0 %v1002
      %1298 = vmatprep.subr.bf16.mxu0 %v999
      %1299 = vmatpush1.bf16.msra.mxu0 %v998
      %1300 = vmatprep.subr.bf16.mxu0 %v995
      %1301 = vmatpush1.bf16.msra.mxu0 %v994
      %1302 = vmatprep.subr.bf16.mxu0 %v991
      %1303 = vmatpush1.bf16.msra.mxu0 %v990
      %1304 = vmatprep.subr.bf16.mxu0 %v987
      %1305 = vmatpush1.bf16.msra.mxu0 %v986
      %1306 = vmatprep.subr.bf16.mxu0 %v983
      %1307 = vmatpush1.bf16.msra.mxu0 %v982
      %1308 = vmatprep.subr.bf16.mxu0 %v979
      %1309 = vmatpush1.bf16.msra.mxu0 %v978
      %1310 = vmatprep.subr.bf16.mxu0 0
      %1311 = vmatpush2.bf16.msra.mxu0 0
      %1312 = vmatprep.subr.bf16.mxu0 0
      %1313 = vmatpush2.bf16.msra.mxu0 0
      %1314 = vmatprep.subr.bf16.mxu0 0
      %1315 = vmatpush2.bf16.msra.mxu0 0
      %1316 = vmatprep.subr.bf16.mxu0 0
      %1317 = vmatpush2.bf16.msra.mxu0 0
      %1318 = vmatprep.subr.bf16.mxu0 0
      %1319 = vmatpush2.bf16.msra.mxu0 0
      %1320 = vmatprep.subr.bf16.mxu0 0
      %1321 = vmatpush2.bf16.msra.mxu0 0
      %1322 = vmatprep.subr.bf16.mxu0 0
      %1323 = vmatpush2.bf16.msra.mxu0 0
      %1324 = vmatprep.subr.bf16.mxu0 0
      %1325 = vmatpush2.bf16.msra.mxu0 0
      %1326 = vmatprep.mubr.bf16.mxu0 0
      %1327 = vmatmul.mubr.bf16.gmra.mxu0 %v1293
      %v1328 = vpop.f32.mrf.mxu0
      %v1329 = vadd.f32 0.0, %v1328
      %v1330 = vpop.f32.mrf.mxu0
      %v1331 = vadd.f32 0.0, %v1330
      %v1332 = vpop.f32.mrf.mxu0
      %v1333 = vpop.f32.mrf.mxu0
      %1334 = vdwg.mxu0
      %1335 = vmatprep.subr.bf16.mxu0 %v1009
      %1336 = vmatpush1.bf16.msra.mxu0 %v1008
      %1337 = vmatprep.subr.bf16.mxu0 %v1005
      %1338 = vmatpush1.bf16.msra.mxu0 %v1004
      %1339 = vmatprep.subr.bf16.mxu0 %v1001
      %1340 = vmatpush1.bf16.msra.mxu0 %v1000
      %1341 = vmatprep.subr.bf16.mxu0 %v997
      %1342 = vmatpush1.bf16.msra.mxu0 %v996
      %1343 = vmatprep.subr.bf16.mxu0 %v993
      %1344 = vmatpush1.bf16.msra.mxu0 %v992
      %1345 = vmatprep.subr.bf16.mxu0 %v989
      %1346 = vmatpush1.bf16.msra.mxu0 %v988
      %1347 = vmatprep.subr.bf16.mxu0 %v985
      %1348 = vmatpush1.bf16.msra.mxu0 %v984
      %1349 = vmatprep.subr.bf16.mxu0 %v981
      %1350 = vmatpush1.bf16.msra.mxu0 %v980
      %1351 = vmatprep.subr.bf16.mxu0 0
      %1352 = vmatpush2.bf16.msra.mxu0 0
      %1353 = vmatprep.subr.bf16.mxu0 0
      %1354 = vmatpush2.bf16.msra.mxu0 0
      %1355 = vmatprep.subr.bf16.mxu0 0
      %1356 = vmatpush2.bf16.msra.mxu0 0
      %1357 = vmatprep.subr.bf16.mxu0 0
      %1358 = vmatpush2.bf16.msra.mxu0 0
      %1359 = vmatprep.subr.bf16.mxu0 0
      %1360 = vmatpush2.bf16.msra.mxu0 0
      %1361 = vmatprep.subr.bf16.mxu0 0
      %1362 = vmatpush2.bf16.msra.mxu0 0
      %1363 = vmatprep.subr.bf16.mxu0 0
      %1364 = vmatpush2.bf16.msra.mxu0 0
      %1365 = vmatprep.subr.bf16.mxu0 0
      %1366 = vmatpush2.bf16.msra.mxu0 0
      %1367 = vmatprep.mubr.bf16.mxu0 0
      %1368 = vmatmul.mubr.bf16.gmra.mxu0 %v1293
      %v1369 = vpop.f32.mrf.mxu0
      %v1370 = vadd.f32 0.0, %v1369
      %v1371 = vpop.f32.mrf.mxu0
      %v1372 = vadd.f32 0.0, %v1371
      %v1373 = vpop.f32.mrf.mxu0
      %v1374 = vpop.f32.mrf.mxu0
      %1375 = vdwg.mxu0
      %v1376 = vadd.f32 %v1289, %v1329
      %v1377 = vadd.f32 %v1290, %v1331
      %v1378 = vadd.f32 %v1291, %v1370
      %v1379 = vadd.f32 %v1292, %v1372
      %v1380 = vxor.u32 %v1376, 2147483648
      %v1381 = vmul.f32 %v1380, 1.442695
      %v1382 = vpow.pop %v1381
      %v1383 = vadd.f32 %v1382, 1.0
      %v1384 = vrcp.pop %v1383
      %v1385 = vmul.f32 1.0, %v1384
      %v1386 = vxor.u32 %v1377, 2147483648
      %v1387 = vmul.f32 %v1386, 1.442695
      %v1388 = vpow.pop %v1387
      %v1389 = vadd.f32 %v1388, 1.0
      %v1390 = vrcp.pop %v1389
      %v1391 = vmul.f32 1.0, %v1390
      %v1392 = vtanh.pop %v1378
      %v1393 = vxor.u32 %v1379, 2147483648
      %v1394 = vmul.f32 %v1393, 1.442695
      %v1395 = vpow.pop %v1394
      %v1396 = vadd.f32 %v1395, 1.0
      %v1397 = vrcp.pop %v1396
      %v1398 = vmul.f32 1.0, %v1397
      %v1399 = vmul.f32 %v1391, %v1285
      %v1400 = vmul.f32 %v1385, %v1392
      %v1401 = vadd.f32 %v1399, %v1400
      %v1402 = vtanh.pop %v1401
      %v1403 = vmul.f32 %v1398, %v1402
      %vm1404 = vcmp.gt.s32.totalorder %v842, 2
      %v1405 = vsel %vm1404, 1, 0
      %1406 = vset.pattern.permute.xlu0 0
      %1407 = vperm.xlu0 %1406, %v1405
      %v1408 = vpop.permute.xlu0 %1407
      %vm1409 = vcmp.eq.s32.totalorder %v1408, 1
      %v1410 = vsel %vm1409, %v1403, %v1284
      %v1411 = vsel %vm1409, %v1401, %v1285
      %s1412 = smul.u32 3, 4
      %s1413 = smul.addr %s1412, 8
      %s1414 = scalar_lea.vmem [#allocation2], %s1413
      %v1415 = vld [vmem:[%s1414] sm:$0xff]
      %v1416 = vld [vmem:[%s1414 + $0x8] sm:$0xff]
      %v1417 = vld [vmem:[%s1414 + $0x10] sm:$0xff]
      %v1418 = vld [vmem:[%s1414 + $0x18] sm:$0xff]
      %v1419 = vpack.c.bf16 %v1410, %v1410
      %1420 = vmatprep.subr.bf16.mxu0 %v1007
      %1421 = vmatpush1.bf16.msra.mxu0 %v1006
      %1422 = vmatprep.subr.bf16.mxu0 %v1003
      %1423 = vmatpush1.bf16.msra.mxu0 %v1002
      %1424 = vmatprep.subr.bf16.mxu0 %v999
      %1425 = vmatpush1.bf16.msra.mxu0 %v998
      %1426 = vmatprep.subr.bf16.mxu0 %v995
      %1427 = vmatpush1.bf16.msra.mxu0 %v994
      %1428 = vmatprep.subr.bf16.mxu0 %v991
      %1429 = vmatpush1.bf16.msra.mxu0 %v990
      %1430 = vmatprep.subr.bf16.mxu0 %v987
      %1431 = vmatpush1.bf16.msra.mxu0 %v986
      %1432 = vmatprep.subr.bf16.mxu0 %v983
      %1433 = vmatpush1.bf16.msra.mxu0 %v982
      %1434 = vmatprep.subr.bf16.mxu0 %v979
      %1435 = vmatpush1.bf16.msra.mxu0 %v978
      %1436 = vmatprep.subr.bf16.mxu0 0
      %1437 = vmatpush2.bf16.msra.mxu0 0
      %1438 = vmatprep.subr.bf16.mxu0 0
      %1439 = vmatpush2.bf16.msra.mxu0 0
      %1440 = vmatprep.subr.bf16.mxu0 0
      %1441 = vmatpush2.bf16.msra.mxu0 0
      %1442 = vmatprep.subr.bf16.mxu0 0
      %1443 = vmatpush2.bf16.msra.mxu0 0
      %1444 = vmatprep.subr.bf16.mxu0 0
      %1445 = vmatpush2.bf16.msra.mxu0 0
      %1446 = vmatprep.subr.bf16.mxu0 0
      %1447 = vmatpush2.bf16.msra.mxu0 0
      %1448 = vmatprep.subr.bf16.mxu0 0
      %1449 = vmatpush2.bf16.msra.mxu0 0
      %1450 = vmatprep.subr.bf16.mxu0 0
      %1451 = vmatpush2.bf16.msra.mxu0 0
      %1452 = vmatprep.mubr.bf16.mxu0 0
      %1453 = vmatmul.mubr.bf16.gmra.mxu0 %v1419
      %v1454 = vpop.f32.mrf.mxu0
      %v1455 = vadd.f32 0.0, %v1454
      %v1456 = vpop.f32.mrf.mxu0
      %v1457 = vadd.f32 0.0, %v1456
      %v1458 = vpop.f32.mrf.mxu0
      %v1459 = vpop.f32.mrf.mxu0
      %1460 = vdwg.mxu0
      %1461 = vmatprep.subr.bf16.mxu0 %v1009
      %1462 = vmatpush1.bf16.msra.mxu0 %v1008
      %1463 = vmatprep.subr.bf16.mxu0 %v1005
      %1464 = vmatpush1.bf16.msra.mxu0 %v1004
      %1465 = vmatprep.subr.bf16.mxu0 %v1001
      %1466 = vmatpush1.bf16.msra.mxu0 %v1000
      %1467 = vmatprep.subr.bf16.mxu0 %v997
      %1468 = vmatpush1.bf16.msra.mxu0 %v996
      %1469 = vmatprep.subr.bf16.mxu0 %v993
      %1470 = vmatpush1.bf16.msra.mxu0 %v992
      %1471 = vmatprep.subr.bf16.mxu0 %v989
      %1472 = vmatpush1.bf16.msra.mxu0 %v988
      %1473 = vmatprep.subr.bf16.mxu0 %v985
      %1474 = vmatpush1.bf16.msra.mxu0 %v984
      %1475 = vmatprep.subr.bf16.mxu0 %v981
      %1476 = vmatpush1.bf16.msra.mxu0 %v980
      %1477 = vmatprep.subr.bf16.mxu0 0
      %1478 = vmatpush2.bf16.msra.mxu0 0
      %1479 = vmatprep.subr.bf16.mxu0 0
      %1480 = vmatpush2.bf16.msra.mxu0 0
      %1481 = vmatprep.subr.bf16.mxu0 0
      %1482 = vmatpush2.bf16.msra.mxu0 0
      %1483 = vmatprep.subr.bf16.mxu0 0
      %1484 = vmatpush2.bf16.msra.mxu0 0
      %1485 = vmatprep.subr.bf16.mxu0 0
      %1486 = vmatpush2.bf16.msra.mxu0 0
      %1487 = vmatprep.subr.bf16.mxu0 0
      %1488 = vmatpush2.bf16.msra.mxu0 0
      %1489 = vmatprep.subr.bf16.mxu0 0
      %1490 = vmatpush2.bf16.msra.mxu0 0
      %1491 = vmatprep.subr.bf16.mxu0 0
      %1492 = vmatpush2.bf16.msra.mxu0 0
      %1493 = vmatprep.mubr.bf16.mxu0 0
      %1494 = vmatmul.mubr.bf16.gmra.mxu0 %v1419
      %v1495 = vpop.f32.mrf.mxu0
      %v1496 = vadd.f32 0.0, %v1495
      %v1497 = vpop.f32.mrf.mxu0
      %v1498 = vadd.f32 0.0, %v1497
      %v1499 = vpop.f32.mrf.mxu0
      %v1500 = vpop.f32.mrf.mxu0
      %1501 = vdwg.mxu0
      %v1502 = vadd.f32 %v1415, %v1455
      %v1503 = vadd.f32 %v1416, %v1457
      %v1504 = vadd.f32 %v1417, %v1496
      %v1505 = vadd.f32 %v1418, %v1498
      %v1506 = vxor.u32 %v1502, 2147483648
      %v1507 = vmul.f32 %v1506, 1.442695
      %v1508 = vpow.pop %v1507
      %v1509 = vadd.f32 %v1508, 1.0
      %v1510 = vrcp.pop %v1509
      %v1511 = vmul.f32 1.0, %v1510
      %v1512 = vxor.u32 %v1503, 2147483648
      %v1513 = vmul.f32 %v1512, 1.442695
      %v1514 = vpow.pop %v1513
      %v1515 = vadd.f32 %v1514, 1.0
      %v1516 = vrcp.pop %v1515
      %v1517 = vmul.f32 1.0, %v1516
      %v1518 = vtanh.pop %v1504
      %v1519 = vxor.u32 %v1505, 2147483648
      %v1520 = vmul.f32 %v1519, 1.442695
      %v1521 = vpow.pop %v1520
      %v1522 = vadd.f32 %v1521, 1.0
      %v1523 = vrcp.pop %v1522
      %v1524 = vmul.f32 1.0, %v1523
      %v1525 = vmul.f32 %v1517, %v1411
      %v1526 = vmul.f32 %v1511, %v1518
      %v1527 = vadd.f32 %v1525, %v1526
      %v1528 = vtanh.pop %v1527
      %v1529 = vmul.f32 %v1524, %v1528
      %vm1530 = vcmp.gt.s32.totalorder %v842, 3
      %v1531 = vsel %vm1530, 1, 0
      %1532 = vset.pattern.permute.xlu0 0
      %1533 = vperm.xlu0 %1532, %v1531
      %v1534 = vpop.permute.xlu0 %1533
      %vm1535 = vcmp.eq.s32.totalorder %v1534, 1
      %v1536 = vsel %vm1535, %v1529, %v1410
      %v1537 = vsel %vm1535, %v1527, %v1411
      %s1538 = smul.u32 4, 4
      %s1539 = smul.addr %s1538, 8
      %s1540 = scalar_lea.vmem [#allocation2], %s1539
      %v1541 = vld [vmem:[%s1540] sm:$0xff]
      %v1542 = vld [vmem:[%s1540 + $0x8] sm:$0xff]
      %v1543 = vld [vmem:[%s1540 + $0x10] sm:$0xff]
      %v1544 = vld [vmem:[%s1540 + $0x18] sm:$0xff]
      %v1545 = vpack.c.bf16 %v1536, %v1536
      %1546 = vmatprep.subr.bf16.mxu0 %v1007
      %1547 = vmatpush1.bf16.msra.mxu0 %v1006
      %1548 = vmatprep.subr.bf16.mxu0 %v1003
      %1549 = vmatpush1.bf16.msra.mxu0 %v1002
      %1550 = vmatprep.subr.bf16.mxu0 %v999
      %1551 = vmatpush1.bf16.msra.mxu0 %v998
      %1552 = vmatprep.subr.bf16.mxu0 %v995
      %1553 = vmatpush1.bf16.msra.mxu0 %v994
      %1554 = vmatprep.subr.bf16.mxu0 %v991
      %1555 = vmatpush1.bf16.msra.mxu0 %v990
      %1556 = vmatprep.subr.bf16.mxu0 %v987
      %1557 = vmatpush1.bf16.msra.mxu0 %v986
      %1558 = vmatprep.subr.bf16.mxu0 %v983
      %1559 = vmatpush1.bf16.msra.mxu0 %v982
      %1560 = vmatprep.subr.bf16.mxu0 %v979
      %1561 = vmatpush1.bf16.msra.mxu0 %v978
      %1562 = vmatprep.subr.bf16.mxu0 0
      %1563 = vmatpush2.bf16.msra.mxu0 0
      %1564 = vmatprep.subr.bf16.mxu0 0
      %1565 = vmatpush2.bf16.msra.mxu0 0
      %1566 = vmatprep.subr.bf16.mxu0 0
      %1567 = vmatpush2.bf16.msra.mxu0 0
      %1568 = vmatprep.subr.bf16.mxu0 0
      %1569 = vmatpush2.bf16.msra.mxu0 0
      %1570 = vmatprep.subr.bf16.mxu0 0
      %1571 = vmatpush2.bf16.msra.mxu0 0
      %1572 = vmatprep.subr.bf16.mxu0 0
      %1573 = vmatpush2.bf16.msra.mxu0 0
      %1574 = vmatprep.subr.bf16.mxu0 0
      %1575 = vmatpush2.bf16.msra.mxu0 0
      %1576 = vmatprep.subr.bf16.mxu0 0
      %1577 = vmatpush2.bf16.msra.mxu0 0
      %1578 = vmatprep.mubr.bf16.mxu0 0
      %1579 = vmatmul.mubr.bf16.gmra.mxu0 %v1545
      %v1580 = vpop.f32.mrf.mxu0
      %v1581 = vadd.f32 0.0, %v1580
      %v1582 = vpop.f32.mrf.mxu0
      %v1583 = vadd.f32 0.0, %v1582
      %v1584 = vpop.f32.mrf.mxu0
      %v1585 = vpop.f32.mrf.mxu0
      %1586 = vdwg.mxu0
      %1587 = vmatprep.subr.bf16.mxu0 %v1009
      %1588 = vmatpush1.bf16.msra.mxu0 %v1008
      %1589 = vmatprep.subr.bf16.mxu0 %v1005
      %1590 = vmatpush1.bf16.msra.mxu0 %v1004
      %1591 = vmatprep.subr.bf16.mxu0 %v1001
      %1592 = vmatpush1.bf16.msra.mxu0 %v1000
      %1593 = vmatprep.subr.bf16.mxu0 %v997
      %1594 = vmatpush1.bf16.msra.mxu0 %v996
      %1595 = vmatprep.subr.bf16.mxu0 %v993
      %1596 = vmatpush1.bf16.msra.mxu0 %v992
      %1597 = vmatprep.subr.bf16.mxu0 %v989
      %1598 = vmatpush1.bf16.msra.mxu0 %v988
      %1599 = vmatprep.subr.bf16.mxu0 %v985
      %1600 = vmatpush1.bf16.msra.mxu0 %v984
      %1601 = vmatprep.subr.bf16.mxu0 %v981
      %1602 = vmatpush1.bf16.msra.mxu0 %v980
      %1603 = vmatprep.subr.bf16.mxu0 0
      %1604 = vmatpush2.bf16.msra.mxu0 0
      %1605 = vmatprep.subr.bf16.mxu0 0
      %1606 = vmatpush2.bf16.msra.mxu0 0
      %1607 = vmatprep.subr.bf16.mxu0 0
      %1608 = vmatpush2.bf16.msra.mxu0 0
      %1609 = vmatprep.subr.bf16.mxu0 0
      %1610 = vmatpush2.bf16.msra.mxu0 0
      %1611 = vmatprep.subr.bf16.mxu0 0
      %1612 = vmatpush2.bf16.msra.mxu0 0
      %1613 = vmatprep.subr.bf16.mxu0 0
      %1614 = vmatpush2.bf16.msra.mxu0 0
      %1615 = vmatprep.subr.bf16.mxu0 0
      %1616 = vmatpush2.bf16.msra.mxu0 0
      %1617 = vmatprep.subr.bf16.mxu0 0
      %1618 = vmatpush2.bf16.msra.mxu0 0
      %1619 = vmatprep.mubr.bf16.mxu0 0
      %1620 = vmatmul.mubr.bf16.gmra.mxu0 %v1545
      %v1621 = vpop.f32.mrf.mxu0
      %v1622 = vadd.f32 0.0, %v1621
      %v1623 = vpop.f32.mrf.mxu0
      %v1624 = vadd.f32 0.0, %v1623
      %v1625 = vpop.f32.mrf.mxu0
      %v1626 = vpop.f32.mrf.mxu0
      %1627 = vdwg.mxu0
      %v1628 = vadd.f32 %v1541, %v1581
      %v1629 = vadd.f32 %v1542, %v1583
      %v1630 = vadd.f32 %v1543, %v1622
      %v1631 = vadd.f32 %v1544, %v1624
      %v1632 = vxor.u32 %v1628, 2147483648
      %v1633 = vmul.f32 %v1632, 1.442695
      %v1634 = vpow.pop %v1633
      %v1635 = vadd.f32 %v1634, 1.0
      %v1636 = vrcp.pop %v1635
      %v1637 = vmul.f32 1.0, %v1636
      %v1638 = vxor.u32 %v1629, 2147483648
      %v1639 = vmul.f32 %v1638, 1.442695
      %v1640 = vpow.pop %v1639
      %v1641 = vadd.f32 %v1640, 1.0
      %v1642 = vrcp.pop %v1641
      %v1643 = vmul.f32 1.0, %v1642
      %v1644 = vtanh.pop %v1630
      %v1645 = vxor.u32 %v1631, 2147483648
      %v1646 = vmul.f32 %v1645, 1.442695
      %v1647 = vpow.pop %v1646
      %v1648 = vadd.f32 %v1647, 1.0
      %v1649 = vrcp.pop %v1648
      %v1650 = vmul.f32 1.0, %v1649
      %v1651 = vmul.f32 %v1643, %v1537
      %v1652 = vmul.f32 %v1637, %v1644
      %v1653 = vadd.f32 %v1651, %v1652
      %v1654 = vtanh.pop %v1653
      %v1655 = vmul.f32 %v1650, %v1654
      %vm1656 = vcmp.gt.s32.totalorder %v842, 4
      %v1657 = vsel %vm1656, 1, 0
      %1658 = vset.pattern.permute.xlu0 0
      %1659 = vperm.xlu0 %1658, %v1657
      %v1660 = vpop.permute.xlu0 %1659
      %vm1661 = vcmp.eq.s32.totalorder %v1660, 1
      %v1662 = vsel %vm1661, %v1655, %v1536
      %v1663 = vsel %vm1661, %v1653, %v1537
      %s1664 = smul.u32 5, 4
      %s1665 = smul.addr %s1664, 8
      %s1666 = scalar_lea.vmem [#allocation2], %s1665
      %v1667 = vld [vmem:[%s1666] sm:$0xff]
      %v1668 = vld [vmem:[%s1666 + $0x8] sm:$0xff]
      %v1669 = vld [vmem:[%s1666 + $0x10] sm:$0xff]
      %v1670 = vld [vmem:[%s1666 + $0x18] sm:$0xff]
      %v1671 = vpack.c.bf16 %v1662, %v1662
      %1672 = vmatprep.subr.bf16.mxu0 %v1007
      %1673 = vmatpush1.bf16.msra.mxu0 %v1006
      %1674 = vmatprep.subr.bf16.mxu0 %v1003
      %1675 = vmatpush1.bf16.msra.mxu0 %v1002
      %1676 = vmatprep.subr.bf16.mxu0 %v999
      %1677 = vmatpush1.bf16.msra.mxu0 %v998
      %1678 = vmatprep.subr.bf16.mxu0 %v995
      %1679 = vmatpush1.bf16.msra.mxu0 %v994
      %1680 = vmatprep.subr.bf16.mxu0 %v991
      %1681 = vmatpush1.bf16.msra.mxu0 %v990
      %1682 = vmatprep.subr.bf16.mxu0 %v987
      %1683 = vmatpush1.bf16.msra.mxu0 %v986
      %1684 = vmatprep.subr.bf16.mxu0 %v983
      %1685 = vmatpush1.bf16.msra.mxu0 %v982
      %1686 = vmatprep.subr.bf16.mxu0 %v979
      %1687 = vmatpush1.bf16.msra.mxu0 %v978
      %1688 = vmatprep.subr.bf16.mxu0 0
      %1689 = vmatpush2.bf16.msra.mxu0 0
      %1690 = vmatprep.subr.bf16.mxu0 0
      %1691 = vmatpush2.bf16.msra.mxu0 0
      %1692 = vmatprep.subr.bf16.mxu0 0
      %1693 = vmatpush2.bf16.msra.mxu0 0
      %1694 = vmatprep.subr.bf16.mxu0 0
      %1695 = vmatpush2.bf16.msra.mxu0 0
      %1696 = vmatprep.subr.bf16.mxu0 0
      %1697 = vmatpush2.bf16.msra.mxu0 0
      %1698 = vmatprep.subr.bf16.mxu0 0
      %1699 = vmatpush2.bf16.msra.mxu0 0
      %1700 = vmatprep.subr.bf16.mxu0 0
      %1701 = vmatpush2.bf16.msra.mxu0 0
      %1702 = vmatprep.subr.bf16.mxu0 0
      %1703 = vmatpush2.bf16.msra.mxu0 0
      %1704 = vmatprep.mubr.bf16.mxu0 0
      %1705 = vmatmul.mubr.bf16.gmra.mxu0 %v1671
      %v1706 = vpop.f32.mrf.mxu0
      %v1707 = vadd.f32 0.0, %v1706
      %v1708 = vpop.f32.mrf.mxu0
      %v1709 = vadd.f32 0.0, %v1708
      %v1710 = vpop.f32.mrf.mxu0
      %v1711 = vpop.f32.mrf.mxu0
      %1712 = vdwg.mxu0
      %1713 = vmatprep.subr.bf16.mxu0 %v1009
      %1714 = vmatpush1.bf16.msra.mxu0 %v1008
      %1715 = vmatprep.subr.bf16.mxu0 %v1005
      %1716 = vmatpush1.bf16.msra.mxu0 %v1004
      %1717 = vmatprep.subr.bf16.mxu0 %v1001
      %1718 = vmatpush1.bf16.msra.mxu0 %v1000
      %1719 = vmatprep.subr.bf16.mxu0 %v997
      %1720 = vmatpush1.bf16.msra.mxu0 %v996
      %1721 = vmatprep.subr.bf16.mxu0 %v993
      %1722 = vmatpush1.bf16.msra.mxu0 %v992
      %1723 = vmatprep.subr.bf16.mxu0 %v989
      %1724 = vmatpush1.bf16.msra.mxu0 %v988
      %1725 = vmatprep.subr.bf16.mxu0 %v985
      %1726 = vmatpush1.bf16.msra.mxu0 %v984
      %1727 = vmatprep.subr.bf16.mxu0 %v981
      %1728 = vmatpush1.bf16.msra.mxu0 %v980
      %1729 = vmatprep.subr.bf16.mxu0 0
      %1730 = vmatpush2.bf16.msra.mxu0 0
      %1731 = vmatprep.subr.bf16.mxu0 0
      %1732 = vmatpush2.bf16.msra.mxu0 0
      %1733 = vmatprep.subr.bf16.mxu0 0
      %1734 = vmatpush2.bf16.msra.mxu0 0
      %1735 = vmatprep.subr.bf16.mxu0 0
      %1736 = vmatpush2.bf16.msra.mxu0 0
      %1737 = vmatprep.subr.bf16.mxu0 0
      %1738 = vmatpush2.bf16.msra.mxu0 0
      %1739 = vmatprep.subr.bf16.mxu0 0
      %1740 = vmatpush2.bf16.msra.mxu0 0
      %1741 = vmatprep.subr.bf16.mxu0 0
      %1742 = vmatpush2.bf16.msra.mxu0 0
      %1743 = vmatprep.subr.bf16.mxu0 0
      %1744 = vmatpush2.bf16.msra.mxu0 0
      %1745 = vmatprep.mubr.bf16.mxu0 0
      %1746 = vmatmul.mubr.bf16.gmra.mxu0 %v1671
      %v1747 = vpop.f32.mrf.mxu0
      %v1748 = vadd.f32 0.0, %v1747
      %v1749 = vpop.f32.mrf.mxu0
      %v1750 = vadd.f32 0.0, %v1749
      %v1751 = vpop.f32.mrf.mxu0
      %v1752 = vpop.f32.mrf.mxu0
      %1753 = vdwg.mxu0
      %v1754 = vadd.f32 %v1667, %v1707
      %v1755 = vadd.f32 %v1668, %v1709
      %v1756 = vadd.f32 %v1669, %v1748
      %v1757 = vadd.f32 %v1670, %v1750
      %v1758 = vxor.u32 %v1754, 2147483648
      %v1759 = vmul.f32 %v1758, 1.442695
      %v1760 = vpow.pop %v1759
      %v1761 = vadd.f32 %v1760, 1.0
      %v1762 = vrcp.pop %v1761
      %v1763 = vmul.f32 1.0, %v1762
      %v1764 = vxor.u32 %v1755, 2147483648
      %v1765 = vmul.f32 %v1764, 1.442695
      %v1766 = vpow.pop %v1765
      %v1767 = vadd.f32 %v1766, 1.0
      %v1768 = vrcp.pop %v1767
      %v1769 = vmul.f32 1.0, %v1768
      %v1770 = vtanh.pop %v1756
      %v1771 = vxor.u32 %v1757, 2147483648
      %v1772 = vmul.f32 %v1771, 1.442695
      %v1773 = vpow.pop %v1772
      %v1774 = vadd.f32 %v1773, 1.0
      %v1775 = vrcp.pop %v1774
      %v1776 = vmul.f32 1.0, %v1775
      %v1777 = vmul.f32 %v1769, %v1663
      %v1778 = vmul.f32 %v1763, %v1770
      %v1779 = vadd.f32 %v1777, %v1778
      %v1780 = vtanh.pop %v1779
      %v1781 = vmul.f32 %v1776, %v1780
      %vm1782 = vcmp.gt.s32.totalorder %v842, 5
      %v1783 = vsel %vm1782, 1, 0
      %1784 = vset.pattern.permute.xlu0 0
      %1785 = vperm.xlu0 %1784, %v1783
      %v1786 = vpop.permute.xlu0 %1785
      %vm1787 = vcmp.eq.s32.totalorder %v1786, 1
      %v1788 = vsel %vm1787, %v1781, %v1662
      %v1789 = vsel %vm1787, %v1779, %v1663
      %s1790 = smul.u32 6, 4
      %s1791 = smul.addr %s1790, 8
      %s1792 = scalar_lea.vmem [#allocation2], %s1791
      %v1793 = vld [vmem:[%s1792] sm:$0xff]
      %v1794 = vld [vmem:[%s1792 + $0x8] sm:$0xff]
      %v1795 = vld [vmem:[%s1792 + $0x10] sm:$0xff]
      %v1796 = vld [vmem:[%s1792 + $0x18] sm:$0xff]
      %v1797 = vpack.c.bf16 %v1788, %v1788
      %1798 = vmatprep.subr.bf16.mxu0 %v1007
      %1799 = vmatpush1.bf16.msra.mxu0 %v1006
      %1800 = vmatprep.subr.bf16.mxu0 %v1003
      %1801 = vmatpush1.bf16.msra.mxu0 %v1002
      %1802 = vmatprep.subr.bf16.mxu0 %v999
      %1803 = vmatpush1.bf16.msra.mxu0 %v998
      %1804 = vmatprep.subr.bf16.mxu0 %v995
      %1805 = vmatpush1.bf16.msra.mxu0 %v994
      %1806 = vmatprep.subr.bf16.mxu0 %v991
      %1807 = vmatpush1.bf16.msra.mxu0 %v990
      %1808 = vmatprep.subr.bf16.mxu0 %v987
      %1809 = vmatpush1.bf16.msra.mxu0 %v986
      %1810 = vmatprep.subr.bf16.mxu0 %v983
      %1811 = vmatpush1.bf16.msra.mxu0 %v982
      %1812 = vmatprep.subr.bf16.mxu0 %v979
      %1813 = vmatpush1.bf16.msra.mxu0 %v978
      %1814 = vmatprep.subr.bf16.mxu0 0
      %1815 = vmatpush2.bf16.msra.mxu0 0
      %1816 = vmatprep.subr.bf16.mxu0 0
      %1817 = vmatpush2.bf16.msra.mxu0 0
      %1818 = vmatprep.subr.bf16.mxu0 0
      %1819 = vmatpush2.bf16.msra.mxu0 0
      %1820 = vmatprep.subr.bf16.mxu0 0
      %1821 = vmatpush2.bf16.msra.mxu0 0
      %1822 = vmatprep.subr.bf16.mxu0 0
      %1823 = vmatpush2.bf16.msra.mxu0 0
      %1824 = vmatprep.subr.bf16.mxu0 0
      %1825 = vmatpush2.bf16.msra.mxu0 0
      %1826 = vmatprep.subr.bf16.mxu0 0
      %1827 = vmatpush2.bf16.msra.mxu0 0
      %1828 = vmatprep.subr.bf16.mxu0 0
      %1829 = vmatpush2.bf16.msra.mxu0 0
      %1830 = vmatprep.mubr.bf16.mxu0 0
      %1831 = vmatmul.mubr.bf16.gmra.mxu0 %v1797
      %v1832 = vpop.f32.mrf.mxu0
      %v1833 = vadd.f32 0.0, %v1832
      %v1834 = vpop.f32.mrf.mxu0
      %v1835 = vadd.f32 0.0, %v1834
      %v1836 = vpop.f32.mrf.mxu0
      %v1837 = vpop.f32.mrf.mxu0
      %1838 = vdwg.mxu0
      %1839 = vmatprep.subr.bf16.mxu0 %v1009
      %1840 = vmatpush1.bf16.msra.mxu0 %v1008
      %1841 = vmatprep.subr.bf16.mxu0 %v1005
      %1842 = vmatpush1.bf16.msra.mxu0 %v1004
      %1843 = vmatprep.subr.bf16.mxu0 %v1001
      %1844 = vmatpush1.bf16.msra.mxu0 %v1000
      %1845 = vmatprep.subr.bf16.mxu0 %v997
      %1846 = vmatpush1.bf16.msra.mxu0 %v996
      %1847 = vmatprep.subr.bf16.mxu0 %v993
      %1848 = vmatpush1.bf16.msra.mxu0 %v992
      %1849 = vmatprep.subr.bf16.mxu0 %v989
      %1850 = vmatpush1.bf16.msra.mxu0 %v988
      %1851 = vmatprep.subr.bf16.mxu0 %v985
      %1852 = vmatpush1.bf16.msra.mxu0 %v984
      %1853 = vmatprep.subr.bf16.mxu0 %v981
      %1854 = vmatpush1.bf16.msra.mxu0 %v980
      %1855 = vmatprep.subr.bf16.mxu0 0
      %1856 = vmatpush2.bf16.msra.mxu0 0
      %1857 = vmatprep.subr.bf16.mxu0 0
      %1858 = vmatpush2.bf16.msra.mxu0 0
      %1859 = vmatprep.subr.bf16.mxu0 0
      %1860 = vmatpush2.bf16.msra.mxu0 0
      %1861 = vmatprep.subr.bf16.mxu0 0
      %1862 = vmatpush2.bf16.msra.mxu0 0
      %1863 = vmatprep.subr.bf16.mxu0 0
      %1864 = vmatpush2.bf16.msra.mxu0 0
      %1865 = vmatprep.subr.bf16.mxu0 0
      %1866 = vmatpush2.bf16.msra.mxu0 0
      %1867 = vmatprep.subr.bf16.mxu0 0
      %1868 = vmatpush2.bf16.msra.mxu0 0
      %1869 = vmatprep.subr.bf16.mxu0 0
      %1870 = vmatpush2.bf16.msra.mxu0 0
      %1871 = vmatprep.mubr.bf16.mxu0 0
      %1872 = vmatmul.mubr.bf16.gmra.mxu0 %v1797
      %v1873 = vpop.f32.mrf.mxu0
      %v1874 = vadd.f32 0.0, %v1873
      %v1875 = vpop.f32.mrf.mxu0
      %v1876 = vadd.f32 0.0, %v1875
      %v1877 = vpop.f32.mrf.mxu0
      %v1878 = vpop.f32.mrf.mxu0
      %1879 = vdwg.mxu0
      %v1880 = vadd.f32 %v1793, %v1833
      %v1881 = vadd.f32 %v1794, %v1835
      %v1882 = vadd.f32 %v1795, %v1874
      %v1883 = vadd.f32 %v1796, %v1876
      %v1884 = vxor.u32 %v1880, 2147483648
      %v1885 = vmul.f32 %v1884, 1.442695
      %v1886 = vpow.pop %v1885
      %v1887 = vadd.f32 %v1886, 1.0
      %v1888 = vrcp.pop %v1887
      %v1889 = vmul.f32 1.0, %v1888
      %v1890 = vxor.u32 %v1881, 2147483648
      %v1891 = vmul.f32 %v1890, 1.442695
      %v1892 = vpow.pop %v1891
      %v1893 = vadd.f32 %v1892, 1.0
      %v1894 = vrcp.pop %v1893
      %v1895 = vmul.f32 1.0, %v1894
      %v1896 = vtanh.pop %v1882
      %v1897 = vxor.u32 %v1883, 2147483648
      %v1898 = vmul.f32 %v1897, 1.442695
      %v1899 = vpow.pop %v1898
      %v1900 = vadd.f32 %v1899, 1.0
      %v1901 = vrcp.pop %v1900
      %v1902 = vmul.f32 1.0, %v1901
      %v1903 = vmul.f32 %v1895, %v1789
      %v1904 = vmul.f32 %v1889, %v1896
      %v1905 = vadd.f32 %v1903, %v1904
      %v1906 = vtanh.pop %v1905
      %v1907 = vmul.f32 %v1902, %v1906
      %vm1908 = vcmp.gt.s32.totalorder %v842, 6
      %v1909 = vsel %vm1908, 1, 0
      %1910 = vset.pattern.permute.xlu0 0
      %1911 = vperm.xlu0 %1910, %v1909
      %v1912 = vpop.permute.xlu0 %1911
      %vm1913 = vcmp.eq.s32.totalorder %v1912, 1
      %v1914 = vsel %vm1913, %v1907, %v1788
      %v1915 = vsel %vm1913, %v1905, %v1789
      %s1916 = smul.u32 7, 4
      %s1917 = smul.addr %s1916, 8
      %s1918 = scalar_lea.vmem [#allocation2], %s1917
      %v1919 = vld [vmem:[%s1918] sm:$0xff]
      %v1920 = vld [vmem:[%s1918 + $0x8] sm:$0xff]
      %v1921 = vld [vmem:[%s1918 + $0x10] sm:$0xff]
      %v1922 = vld [vmem:[%s1918 + $0x18] sm:$0xff]
      %v1923 = vpack.c.bf16 %v1914, %v1914
      %1924 = vmatprep.subr.bf16.mxu0 %v1007
      %1925 = vmatpush1.bf16.msra.mxu0 %v1006
      %1926 = vmatprep.subr.bf16.mxu0 %v1003
      %1927 = vmatpush1.bf16.msra.mxu0 %v1002
      %1928 = vmatprep.subr.bf16.mxu0 %v999
      %1929 = vmatpush1.bf16.msra.mxu0 %v998
      %1930 = vmatprep.subr.bf16.mxu0 %v995
      %1931 = vmatpush1.bf16.msra.mxu0 %v994
      %1932 = vmatprep.subr.bf16.mxu0 %v991
      %1933 = vmatpush1.bf16.msra.mxu0 %v990
      %1934 = vmatprep.subr.bf16.mxu0 %v987
      %1935 = vmatpush1.bf16.msra.mxu0 %v986
      %1936 = vmatprep.subr.bf16.mxu0 %v983
      %1937 = vmatpush1.bf16.msra.mxu0 %v982
      %1938 = vmatprep.subr.bf16.mxu0 %v979
      %1939 = vmatpush1.bf16.msra.mxu0 %v978
      %1940 = vmatprep.subr.bf16.mxu0 0
      %1941 = vmatpush2.bf16.msra.mxu0 0
      %1942 = vmatprep.subr.bf16.mxu0 0
      %1943 = vmatpush2.bf16.msra.mxu0 0
      %1944 = vmatprep.subr.bf16.mxu0 0
      %1945 = vmatpush2.bf16.msra.mxu0 0
      %1946 = vmatprep.subr.bf16.mxu0 0
      %1947 = vmatpush2.bf16.msra.mxu0 0
      %1948 = vmatprep.subr.bf16.mxu0 0
      %1949 = vmatpush2.bf16.msra.mxu0 0
      %1950 = vmatprep.subr.bf16.mxu0 0
      %1951 = vmatpush2.bf16.msra.mxu0 0
      %1952 = vmatprep.subr.bf16.mxu0 0
      %1953 = vmatpush2.bf16.msra.mxu0 0
      %1954 = vmatprep.subr.bf16.mxu0 0
      %1955 = vmatpush2.bf16.msra.mxu0 0
      %1956 = vmatprep.mubr.bf16.mxu0 0
      %1957 = vmatmul.mubr.bf16.gmra.mxu0 %v1923
      %v1958 = vpop.f32.mrf.mxu0
      %v1959 = vadd.f32 0.0, %v1958
      %v1960 = vpop.f32.mrf.mxu0
      %v1961 = vadd.f32 0.0, %v1960
      %v1962 = vpop.f32.mrf.mxu0
      %v1963 = vpop.f32.mrf.mxu0
      %1964 = vdwg.mxu0
      %1965 = vmatprep.subr.bf16.mxu0 %v1009
      %1966 = vmatpush1.bf16.msra.mxu0 %v1008
      %1967 = vmatprep.subr.bf16.mxu0 %v1005
      %1968 = vmatpush1.bf16.msra.mxu0 %v1004
      %1969 = vmatprep.subr.bf16.mxu0 %v1001
      %1970 = vmatpush1.bf16.msra.mxu0 %v1000
      %1971 = vmatprep.subr.bf16.mxu0 %v997
      %1972 = vmatpush1.bf16.msra.mxu0 %v996
      %1973 = vmatprep.subr.bf16.mxu0 %v993
      %1974 = vmatpush1.bf16.msra.mxu0 %v992
      %1975 = vmatprep.subr.bf16.mxu0 %v989
      %1976 = vmatpush1.bf16.msra.mxu0 %v988
      %1977 = vmatprep.subr.bf16.mxu0 %v985
      %1978 = vmatpush1.bf16.msra.mxu0 %v984
      %1979 = vmatprep.subr.bf16.mxu0 %v981
      %1980 = vmatpush1.bf16.msra.mxu0 %v980
      %1981 = vmatprep.subr.bf16.mxu0 0
      %1982 = vmatpush2.bf16.msra.mxu0 0
      %1983 = vmatprep.subr.bf16.mxu0 0
      %1984 = vmatpush2.bf16.msra.mxu0 0
      %1985 = vmatprep.subr.bf16.mxu0 0
      %1986 = vmatpush2.bf16.msra.mxu0 0
      %1987 = vmatprep.subr.bf16.mxu0 0
      %1988 = vmatpush2.bf16.msra.mxu0 0
      %1989 = vmatprep.subr.bf16.mxu0 0
      %1990 = vmatpush2.bf16.msra.mxu0 0
      %1991 = vmatprep.subr.bf16.mxu0 0
      %1992 = vmatpush2.bf16.msra.mxu0 0
      %1993 = vmatprep.subr.bf16.mxu0 0
      %1994 = vmatpush2.bf16.msra.mxu0 0
      %1995 = vmatprep.subr.bf16.mxu0 0
      %1996 = vmatpush2.bf16.msra.mxu0 0
      %1997 = vmatprep.mubr.bf16.mxu0 0
      %1998 = vmatmul.mubr.bf16.gmra.mxu0 %v1923
      %v1999 = vpop.f32.mrf.mxu0
      %v2000 = vadd.f32 0.0, %v1999
      %v2001 = vpop.f32.mrf.mxu0
      %v2002 = vadd.f32 0.0, %v2001
      %v2003 = vpop.f32.mrf.mxu0
      %v2004 = vpop.f32.mrf.mxu0
      %2005 = vdwg.mxu0
      %v2006 = vadd.f32 %v1919, %v1959
      %v2007 = vadd.f32 %v1920, %v1961
      %v2008 = vadd.f32 %v1921, %v2000
      %v2009 = vadd.f32 %v1922, %v2002
      %v2010 = vxor.u32 %v2006, 2147483648
      %v2011 = vmul.f32 %v2010, 1.442695
      %v2012 = vpow.pop %v2011
      %v2013 = vadd.f32 %v2012, 1.0
      %v2014 = vrcp.pop %v2013
      %v2015 = vmul.f32 1.0, %v2014
      %v2016 = vxor.u32 %v2007, 2147483648
      %v2017 = vmul.f32 %v2016, 1.442695
      %v2018 = vpow.pop %v2017
      %v2019 = vadd.f32 %v2018, 1.0
      %v2020 = vrcp.pop %v2019
      %v2021 = vmul.f32 1.0, %v2020
      %v2022 = vtanh.pop %v2008
      %v2023 = vxor.u32 %v2009, 2147483648
      %v2024 = vmul.f32 %v2023, 1.442695
      %v2025 = vpow.pop %v2024
      %v2026 = vadd.f32 %v2025, 1.0
      %v2027 = vrcp.pop %v2026
      %v2028 = vmul.f32 1.0, %v2027
      %v2029 = vmul.f32 %v2021, %v1915
      %v2030 = vmul.f32 %v2015, %v2022
      %v2031 = vadd.f32 %v2029, %v2030
      %v2032 = vtanh.pop %v2031
      %v2033 = vmul.f32 %v2028, %v2032
      %vm2034 = vcmp.gt.s32.totalorder %v842, 7
      %v2035 = vsel %vm2034, 1, 0
      %2036 = vset.pattern.permute.xlu0 0
      %2037 = vperm.xlu0 %2036, %v2035
      %v2038 = vpop.permute.xlu0 %2037
      %vm2039 = vcmp.eq.s32.totalorder %v2038, 1
      %v2040 = vsel %vm2039, %v2033, %v1914
      %v2041 = vsel %vm2039, %v2031, %v1915
      %s2042 = smul.u32 8, 4
      %s2043 = smul.addr %s2042, 8
      %s2044 = scalar_lea.vmem [#allocation2], %s2043
      %v2045 = vld [vmem:[%s2044] sm:$0xff]
      %v2046 = vld [vmem:[%s2044 + $0x8] sm:$0xff]
      %v2047 = vld [vmem:[%s2044 + $0x10] sm:$0xff]
      %v2048 = vld [vmem:[%s2044 + $0x18] sm:$0xff]
      %v2049 = vpack.c.bf16 %v2040, %v2040
      %2050 = vmatprep.subr.bf16.mxu0 %v1007
      %2051 = vmatpush1.bf16.msra.mxu0 %v1006
      %2052 = vmatprep.subr.bf16.mxu0 %v1003
      %2053 = vmatpush1.bf16.msra.mxu0 %v1002
      %2054 = vmatprep.subr.bf16.mxu0 %v999
      %2055 = vmatpush1.bf16.msra.mxu0 %v998
      %2056 = vmatprep.subr.bf16.mxu0 %v995
      %2057 = vmatpush1.bf16.msra.mxu0 %v994
      %2058 = vmatprep.subr.bf16.mxu0 %v991
      %2059 = vmatpush1.bf16.msra.mxu0 %v990
      %2060 = vmatprep.subr.bf16.mxu0 %v987
      %2061 = vmatpush1.bf16.msra.mxu0 %v986
      %2062 = vmatprep.subr.bf16.mxu0 %v983
      %2063 = vmatpush1.bf16.msra.mxu0 %v982
      %2064 = vmatprep.subr.bf16.mxu0 %v979
      %2065 = vmatpush1.bf16.msra.mxu0 %v978
      %2066 = vmatprep.subr.bf16.mxu0 0
      %2067 = vmatpush2.bf16.msra.mxu0 0
      %2068 = vmatprep.subr.bf16.mxu0 0
      %2069 = vmatpush2.bf16.msra.mxu0 0
      %2070 = vmatprep.subr.bf16.mxu0 0
      %2071 = vmatpush2.bf16.msra.mxu0 0
      %2072 = vmatprep.subr.bf16.mxu0 0
      %2073 = vmatpush2.bf16.msra.mxu0 0
      %2074 = vmatprep.subr.bf16.mxu0 0
      %2075 = vmatpush2.bf16.msra.mxu0 0
      %2076 = vmatprep.subr.bf16.mxu0 0
      %2077 = vmatpush2.bf16.msra.mxu0 0
      %2078 = vmatprep.subr.bf16.mxu0 0
      %2079 = vmatpush2.bf16.msra.mxu0 0
      %2080 = vmatprep.subr.bf16.mxu0 0
      %2081 = vmatpush2.bf16.msra.mxu0 0
      %2082 = vmatprep.mubr.bf16.mxu0 0
      %2083 = vmatmul.mubr.bf16.gmra.mxu0 %v2049
      %v2084 = vpop.f32.mrf.mxu0
      %v2085 = vadd.f32 0.0, %v2084
      %v2086 = vpop.f32.mrf.mxu0
      %v2087 = vadd.f32 0.0, %v2086
      %v2088 = vpop.f32.mrf.mxu0
      %v2089 = vpop.f32.mrf.mxu0
      %2090 = vdwg.mxu0
      %2091 = vmatprep.subr.bf16.mxu0 %v1009
      %2092 = vmatpush1.bf16.msra.mxu0 %v1008
      %2093 = vmatprep.subr.bf16.mxu0 %v1005
      %2094 = vmatpush1.bf16.msra.mxu0 %v1004
      %2095 = vmatprep.subr.bf16.mxu0 %v1001
      %2096 = vmatpush1.bf16.msra.mxu0 %v1000
      %2097 = vmatprep.subr.bf16.mxu0 %v997
      %2098 = vmatpush1.bf16.msra.mxu0 %v996
      %2099 = vmatprep.subr.bf16.mxu0 %v993
      %2100 = vmatpush1.bf16.msra.mxu0 %v992
      %2101 = vmatprep.subr.bf16.mxu0 %v989
      %2102 = vmatpush1.bf16.msra.mxu0 %v988
      %2103 = vmatprep.subr.bf16.mxu0 %v985
      %2104 = vmatpush1.bf16.msra.mxu0 %v984
      %2105 = vmatprep.subr.bf16.mxu0 %v981
      %2106 = vmatpush1.bf16.msra.mxu0 %v980
      %2107 = vmatprep.subr.bf16.mxu0 0
      %2108 = vmatpush2.bf16.msra.mxu0 0
      %2109 = vmatprep.subr.bf16.mxu0 0
      %2110 = vmatpush2.bf16.msra.mxu0 0
      %2111 = vmatprep.subr.bf16.mxu0 0
      %2112 = vmatpush2.bf16.msra.mxu0 0
      %2113 = vmatprep.subr.bf16.mxu0 0
      %2114 = vmatpush2.bf16.msra.mxu0 0
      %2115 = vmatprep.subr.bf16.mxu0 0
      %2116 = vmatpush2.bf16.msra.mxu0 0
      %2117 = vmatprep.subr.bf16.mxu0 0
      %2118 = vmatpush2.bf16.msra.mxu0 0
      %2119 = vmatprep.subr.bf16.mxu0 0
      %2120 = vmatpush2.bf16.msra.mxu0 0
      %2121 = vmatprep.subr.bf16.mxu0 0
      %2122 = vmatpush2.bf16.msra.mxu0 0
      %2123 = vmatprep.mubr.bf16.mxu0 0
      %2124 = vmatmul.mubr.bf16.gmra.mxu0 %v2049
      %v2125 = vpop.f32.mrf.mxu0
      %v2126 = vadd.f32 0.0, %v2125
      %v2127 = vpop.f32.mrf.mxu0
      %v2128 = vadd.f32 0.0, %v2127
      %v2129 = vpop.f32.mrf.mxu0
      %v2130 = vpop.f32.mrf.mxu0
      %2131 = vdwg.mxu0
      %v2132 = vadd.f32 %v2045, %v2085
      %v2133 = vadd.f32 %v2046, %v2087
      %v2134 = vadd.f32 %v2047, %v2126
      %v2135 = vadd.f32 %v2048, %v2128
      %v2136 = vxor.u32 %v2132, 2147483648
      %v2137 = vmul.f32 %v2136, 1.442695
      %v2138 = vpow.pop %v2137
      %v2139 = vadd.f32 %v2138, 1.0
      %v2140 = vrcp.pop %v2139
      %v2141 = vmul.f32 1.0, %v2140
      %v2142 = vxor.u32 %v2133, 2147483648
      %v2143 = vmul.f32 %v2142, 1.442695
      %v2144 = vpow.pop %v2143
      %v2145 = vadd.f32 %v2144, 1.0
      %v2146 = vrcp.pop %v2145
      %v2147 = vmul.f32 1.0, %v2146
      %v2148 = vtanh.pop %v2134
      %v2149 = vxor.u32 %v2135, 2147483648
      %v2150 = vmul.f32 %v2149, 1.442695
      %v2151 = vpow.pop %v2150
      %v2152 = vadd.f32 %v2151, 1.0
      %v2153 = vrcp.pop %v2152
      %v2154 = vmul.f32 1.0, %v2153
      %v2155 = vmul.f32 %v2147, %v2041
      %v2156 = vmul.f32 %v2141, %v2148
      %v2157 = vadd.f32 %v2155, %v2156
      %v2158 = vtanh.pop %v2157
      %v2159 = vmul.f32 %v2154, %v2158
      %vm2160 = vcmp.gt.s32.totalorder %v842, 8
      %v2161 = vsel %vm2160, 1, 0
      %2162 = vset.pattern.permute.xlu0 0
      %2163 = vperm.xlu0 %2162, %v2161
      %v2164 = vpop.permute.xlu0 %2163
      %vm2165 = vcmp.eq.s32.totalorder %v2164, 1
      %v2166 = vsel %vm2165, %v2159, %v2040
      %v2167 = vsel %vm2165, %v2157, %v2041
      %s2168 = smul.u32 9, 4
      %s2169 = smul.addr %s2168, 8
      %s2170 = scalar_lea.vmem [#allocation2], %s2169
      %v2171 = vld [vmem:[%s2170] sm:$0xff]
      %v2172 = vld [vmem:[%s2170 + $0x8] sm:$0xff]
      %v2173 = vld [vmem:[%s2170 + $0x10] sm:$0xff]
      %v2174 = vld [vmem:[%s2170 + $0x18] sm:$0xff]
      %v2175 = vpack.c.bf16 %v2166, %v2166
      %2176 = vmatprep.subr.bf16.mxu0 %v1007
      %2177 = vmatpush1.bf16.msra.mxu0 %v1006
      %2178 = vmatprep.subr.bf16.mxu0 %v1003
      %2179 = vmatpush1.bf16.msra.mxu0 %v1002
      %2180 = vmatprep.subr.bf16.mxu0 %v999
      %2181 = vmatpush1.bf16.msra.mxu0 %v998
      %2182 = vmatprep.subr.bf16.mxu0 %v995
      %2183 = vmatpush1.bf16.msra.mxu0 %v994
      %2184 = vmatprep.subr.bf16.mxu0 %v991
      %2185 = vmatpush1.bf16.msra.mxu0 %v990
      %2186 = vmatprep.subr.bf16.mxu0 %v987
      %2187 = vmatpush1.bf16.msra.mxu0 %v986
      %2188 = vmatprep.subr.bf16.mxu0 %v983
      %2189 = vmatpush1.bf16.msra.mxu0 %v982
      %2190 = vmatprep.subr.bf16.mxu0 %v979
      %2191 = vmatpush1.bf16.msra.mxu0 %v978
      %2192 = vmatprep.subr.bf16.mxu0 0
      %2193 = vmatpush2.bf16.msra.mxu0 0
      %2194 = vmatprep.subr.bf16.mxu0 0
      %2195 = vmatpush2.bf16.msra.mxu0 0
      %2196 = vmatprep.subr.bf16.mxu0 0
      %2197 = vmatpush2.bf16.msra.mxu0 0
      %2198 = vmatprep.subr.bf16.mxu0 0
      %2199 = vmatpush2.bf16.msra.mxu0 0
      %2200 = vmatprep.subr.bf16.mxu0 0
      %2201 = vmatpush2.bf16.msra.mxu0 0
      %2202 = vmatprep.subr.bf16.mxu0 0
      %2203 = vmatpush2.bf16.msra.mxu0 0
      %2204 = vmatprep.subr.bf16.mxu0 0
      %2205 = vmatpush2.bf16.msra.mxu0 0
      %2206 = vmatprep.subr.bf16.mxu0 0
      %2207 = vmatpush2.bf16.msra.mxu0 0
      %2208 = vmatprep.mubr.bf16.mxu0 0
      %2209 = vmatmul.mubr.bf16.gmra.mxu0 %v2175
      %v2210 = vpop.f32.mrf.mxu0
      %v2211 = vadd.f32 0.0, %v2210
      %v2212 = vpop.f32.mrf.mxu0
      %v2213 = vadd.f32 0.0, %v2212
      %v2214 = vpop.f32.mrf.mxu0
      %v2215 = vpop.f32.mrf.mxu0
      %2216 = vdwg.mxu0
      %2217 = vmatprep.subr.bf16.mxu0 %v1009
      %2218 = vmatpush1.bf16.msra.mxu0 %v1008
      %2219 = vmatprep.subr.bf16.mxu0 %v1005
      %2220 = vmatpush1.bf16.msra.mxu0 %v1004
      %2221 = vmatprep.subr.bf16.mxu0 %v1001
      %2222 = vmatpush1.bf16.msra.mxu0 %v1000
      %2223 = vmatprep.subr.bf16.mxu0 %v997
      %2224 = vmatpush1.bf16.msra.mxu0 %v996
      %2225 = vmatprep.subr.bf16.mxu0 %v993
      %2226 = vmatpush1.bf16.msra.mxu0 %v992
      %2227 = vmatprep.subr.bf16.mxu0 %v989
      %2228 = vmatpush1.bf16.msra.mxu0 %v988
      %2229 = vmatprep.subr.bf16.mxu0 %v985
      %2230 = vmatpush1.bf16.msra.mxu0 %v984
      %2231 = vmatprep.subr.bf16.mxu0 %v981
      %2232 = vmatpush1.bf16.msra.mxu0 %v980
      %2233 = vmatprep.subr.bf16.mxu0 0
      %2234 = vmatpush2.bf16.msra.mxu0 0
      %2235 = vmatprep.subr.bf16.mxu0 0
      %2236 = vmatpush2.bf16.msra.mxu0 0
      %2237 = vmatprep.subr.bf16.mxu0 0
      %2238 = vmatpush2.bf16.msra.mxu0 0
      %2239 = vmatprep.subr.bf16.mxu0 0
      %2240 = vmatpush2.bf16.msra.mxu0 0
      %2241 = vmatprep.subr.bf16.mxu0 0
      %2242 = vmatpush2.bf16.msra.mxu0 0
      %2243 = vmatprep.subr.bf16.mxu0 0
      %2244 = vmatpush2.bf16.msra.mxu0 0
      %2245 = vmatprep.subr.bf16.mxu0 0
      %2246 = vmatpush2.bf16.msra.mxu0 0
      %2247 = vmatprep.subr.bf16.mxu0 0
      %2248 = vmatpush2.bf16.msra.mxu0 0
      %2249 = vmatprep.mubr.bf16.mxu0 0
      %2250 = vmatmul.mubr.bf16.gmra.mxu0 %v2175
      %v2251 = vpop.f32.mrf.mxu0
      %v2252 = vadd.f32 0.0, %v2251
      %v2253 = vpop.f32.mrf.mxu0
      %v2254 = vadd.f32 0.0, %v2253
      %v2255 = vpop.f32.mrf.mxu0
      %v2256 = vpop.f32.mrf.mxu0
      %2257 = vdwg.mxu0
      %v2258 = vadd.f32 %v2171, %v2211
      %v2259 = vadd.f32 %v2172, %v2213
      %v2260 = vadd.f32 %v2173, %v2252
      %v2261 = vadd.f32 %v2174, %v2254
      %v2262 = vxor.u32 %v2258, 2147483648
      %v2263 = vmul.f32 %v2262, 1.442695
      %v2264 = vpow.pop %v2263
      %v2265 = vadd.f32 %v2264, 1.0
      %v2266 = vrcp.pop %v2265
      %v2267 = vmul.f32 1.0, %v2266
      %v2268 = vxor.u32 %v2259, 2147483648
      %v2269 = vmul.f32 %v2268, 1.442695
      %v2270 = vpow.pop %v2269
      %v2271 = vadd.f32 %v2270, 1.0
      %v2272 = vrcp.pop %v2271
      %v2273 = vmul.f32 1.0, %v2272
      %v2274 = vtanh.pop %v2260
      %v2275 = vxor.u32 %v2261, 2147483648
      %v2276 = vmul.f32 %v2275, 1.442695
      %v2277 = vpow.pop %v2276
      %v2278 = vadd.f32 %v2277, 1.0
      %v2279 = vrcp.pop %v2278
      %v2280 = vmul.f32 1.0, %v2279
      %v2281 = vmul.f32 %v2273, %v2167
      %v2282 = vmul.f32 %v2267, %v2274
      %v2283 = vadd.f32 %v2281, %v2282
      %v2284 = vtanh.pop %v2283
      %v2285 = vmul.f32 %v2280, %v2284
      %vm2286 = vcmp.gt.s32.totalorder %v842, 9
      %v2287 = vsel %vm2286, 1, 0
      %2288 = vset.pattern.permute.xlu0 0
      %2289 = vperm.xlu0 %2288, %v2287
      %v2290 = vpop.permute.xlu0 %2289
      %vm2291 = vcmp.eq.s32.totalorder %v2290, 1
      %v2292 = vsel %vm2291, %v2285, %v2166
      %v2293 = vsel %vm2291, %v2283, %v2167
      %s2294 = smul.u32 10, 4
      %s2295 = smul.addr %s2294, 8
      %s2296 = scalar_lea.vmem [#allocation2], %s2295
      %v2297 = vld [vmem:[%s2296] sm:$0xff]
      %v2298 = vld [vmem:[%s2296 + $0x8] sm:$0xff]
      %v2299 = vld [vmem:[%s2296 + $0x10] sm:$0xff]
      %v2300 = vld [vmem:[%s2296 + $0x18] sm:$0xff]
      %v2301 = vpack.c.bf16 %v2292, %v2292
      %2302 = vmatprep.subr.bf16.mxu0 %v1007
      %2303 = vmatpush1.bf16.msra.mxu0 %v1006
      %2304 = vmatprep.subr.bf16.mxu0 %v1003
      %2305 = vmatpush1.bf16.msra.mxu0 %v1002
      %2306 = vmatprep.subr.bf16.mxu0 %v999
      %2307 = vmatpush1.bf16.msra.mxu0 %v998
      %2308 = vmatprep.subr.bf16.mxu0 %v995
      %2309 = vmatpush1.bf16.msra.mxu0 %v994
      %2310 = vmatprep.subr.bf16.mxu0 %v991
      %2311 = vmatpush1.bf16.msra.mxu0 %v990
      %2312 = vmatprep.subr.bf16.mxu0 %v987
      %2313 = vmatpush1.bf16.msra.mxu0 %v986
      %2314 = vmatprep.subr.bf16.mxu0 %v983
      %2315 = vmatpush1.bf16.msra.mxu0 %v982
      %2316 = vmatprep.subr.bf16.mxu0 %v979
      %2317 = vmatpush1.bf16.msra.mxu0 %v978
      %2318 = vmatprep.subr.bf16.mxu0 0
      %2319 = vmatpush2.bf16.msra.mxu0 0
      %2320 = vmatprep.subr.bf16.mxu0 0
      %2321 = vmatpush2.bf16.msra.mxu0 0
      %2322 = vmatprep.subr.bf16.mxu0 0
      %2323 = vmatpush2.bf16.msra.mxu0 0
      %2324 = vmatprep.subr.bf16.mxu0 0
      %2325 = vmatpush2.bf16.msra.mxu0 0
      %2326 = vmatprep.subr.bf16.mxu0 0
      %2327 = vmatpush2.bf16.msra.mxu0 0
      %2328 = vmatprep.subr.bf16.mxu0 0
      %2329 = vmatpush2.bf16.msra.mxu0 0
      %2330 = vmatprep.subr.bf16.mxu0 0
      %2331 = vmatpush2.bf16.msra.mxu0 0
      %2332 = vmatprep.subr.bf16.mxu0 0
      %2333 = vmatpush2.bf16.msra.mxu0 0
      %2334 = vmatprep.mubr.bf16.mxu0 0
      %2335 = vmatmul.mubr.bf16.gmra.mxu0 %v2301
      %v2336 = vpop.f32.mrf.mxu0
      %v2337 = vadd.f32 0.0, %v2336
      %v2338 = vpop.f32.mrf.mxu0
      %v2339 = vadd.f32 0.0, %v2338
      %v2340 = vpop.f32.mrf.mxu0
      %v2341 = vpop.f32.mrf.mxu0
      %2342 = vdwg.mxu0
      %2343 = vmatprep.subr.bf16.mxu0 %v1009
      %2344 = vmatpush1.bf16.msra.mxu0 %v1008
      %2345 = vmatprep.subr.bf16.mxu0 %v1005
      %2346 = vmatpush1.bf16.msra.mxu0 %v1004
      %2347 = vmatprep.subr.bf16.mxu0 %v1001
      %2348 = vmatpush1.bf16.msra.mxu0 %v1000
      %2349 = vmatprep.subr.bf16.mxu0 %v997
      %2350 = vmatpush1.bf16.msra.mxu0 %v996
      %2351 = vmatprep.subr.bf16.mxu0 %v993
      %2352 = vmatpush1.bf16.msra.mxu0 %v992
      %2353 = vmatprep.subr.bf16.mxu0 %v989
      %2354 = vmatpush1.bf16.msra.mxu0 %v988
      %2355 = vmatprep.subr.bf16.mxu0 %v985
      %2356 = vmatpush1.bf16.msra.mxu0 %v984
      %2357 = vmatprep.subr.bf16.mxu0 %v981
      %2358 = vmatpush1.bf16.msra.mxu0 %v980
      %2359 = vmatprep.subr.bf16.mxu0 0
      %2360 = vmatpush2.bf16.msra.mxu0 0
      %2361 = vmatprep.subr.bf16.mxu0 0
      %2362 = vmatpush2.bf16.msra.mxu0 0
      %2363 = vmatprep.subr.bf16.mxu0 0
      %2364 = vmatpush2.bf16.msra.mxu0 0
      %2365 = vmatprep.subr.bf16.mxu0 0
      %2366 = vmatpush2.bf16.msra.mxu0 0
      %2367 = vmatprep.subr.bf16.mxu0 0
      %2368 = vmatpush2.bf16.msra.mxu0 0
      %2369 = vmatprep.subr.bf16.mxu0 0
      %2370 = vmatpush2.bf16.msra.mxu0 0
      %2371 = vmatprep.subr.bf16.mxu0 0
      %2372 = vmatpush2.bf16.msra.mxu0 0
      %2373 = vmatprep.subr.bf16.mxu0 0
      %2374 = vmatpush2.bf16.msra.mxu0 0
      %2375 = vmatprep.mubr.bf16.mxu0 0
      %2376 = vmatmul.mubr.bf16.gmra.mxu0 %v2301
      %v2377 = vpop.f32.mrf.mxu0
      %v2378 = vadd.f32 0.0, %v2377
      %v2379 = vpop.f32.mrf.mxu0
      %v2380 = vadd.f32 0.0, %v2379
      %v2381 = vpop.f32.mrf.mxu0
      %v2382 = vpop.f32.mrf.mxu0
      %2383 = vdwg.mxu0
      %v2384 = vadd.f32 %v2297, %v2337
      %v2385 = vadd.f32 %v2298, %v2339
      %v2386 = vadd.f32 %v2299, %v2378
      %v2387 = vadd.f32 %v2300, %v2380
      %v2388 = vxor.u32 %v2384, 2147483648
      %v2389 = vmul.f32 %v2388, 1.442695
      %v2390 = vpow.pop %v2389
      %v2391 = vadd.f32 %v2390, 1.0
      %v2392 = vrcp.pop %v2391
      %v2393 = vmul.f32 1.0, %v2392
      %v2394 = vxor.u32 %v2385, 2147483648
      %v2395 = vmul.f32 %v2394, 1.442695
      %v2396 = vpow.pop %v2395
      %v2397 = vadd.f32 %v2396, 1.0
      %v2398 = vrcp.pop %v2397
      %v2399 = vmul.f32 1.0, %v2398
      %v2400 = vtanh.pop %v2386
      %v2401 = vxor.u32 %v2387, 2147483648
      %v2402 = vmul.f32 %v2401, 1.442695
      %v2403 = vpow.pop %v2402
      %v2404 = vadd.f32 %v2403, 1.0
      %v2405 = vrcp.pop %v2404
      %v2406 = vmul.f32 1.0, %v2405
      %v2407 = vmul.f32 %v2399, %v2293
      %v2408 = vmul.f32 %v2393, %v2400
      %v2409 = vadd.f32 %v2407, %v2408
      %v2410 = vtanh.pop %v2409
      %v2411 = vmul.f32 %v2406, %v2410
      %vm2412 = vcmp.gt.s32.totalorder %v842, 10
      %v2413 = vsel %vm2412, 1, 0
      %2414 = vset.pattern.permute.xlu0 0
      %2415 = vperm.xlu0 %2414, %v2413
      %v2416 = vpop.permute.xlu0 %2415
      %vm2417 = vcmp.eq.s32.totalorder %v2416, 1
      %v2418 = vsel %vm2417, %v2411, %v2292
      %v2419 = vsel %vm2417, %v2409, %v2293
      %s2420 = smul.u32 11, 4
      %s2421 = smul.addr %s2420, 8
      %s2422 = scalar_lea.vmem [#allocation2], %s2421
      %v2423 = vld [vmem:[%s2422] sm:$0xff]
      %v2424 = vld [vmem:[%s2422 + $0x8] sm:$0xff]
      %v2425 = vld [vmem:[%s2422 + $0x10] sm:$0xff]
      %v2426 = vld [vmem:[%s2422 + $0x18] sm:$0xff]
      %v2427 = vpack.c.bf16 %v2418, %v2418
      %2428 = vmatprep.subr.bf16.mxu0 %v1007
      %2429 = vmatpush1.bf16.msra.mxu0 %v1006
      %2430 = vmatprep.subr.bf16.mxu0 %v1003
      %2431 = vmatpush1.bf16.msra.mxu0 %v1002
      %2432 = vmatprep.subr.bf16.mxu0 %v999
      %2433 = vmatpush1.bf16.msra.mxu0 %v998
      %2434 = vmatprep.subr.bf16.mxu0 %v995
      %2435 = vmatpush1.bf16.msra.mxu0 %v994
      %2436 = vmatprep.subr.bf16.mxu0 %v991
      %2437 = vmatpush1.bf16.msra.mxu0 %v990
      %2438 = vmatprep.subr.bf16.mxu0 %v987
      %2439 = vmatpush1.bf16.msra.mxu0 %v986
      %2440 = vmatprep.subr.bf16.mxu0 %v983
      %2441 = vmatpush1.bf16.msra.mxu0 %v982
      %2442 = vmatprep.subr.bf16.mxu0 %v979
      %2443 = vmatpush1.bf16.msra.mxu0 %v978
      %2444 = vmatprep.subr.bf16.mxu0 0
      %2445 = vmatpush2.bf16.msra.mxu0 0
      %2446 = vmatprep.subr.bf16.mxu0 0
      %2447 = vmatpush2.bf16.msra.mxu0 0
      %2448 = vmatprep.subr.bf16.mxu0 0
      %2449 = vmatpush2.bf16.msra.mxu0 0
      %2450 = vmatprep.subr.bf16.mxu0 0
      %2451 = vmatpush2.bf16.msra.mxu0 0
      %2452 = vmatprep.subr.bf16.mxu0 0
      %2453 = vmatpush2.bf16.msra.mxu0 0
      %2454 = vmatprep.subr.bf16.mxu0 0
      %2455 = vmatpush2.bf16.msra.mxu0 0
      %2456 = vmatprep.subr.bf16.mxu0 0
      %2457 = vmatpush2.bf16.msra.mxu0 0
      %2458 = vmatprep.subr.bf16.mxu0 0
      %2459 = vmatpush2.bf16.msra.mxu0 0
      %2460 = vmatprep.mubr.bf16.mxu0 0
      %2461 = vmatmul.mubr.bf16.gmra.mxu0 %v2427
      %v2462 = vpop.f32.mrf.mxu0
      %v2463 = vadd.f32 0.0, %v2462
      %v2464 = vpop.f32.mrf.mxu0
      %v2465 = vadd.f32 0.0, %v2464
      %v2466 = vpop.f32.mrf.mxu0
      %v2467 = vpop.f32.mrf.mxu0
      %2468 = vdwg.mxu0
      %2469 = vmatprep.subr.bf16.mxu0 %v1009
      %2470 = vmatpush1.bf16.msra.mxu0 %v1008
      %2471 = vmatprep.subr.bf16.mxu0 %v1005
      %2472 = vmatpush1.bf16.msra.mxu0 %v1004
      %2473 = vmatprep.subr.bf16.mxu0 %v1001
      %2474 = vmatpush1.bf16.msra.mxu0 %v1000
      %2475 = vmatprep.subr.bf16.mxu0 %v997
      %2476 = vmatpush1.bf16.msra.mxu0 %v996
      %2477 = vmatprep.subr.bf16.mxu0 %v993
      %2478 = vmatpush1.bf16.msra.mxu0 %v992
      %2479 = vmatprep.subr.bf16.mxu0 %v989
      %2480 = vmatpush1.bf16.msra.mxu0 %v988
      %2481 = vmatprep.subr.bf16.mxu0 %v985
      %2482 = vmatpush1.bf16.msra.mxu0 %v984
      %2483 = vmatprep.subr.bf16.mxu0 %v981
      %2484 = vmatpush1.bf16.msra.mxu0 %v980
      %2485 = vmatprep.subr.bf16.mxu0 0
      %2486 = vmatpush2.bf16.msra.mxu0 0
      %2487 = vmatprep.subr.bf16.mxu0 0
      %2488 = vmatpush2.bf16.msra.mxu0 0
      %2489 = vmatprep.subr.bf16.mxu0 0
      %2490 = vmatpush2.bf16.msra.mxu0 0
      %2491 = vmatprep.subr.bf16.mxu0 0
      %2492 = vmatpush2.bf16.msra.mxu0 0
      %2493 = vmatprep.subr.bf16.mxu0 0
      %2494 = vmatpush2.bf16.msra.mxu0 0
      %2495 = vmatprep.subr.bf16.mxu0 0
      %2496 = vmatpush2.bf16.msra.mxu0 0
      %2497 = vmatprep.subr.bf16.mxu0 0
      %2498 = vmatpush2.bf16.msra.mxu0 0
      %2499 = vmatprep.subr.bf16.mxu0 0
      %2500 = vmatpush2.bf16.msra.mxu0 0
      %2501 = vmatprep.mubr.bf16.mxu0 0
      %2502 = vmatmul.mubr.bf16.gmra.mxu0 %v2427
      %v2503 = vpop.f32.mrf.mxu0
      %v2504 = vadd.f32 0.0, %v2503
      %v2505 = vpop.f32.mrf.mxu0
      %v2506 = vadd.f32 0.0, %v2505
      %v2507 = vpop.f32.mrf.mxu0
      %v2508 = vpop.f32.mrf.mxu0
      %2509 = vdwg.mxu0
      %v2510 = vadd.f32 %v2423, %v2463
      %v2511 = vadd.f32 %v2424, %v2465
      %v2512 = vadd.f32 %v2425, %v2504
      %v2513 = vadd.f32 %v2426, %v2506
      %v2514 = vxor.u32 %v2510, 2147483648
      %v2515 = vmul.f32 %v2514, 1.442695
      %v2516 = vpow.pop %v2515
      %v2517 = vadd.f32 %v2516, 1.0
      %v2518 = vrcp.pop %v2517
      %v2519 = vmul.f32 1.0, %v2518
      %v2520 = vxor.u32 %v2511, 2147483648
      %v2521 = vmul.f32 %v2520, 1.442695
      %v2522 = vpow.pop %v2521
      %v2523 = vadd.f32 %v2522, 1.0
      %v2524 = vrcp.pop %v2523
      %v2525 = vmul.f32 1.0, %v2524
      %v2526 = vtanh.pop %v2512
      %v2527 = vxor.u32 %v2513, 2147483648
      %v2528 = vmul.f32 %v2527, 1.442695
      %v2529 = vpow.pop %v2528
      %v2530 = vadd.f32 %v2529, 1.0
      %v2531 = vrcp.pop %v2530
      %v2532 = vmul.f32 1.0, %v2531
      %v2533 = vmul.f32 %v2525, %v2419
      %v2534 = vmul.f32 %v2519, %v2526
      %v2535 = vadd.f32 %v2533, %v2534
      %v2536 = vtanh.pop %v2535
      %v2537 = vmul.f32 %v2532, %v2536
      %vm2538 = vcmp.gt.s32.totalorder %v842, 11
      %v2539 = vsel %vm2538, 1, 0
      %2540 = vset.pattern.permute.xlu0 0
      %2541 = vperm.xlu0 %2540, %v2539
      %v2542 = vpop.permute.xlu0 %2541
      %vm2543 = vcmp.eq.s32.totalorder %v2542, 1
      %v2544 = vsel %vm2543, %v2537, %v2418
      %v2545 = vsel %vm2543, %v2535, %v2419
      %s2546 = smul.u32 12, 4
      %s2547 = smul.addr %s2546, 8
      %s2548 = scalar_lea.vmem [#allocation2], %s2547
      %v2549 = vld [vmem:[%s2548] sm:$0xff]
      %v2550 = vld [vmem:[%s2548 + $0x8] sm:$0xff]
      %v2551 = vld [vmem:[%s2548 + $0x10] sm:$0xff]
      %v2552 = vld [vmem:[%s2548 + $0x18] sm:$0xff]
      %v2553 = vpack.c.bf16 %v2544, %v2544
      %2554 = vmatprep.subr.bf16.mxu0 %v1007
      %2555 = vmatpush1.bf16.msra.mxu0 %v1006
      %2556 = vmatprep.subr.bf16.mxu0 %v1003
      %2557 = vmatpush1.bf16.msra.mxu0 %v1002
      %2558 = vmatprep.subr.bf16.mxu0 %v999
      %2559 = vmatpush1.bf16.msra.mxu0 %v998
      %2560 = vmatprep.subr.bf16.mxu0 %v995
      %2561 = vmatpush1.bf16.msra.mxu0 %v994
      %2562 = vmatprep.subr.bf16.mxu0 %v991
      %2563 = vmatpush1.bf16.msra.mxu0 %v990
      %2564 = vmatprep.subr.bf16.mxu0 %v987
      %2565 = vmatpush1.bf16.msra.mxu0 %v986
      %2566 = vmatprep.subr.bf16.mxu0 %v983
      %2567 = vmatpush1.bf16.msra.mxu0 %v982
      %2568 = vmatprep.subr.bf16.mxu0 %v979
      %2569 = vmatpush1.bf16.msra.mxu0 %v978
      %2570 = vmatprep.subr.bf16.mxu0 0
      %2571 = vmatpush2.bf16.msra.mxu0 0
      %2572 = vmatprep.subr.bf16.mxu0 0
      %2573 = vmatpush2.bf16.msra.mxu0 0
      %2574 = vmatprep.subr.bf16.mxu0 0
      %2575 = vmatpush2.bf16.msra.mxu0 0
      %2576 = vmatprep.subr.bf16.mxu0 0
      %2577 = vmatpush2.bf16.msra.mxu0 0
      %2578 = vmatprep.subr.bf16.mxu0 0
      %2579 = vmatpush2.bf16.msra.mxu0 0
      %2580 = vmatprep.subr.bf16.mxu0 0
      %2581 = vmatpush2.bf16.msra.mxu0 0
      %2582 = vmatprep.subr.bf16.mxu0 0
      %2583 = vmatpush2.bf16.msra.mxu0 0
      %2584 = vmatprep.subr.bf16.mxu0 0
      %2585 = vmatpush2.bf16.msra.mxu0 0
      %2586 = vmatprep.mubr.bf16.mxu0 0
      %2587 = vmatmul.mubr.bf16.gmra.mxu0 %v2553
      %v2588 = vpop.f32.mrf.mxu0
      %v2589 = vadd.f32 0.0, %v2588
      %v2590 = vpop.f32.mrf.mxu0
      %v2591 = vadd.f32 0.0, %v2590
      %v2592 = vpop.f32.mrf.mxu0
      %v2593 = vpop.f32.mrf.mxu0
      %2594 = vdwg.mxu0
      %2595 = vmatprep.subr.bf16.mxu0 %v1009
      %2596 = vmatpush1.bf16.msra.mxu0 %v1008
      %2597 = vmatprep.subr.bf16.mxu0 %v1005
      %2598 = vmatpush1.bf16.msra.mxu0 %v1004
      %2599 = vmatprep.subr.bf16.mxu0 %v1001
      %2600 = vmatpush1.bf16.msra.mxu0 %v1000
      %2601 = vmatprep.subr.bf16.mxu0 %v997
      %2602 = vmatpush1.bf16.msra.mxu0 %v996
      %2603 = vmatprep.subr.bf16.mxu0 %v993
      %2604 = vmatpush1.bf16.msra.mxu0 %v992
      %2605 = vmatprep.subr.bf16.mxu0 %v989
      %2606 = vmatpush1.bf16.msra.mxu0 %v988
      %2607 = vmatprep.subr.bf16.mxu0 %v985
      %2608 = vmatpush1.bf16.msra.mxu0 %v984
      %2609 = vmatprep.subr.bf16.mxu0 %v981
      %2610 = vmatpush1.bf16.msra.mxu0 %v980
      %2611 = vmatprep.subr.bf16.mxu0 0
      %2612 = vmatpush2.bf16.msra.mxu0 0
      %2613 = vmatprep.subr.bf16.mxu0 0
      %2614 = vmatpush2.bf16.msra.mxu0 0
      %2615 = vmatprep.subr.bf16.mxu0 0
      %2616 = vmatpush2.bf16.msra.mxu0 0
      %2617 = vmatprep.subr.bf16.mxu0 0
      %2618 = vmatpush2.bf16.msra.mxu0 0
      %2619 = vmatprep.subr.bf16.mxu0 0
      %2620 = vmatpush2.bf16.msra.mxu0 0
      %2621 = vmatprep.subr.bf16.mxu0 0
      %2622 = vmatpush2.bf16.msra.mxu0 0
      %2623 = vmatprep.subr.bf16.mxu0 0
      %2624 = vmatpush2.bf16.msra.mxu0 0
      %2625 = vmatprep.subr.bf16.mxu0 0
      %2626 = vmatpush2.bf16.msra.mxu0 0
      %2627 = vmatprep.mubr.bf16.mxu0 0
      %2628 = vmatmul.mubr.bf16.gmra.mxu0 %v2553
      %v2629 = vpop.f32.mrf.mxu0
      %v2630 = vadd.f32 0.0, %v2629
      %v2631 = vpop.f32.mrf.mxu0
      %v2632 = vadd.f32 0.0, %v2631
      %v2633 = vpop.f32.mrf.mxu0
      %v2634 = vpop.f32.mrf.mxu0
      %2635 = vdwg.mxu0
      %v2636 = vadd.f32 %v2549, %v2589
      %v2637 = vadd.f32 %v2550, %v2591
      %v2638 = vadd.f32 %v2551, %v2630
      %v2639 = vadd.f32 %v2552, %v2632
      %v2640 = vxor.u32 %v2636, 2147483648
      %v2641 = vmul.f32 %v2640, 1.442695
      %v2642 = vpow.pop %v2641
      %v2643 = vadd.f32 %v2642, 1.0
      %v2644 = vrcp.pop %v2643
      %v2645 = vmul.f32 1.0, %v2644
      %v2646 = vxor.u32 %v2637, 2147483648
      %v2647 = vmul.f32 %v2646, 1.442695
      %v2648 = vpow.pop %v2647
      %v2649 = vadd.f32 %v2648, 1.0
      %v2650 = vrcp.pop %v2649
      %v2651 = vmul.f32 1.0, %v2650
      %v2652 = vtanh.pop %v2638
      %v2653 = vxor.u32 %v2639, 2147483648
      %v2654 = vmul.f32 %v2653, 1.442695
      %v2655 = vpow.pop %v2654
      %v2656 = vadd.f32 %v2655, 1.0
      %v2657 = vrcp.pop %v2656
      %v2658 = vmul.f32 1.0, %v2657
      %v2659 = vmul.f32 %v2651, %v2545
      %v2660 = vmul.f32 %v2645, %v2652
      %v2661 = vadd.f32 %v2659, %v2660
      %v2662 = vtanh.pop %v2661
      %v2663 = vmul.f32 %v2658, %v2662
      %vm2664 = vcmp.gt.s32.totalorder %v842, 12
      %v2665 = vsel %vm2664, 1, 0
      %2666 = vset.pattern.permute.xlu0 0
      %2667 = vperm.xlu0 %2666, %v2665
      %v2668 = vpop.permute.xlu0 %2667
      %vm2669 = vcmp.eq.s32.totalorder %v2668, 1
      %v2670 = vsel %vm2669, %v2663, %v2544
      %v2671 = vsel %vm2669, %v2661, %v2545
      %s2672 = smul.u32 13, 4
      %s2673 = smul.addr %s2672, 8
      %s2674 = scalar_lea.vmem [#allocation2], %s2673
      %v2675 = vld [vmem:[%s2674] sm:$0xff]
      %v2676 = vld [vmem:[%s2674 + $0x8] sm:$0xff]
      %v2677 = vld [vmem:[%s2674 + $0x10] sm:$0xff]
      %v2678 = vld [vmem:[%s2674 + $0x18] sm:$0xff]
      %v2679 = vpack.c.bf16 %v2670, %v2670
      %2680 = vmatprep.subr.bf16.mxu0 %v1007
      %2681 = vmatpush1.bf16.msra.mxu0 %v1006
      %2682 = vmatprep.subr.bf16.mxu0 %v1003
      %2683 = vmatpush1.bf16.msra.mxu0 %v1002
      %2684 = vmatprep.subr.bf16.mxu0 %v999
      %2685 = vmatpush1.bf16.msra.mxu0 %v998
      %2686 = vmatprep.subr.bf16.mxu0 %v995
      %2687 = vmatpush1.bf16.msra.mxu0 %v994
      %2688 = vmatprep.subr.bf16.mxu0 %v991
      %2689 = vmatpush1.bf16.msra.mxu0 %v990
      %2690 = vmatprep.subr.bf16.mxu0 %v987
      %2691 = vmatpush1.bf16.msra.mxu0 %v986
      %2692 = vmatprep.subr.bf16.mxu0 %v983
      %2693 = vmatpush1.bf16.msra.mxu0 %v982
      %2694 = vmatprep.subr.bf16.mxu0 %v979
      %2695 = vmatpush1.bf16.msra.mxu0 %v978
      %2696 = vmatprep.subr.bf16.mxu0 0
      %2697 = vmatpush2.bf16.msra.mxu0 0
      %2698 = vmatprep.subr.bf16.mxu0 0
      %2699 = vmatpush2.bf16.msra.mxu0 0
      %2700 = vmatprep.subr.bf16.mxu0 0
      %2701 = vmatpush2.bf16.msra.mxu0 0
      %2702 = vmatprep.subr.bf16.mxu0 0
      %2703 = vmatpush2.bf16.msra.mxu0 0
      %2704 = vmatprep.subr.bf16.mxu0 0
      %2705 = vmatpush2.bf16.msra.mxu0 0
      %2706 = vmatprep.subr.bf16.mxu0 0
      %2707 = vmatpush2.bf16.msra.mxu0 0
      %2708 = vmatprep.subr.bf16.mxu0 0
      %2709 = vmatpush2.bf16.msra.mxu0 0
      %2710 = vmatprep.subr.bf16.mxu0 0
      %2711 = vmatpush2.bf16.msra.mxu0 0
      %2712 = vmatprep.mubr.bf16.mxu0 0
      %2713 = vmatmul.mubr.bf16.gmra.mxu0 %v2679
      %v2714 = vpop.f32.mrf.mxu0
      %v2715 = vadd.f32 0.0, %v2714
      %v2716 = vpop.f32.mrf.mxu0
      %v2717 = vadd.f32 0.0, %v2716
      %v2718 = vpop.f32.mrf.mxu0
      %v2719 = vpop.f32.mrf.mxu0
      %2720 = vdwg.mxu0
      %2721 = vmatprep.subr.bf16.mxu0 %v1009
      %2722 = vmatpush1.bf16.msra.mxu0 %v1008
      %2723 = vmatprep.subr.bf16.mxu0 %v1005
      %2724 = vmatpush1.bf16.msra.mxu0 %v1004
      %2725 = vmatprep.subr.bf16.mxu0 %v1001
      %2726 = vmatpush1.bf16.msra.mxu0 %v1000
      %2727 = vmatprep.subr.bf16.mxu0 %v997
      %2728 = vmatpush1.bf16.msra.mxu0 %v996
      %2729 = vmatprep.subr.bf16.mxu0 %v993
      %2730 = vmatpush1.bf16.msra.mxu0 %v992
      %2731 = vmatprep.subr.bf16.mxu0 %v989
      %2732 = vmatpush1.bf16.msra.mxu0 %v988
      %2733 = vmatprep.subr.bf16.mxu0 %v985
      %2734 = vmatpush1.bf16.msra.mxu0 %v984
      %2735 = vmatprep.subr.bf16.mxu0 %v981
      %2736 = vmatpush1.bf16.msra.mxu0 %v980
      %2737 = vmatprep.subr.bf16.mxu0 0
      %2738 = vmatpush2.bf16.msra.mxu0 0
      %2739 = vmatprep.subr.bf16.mxu0 0
      %2740 = vmatpush2.bf16.msra.mxu0 0
      %2741 = vmatprep.subr.bf16.mxu0 0
      %2742 = vmatpush2.bf16.msra.mxu0 0
      %2743 = vmatprep.subr.bf16.mxu0 0
      %2744 = vmatpush2.bf16.msra.mxu0 0
      %2745 = vmatprep.subr.bf16.mxu0 0
      %2746 = vmatpush2.bf16.msra.mxu0 0
      %2747 = vmatprep.subr.bf16.mxu0 0
      %2748 = vmatpush2.bf16.msra.mxu0 0
      %2749 = vmatprep.subr.bf16.mxu0 0
      %2750 = vmatpush2.bf16.msra.mxu0 0
      %2751 = vmatprep.subr.bf16.mxu0 0
      %2752 = vmatpush2.bf16.msra.mxu0 0
      %2753 = vmatprep.mubr.bf16.mxu0 0
      %2754 = vmatmul.mubr.bf16.gmra.mxu0 %v2679
      %v2755 = vpop.f32.mrf.mxu0
      %v2756 = vadd.f32 0.0, %v2755
      %v2757 = vpop.f32.mrf.mxu0
      %v2758 = vadd.f32 0.0, %v2757
      %v2759 = vpop.f32.mrf.mxu0
      %v2760 = vpop.f32.mrf.mxu0
      %2761 = vdwg.mxu0
      %v2762 = vadd.f32 %v2675, %v2715
      %v2763 = vadd.f32 %v2676, %v2717
      %v2764 = vadd.f32 %v2677, %v2756
      %v2765 = vadd.f32 %v2678, %v2758
      %v2766 = vxor.u32 %v2762, 2147483648
      %v2767 = vmul.f32 %v2766, 1.442695
      %v2768 = vpow.pop %v2767
      %v2769 = vadd.f32 %v2768, 1.0
      %v2770 = vrcp.pop %v2769
      %v2771 = vmul.f32 1.0, %v2770
      %v2772 = vxor.u32 %v2763, 2147483648
      %v2773 = vmul.f32 %v2772, 1.442695
      %v2774 = vpow.pop %v2773
      %v2775 = vadd.f32 %v2774, 1.0
      %v2776 = vrcp.pop %v2775
      %v2777 = vmul.f32 1.0, %v2776
      %v2778 = vtanh.pop %v2764
      %v2779 = vxor.u32 %v2765, 2147483648
      %v2780 = vmul.f32 %v2779, 1.442695
      %v2781 = vpow.pop %v2780
      %v2782 = vadd.f32 %v2781, 1.0
      %v2783 = vrcp.pop %v2782
      %v2784 = vmul.f32 1.0, %v2783
      %v2785 = vmul.f32 %v2777, %v2671
      %v2786 = vmul.f32 %v2771, %v2778
      %v2787 = vadd.f32 %v2785, %v2786
      %v2788 = vtanh.pop %v2787
      %v2789 = vmul.f32 %v2784, %v2788
      %vm2790 = vcmp.gt.s32.totalorder %v842, 13
      %v2791 = vsel %vm2790, 1, 0
      %2792 = vset.pattern.permute.xlu0 0
      %2793 = vperm.xlu0 %2792, %v2791
      %v2794 = vpop.permute.xlu0 %2793
      %vm2795 = vcmp.eq.s32.totalorder %v2794, 1
      %v2796 = vsel %vm2795, %v2789, %v2670
      %v2797 = vsel %vm2795, %v2787, %v2671
      %s2798 = smul.u32 14, 4
      %s2799 = smul.addr %s2798, 8
      %s2800 = scalar_lea.vmem [#allocation2], %s2799
      %v2801 = vld [vmem:[%s2800] sm:$0xff]
      %v2802 = vld [vmem:[%s2800 + $0x8] sm:$0xff]
      %v2803 = vld [vmem:[%s2800 + $0x10] sm:$0xff]
      %v2804 = vld [vmem:[%s2800 + $0x18] sm:$0xff]
      %v2805 = vpack.c.bf16 %v2796, %v2796
      %2806 = vmatprep.subr.bf16.mxu0 %v1007
      %2807 = vmatpush1.bf16.msra.mxu0 %v1006
      %2808 = vmatprep.subr.bf16.mxu0 %v1003
      %2809 = vmatpush1.bf16.msra.mxu0 %v1002
      %2810 = vmatprep.subr.bf16.mxu0 %v999
      %2811 = vmatpush1.bf16.msra.mxu0 %v998
      %2812 = vmatprep.subr.bf16.mxu0 %v995
      %2813 = vmatpush1.bf16.msra.mxu0 %v994
      %2814 = vmatprep.subr.bf16.mxu0 %v991
      %2815 = vmatpush1.bf16.msra.mxu0 %v990
      %2816 = vmatprep.subr.bf16.mxu0 %v987
      %2817 = vmatpush1.bf16.msra.mxu0 %v986
      %2818 = vmatprep.subr.bf16.mxu0 %v983
      %2819 = vmatpush1.bf16.msra.mxu0 %v982
      %2820 = vmatprep.subr.bf16.mxu0 %v979
      %2821 = vmatpush1.bf16.msra.mxu0 %v978
      %2822 = vmatprep.subr.bf16.mxu0 0
      %2823 = vmatpush2.bf16.msra.mxu0 0
      %2824 = vmatprep.subr.bf16.mxu0 0
      %2825 = vmatpush2.bf16.msra.mxu0 0
      %2826 = vmatprep.subr.bf16.mxu0 0
      %2827 = vmatpush2.bf16.msra.mxu0 0
      %2828 = vmatprep.subr.bf16.mxu0 0
      %2829 = vmatpush2.bf16.msra.mxu0 0
      %2830 = vmatprep.subr.bf16.mxu0 0
      %2831 = vmatpush2.bf16.msra.mxu0 0
      %2832 = vmatprep.subr.bf16.mxu0 0
      %2833 = vmatpush2.bf16.msra.mxu0 0
      %2834 = vmatprep.subr.bf16.mxu0 0
      %2835 = vmatpush2.bf16.msra.mxu0 0
      %2836 = vmatprep.subr.bf16.mxu0 0
      %2837 = vmatpush2.bf16.msra.mxu0 0
      %2838 = vmatprep.mubr.bf16.mxu0 0
      %2839 = vmatmul.mubr.bf16.gmra.mxu0 %v2805
      %v2840 = vpop.f32.mrf.mxu0
      %v2841 = vadd.f32 0.0, %v2840
      %v2842 = vpop.f32.mrf.mxu0
      %v2843 = vadd.f32 0.0, %v2842
      %v2844 = vpop.f32.mrf.mxu0
      %v2845 = vpop.f32.mrf.mxu0
      %2846 = vdwg.mxu0
      %2847 = vmatprep.subr.bf16.mxu0 %v1009
      %2848 = vmatpush1.bf16.msra.mxu0 %v1008
      %2849 = vmatprep.subr.bf16.mxu0 %v1005
      %2850 = vmatpush1.bf16.msra.mxu0 %v1004
      %2851 = vmatprep.subr.bf16.mxu0 %v1001
      %2852 = vmatpush1.bf16.msra.mxu0 %v1000
      %2853 = vmatprep.subr.bf16.mxu0 %v997
      %2854 = vmatpush1.bf16.msra.mxu0 %v996
      %2855 = vmatprep.subr.bf16.mxu0 %v993
      %2856 = vmatpush1.bf16.msra.mxu0 %v992
      %2857 = vmatprep.subr.bf16.mxu0 %v989
      %2858 = vmatpush1.bf16.msra.mxu0 %v988
      %2859 = vmatprep.subr.bf16.mxu0 %v985
      %2860 = vmatpush1.bf16.msra.mxu0 %v984
      %2861 = vmatprep.subr.bf16.mxu0 %v981
      %2862 = vmatpush1.bf16.msra.mxu0 %v980
      %2863 = vmatprep.subr.bf16.mxu0 0
      %2864 = vmatpush2.bf16.msra.mxu0 0
      %2865 = vmatprep.subr.bf16.mxu0 0
      %2866 = vmatpush2.bf16.msra.mxu0 0
      %2867 = vmatprep.subr.bf16.mxu0 0
      %2868 = vmatpush2.bf16.msra.mxu0 0
      %2869 = vmatprep.subr.bf16.mxu0 0
      %2870 = vmatpush2.bf16.msra.mxu0 0
      %2871 = vmatprep.subr.bf16.mxu0 0
      %2872 = vmatpush2.bf16.msra.mxu0 0
      %2873 = vmatprep.subr.bf16.mxu0 0
      %2874 = vmatpush2.bf16.msra.mxu0 0
      %2875 = vmatprep.subr.bf16.mxu0 0
      %2876 = vmatpush2.bf16.msra.mxu0 0
      %2877 = vmatprep.subr.bf16.mxu0 0
      %2878 = vmatpush2.bf16.msra.mxu0 0
      %2879 = vmatprep.mubr.bf16.mxu0 0
      %2880 = vmatmul.mubr.bf16.gmra.mxu0 %v2805
      %v2881 = vpop.f32.mrf.mxu0
      %v2882 = vadd.f32 0.0, %v2881
      %v2883 = vpop.f32.mrf.mxu0
      %v2884 = vadd.f32 0.0, %v2883
      %v2885 = vpop.f32.mrf.mxu0
      %v2886 = vpop.f32.mrf.mxu0
      %2887 = vdwg.mxu0
      %v2888 = vadd.f32 %v2801, %v2841
      %v2889 = vadd.f32 %v2802, %v2843
      %v2890 = vadd.f32 %v2803, %v2882
      %v2891 = vadd.f32 %v2804, %v2884
      %v2892 = vxor.u32 %v2888, 2147483648
      %v2893 = vmul.f32 %v2892, 1.442695
      %v2894 = vpow.pop %v2893
      %v2895 = vadd.f32 %v2894, 1.0
      %v2896 = vrcp.pop %v2895
      %v2897 = vmul.f32 1.0, %v2896
      %v2898 = vxor.u32 %v2889, 2147483648
      %v2899 = vmul.f32 %v2898, 1.442695
      %v2900 = vpow.pop %v2899
      %v2901 = vadd.f32 %v2900, 1.0
      %v2902 = vrcp.pop %v2901
      %v2903 = vmul.f32 1.0, %v2902
      %v2904 = vtanh.pop %v2890
      %v2905 = vxor.u32 %v2891, 2147483648
      %v2906 = vmul.f32 %v2905, 1.442695
      %v2907 = vpow.pop %v2906
      %v2908 = vadd.f32 %v2907, 1.0
      %v2909 = vrcp.pop %v2908
      %v2910 = vmul.f32 1.0, %v2909
      %v2911 = vmul.f32 %v2903, %v2797
      %v2912 = vmul.f32 %v2897, %v2904
      %v2913 = vadd.f32 %v2911, %v2912
      %v2914 = vtanh.pop %v2913
      %v2915 = vmul.f32 %v2910, %v2914
      %vm2916 = vcmp.gt.s32.totalorder %v842, 14
      %v2917 = vsel %vm2916, 1, 0
      %2918 = vset.pattern.permute.xlu0 0
      %2919 = vperm.xlu0 %2918, %v2917
      %v2920 = vpop.permute.xlu0 %2919
      %vm2921 = vcmp.eq.s32.totalorder %v2920, 1
      %v2922 = vsel %vm2921, %v2915, %v2796
      %v2923 = vsel %vm2921, %v2913, %v2797
      %s2924 = smul.u32 15, 4
      %s2925 = smul.addr %s2924, 8
      %s2926 = scalar_lea.vmem [#allocation2], %s2925
      %v2927 = vld [vmem:[%s2926] sm:$0xff]
      %v2928 = vld [vmem:[%s2926 + $0x8] sm:$0xff]
      %v2929 = vld [vmem:[%s2926 + $0x10] sm:$0xff]
      %v2930 = vld [vmem:[%s2926 + $0x18] sm:$0xff]
      %v2931 = vpack.c.bf16 %v2922, %v2922
      %2932 = vmatprep.subr.bf16.mxu0 %v1007
      %2933 = vmatpush1.bf16.msra.mxu0 %v1006
      %2934 = vmatprep.subr.bf16.mxu0 %v1003
      %2935 = vmatpush1.bf16.msra.mxu0 %v1002
      %2936 = vmatprep.subr.bf16.mxu0 %v999
      %2937 = vmatpush1.bf16.msra.mxu0 %v998
      %2938 = vmatprep.subr.bf16.mxu0 %v995
      %2939 = vmatpush1.bf16.msra.mxu0 %v994
      %2940 = vmatprep.subr.bf16.mxu0 %v991
      %2941 = vmatpush1.bf16.msra.mxu0 %v990
      %2942 = vmatprep.subr.bf16.mxu0 %v987
      %2943 = vmatpush1.bf16.msra.mxu0 %v986
      %2944 = vmatprep.subr.bf16.mxu0 %v983
      %2945 = vmatpush1.bf16.msra.mxu0 %v982
      %2946 = vmatprep.subr.bf16.mxu0 %v979
      %2947 = vmatpush1.bf16.msra.mxu0 %v978
      %2948 = vmatprep.subr.bf16.mxu0 0
      %2949 = vmatpush2.bf16.msra.mxu0 0
      %2950 = vmatprep.subr.bf16.mxu0 0
      %2951 = vmatpush2.bf16.msra.mxu0 0
      %2952 = vmatprep.subr.bf16.mxu0 0
      %2953 = vmatpush2.bf16.msra.mxu0 0
      %2954 = vmatprep.subr.bf16.mxu0 0
      %2955 = vmatpush2.bf16.msra.mxu0 0
      %2956 = vmatprep.subr.bf16.mxu0 0
      %2957 = vmatpush2.bf16.msra.mxu0 0
      %2958 = vmatprep.subr.bf16.mxu0 0
      %2959 = vmatpush2.bf16.msra.mxu0 0
      %2960 = vmatprep.subr.bf16.mxu0 0
      %2961 = vmatpush2.bf16.msra.mxu0 0
      %2962 = vmatprep.subr.bf16.mxu0 0
      %2963 = vmatpush2.bf16.msra.mxu0 0
      %2964 = vmatprep.mubr.bf16.mxu0 0
      %2965 = vmatmul.mubr.bf16.gmra.mxu0 %v2931
      %v2966 = vpop.f32.mrf.mxu0
      %v2967 = vadd.f32 0.0, %v2966
      %v2968 = vpop.f32.mrf.mxu0
      %v2969 = vadd.f32 0.0, %v2968
      %v2970 = vpop.f32.mrf.mxu0
      %v2971 = vpop.f32.mrf.mxu0
      %2972 = vdwg.mxu0
      %2973 = vmatprep.subr.bf16.mxu0 %v1009
      %2974 = vmatpush1.bf16.msra.mxu0 %v1008
      %2975 = vmatprep.subr.bf16.mxu0 %v1005
      %2976 = vmatpush1.bf16.msra.mxu0 %v1004
      %2977 = vmatprep.subr.bf16.mxu0 %v1001
      %2978 = vmatpush1.bf16.msra.mxu0 %v1000
      %2979 = vmatprep.subr.bf16.mxu0 %v997
      %2980 = vmatpush1.bf16.msra.mxu0 %v996
      %2981 = vmatprep.subr.bf16.mxu0 %v993
      %2982 = vmatpush1.bf16.msra.mxu0 %v992
      %2983 = vmatprep.subr.bf16.mxu0 %v989
      %2984 = vmatpush1.bf16.msra.mxu0 %v988
      %2985 = vmatprep.subr.bf16.mxu0 %v985
      %2986 = vmatpush1.bf16.msra.mxu0 %v984
      %2987 = vmatprep.subr.bf16.mxu0 %v981
      %2988 = vmatpush1.bf16.msra.mxu0 %v980
      %2989 = vmatprep.subr.bf16.mxu0 0
      %2990 = vmatpush2.bf16.msra.mxu0 0
      %2991 = vmatprep.subr.bf16.mxu0 0
      %2992 = vmatpush2.bf16.msra.mxu0 0
      %2993 = vmatprep.subr.bf16.mxu0 0
      %2994 = vmatpush2.bf16.msra.mxu0 0
      %2995 = vmatprep.subr.bf16.mxu0 0
      %2996 = vmatpush2.bf16.msra.mxu0 0
      %2997 = vmatprep.subr.bf16.mxu0 0
      %2998 = vmatpush2.bf16.msra.mxu0 0
      %2999 = vmatprep.subr.bf16.mxu0 0
      %3000 = vmatpush2.bf16.msra.mxu0 0
      %3001 = vmatprep.subr.bf16.mxu0 0
      %3002 = vmatpush2.bf16.msra.mxu0 0
      %3003 = vmatprep.subr.bf16.mxu0 0
      %3004 = vmatpush2.bf16.msra.mxu0 0
      %3005 = vmatprep.mubr.bf16.mxu0 0
      %3006 = vmatmul.mubr.bf16.gmra.mxu0 %v2931
      %v3007 = vpop.f32.mrf.mxu0
      %v3008 = vadd.f32 0.0, %v3007
      %v3009 = vpop.f32.mrf.mxu0
      %v3010 = vadd.f32 0.0, %v3009
      %v3011 = vpop.f32.mrf.mxu0
      %v3012 = vpop.f32.mrf.mxu0
      %3013 = vdwg.mxu0
      %v3014 = vadd.f32 %v2927, %v2967
      %v3015 = vadd.f32 %v2928, %v2969
      %v3016 = vadd.f32 %v2929, %v3008
      %v3017 = vadd.f32 %v2930, %v3010
      %v3018 = vxor.u32 %v3014, 2147483648
      %v3019 = vmul.f32 %v3018, 1.442695
      %v3020 = vpow.pop %v3019
      %v3021 = vadd.f32 %v3020, 1.0
      %v3022 = vrcp.pop %v3021
      %v3023 = vmul.f32 1.0, %v3022
      %v3024 = vxor.u32 %v3015, 2147483648
      %v3025 = vmul.f32 %v3024, 1.442695
      %v3026 = vpow.pop %v3025
      %v3027 = vadd.f32 %v3026, 1.0
      %v3028 = vrcp.pop %v3027
      %v3029 = vmul.f32 1.0, %v3028
      %v3030 = vtanh.pop %v3016
      %v3031 = vxor.u32 %v3017, 2147483648
      %v3032 = vmul.f32 %v3031, 1.442695
      %v3033 = vpow.pop %v3032
      %v3034 = vadd.f32 %v3033, 1.0
      %v3035 = vrcp.pop %v3034
      %v3036 = vmul.f32 1.0, %v3035
      %v3037 = vmul.f32 %v3029, %v2923
      %v3038 = vmul.f32 %v3023, %v3030
      %v3039 = vadd.f32 %v3037, %v3038
      %v3040 = vtanh.pop %v3039
      %v3041 = vmul.f32 %v3036, %v3040
      %vm3042 = vcmp.gt.s32.totalorder %v842, 15
      %v3043 = vsel %vm3042, 1, 0
      %3044 = vset.pattern.permute.xlu0 0
      %3045 = vperm.xlu0 %3044, %v3043
      %v3046 = vpop.permute.xlu0 %3045
      %vm3047 = vcmp.eq.s32.totalorder %v3046, 1
      %v3048 = vsel %vm3047, %v3041, %v2922
      %v3049 = vpack.c.bf16 %v3048, %v3048
      %v3050 = vld [vmem:[%s5] sm:$0xf]
      %v3051 = vld [vmem:[%s5 + $0x4] sm:$0xf]
      %v3052 = vld [vmem:[%s5 + $0x8] sm:$0xf]
      %v3053 = vld [vmem:[%s5 + $0xc] sm:$0xf]
      %v3054 = vld [vmem:[%s5 + $0x10] sm:$0xf]
      %v3055 = vld [vmem:[%s5 + $0x14] sm:$0xf]
      %v3056 = vld [vmem:[%s5 + $0x18] sm:$0xf]
      %v3057 = vld [vmem:[%s5 + $0x1c] sm:$0xf]
      %v3058 = vld [vmem:[%s5 + $0x20] sm:$0xf]
      %v3059 = vld [vmem:[%s5 + $0x24] sm:$0xf]
      %v3060 = vld [vmem:[%s5 + $0x28] sm:$0xf]
      %v3061 = vld [vmem:[%s5 + $0x2c] sm:$0xf]
      %v3062 = vld [vmem:[%s5 + $0x30] sm:$0xf]
      %v3063 = vld [vmem:[%s5 + $0x34] sm:$0xf]
      %v3064 = vld [vmem:[%s5 + $0x38] sm:$0xf]
      %v3065 = vld [vmem:[%s5 + $0x3c] sm:$0xf]
      %v3066 = vld [vmem:[%s6] sm:$0x1]
      %v3068 = vlaneseq
      %v3069 = vshrl.u32 %v3068, 7
      %v3070 = vsub.s32 0, %v3069
      %v3071 = vrot.slane %v3066, %v3070
      %v3089 = vunpack.c.l.b16 %v3050
      %v3090 = vunpack.c.l.b16 %v3051
      %v3091 = vunpack.c.l.b16 %v3052
      %v3092 = vunpack.c.l.b16 %v3053
      %v3093 = vunpack.c.l.b16 %v3054
      %v3094 = vunpack.c.l.b16 %v3055
      %v3095 = vunpack.c.l.b16 %v3056
      %v3096 = vunpack.c.l.b16 %v3057
      %v3097 = vunpack.c.l.b16 %v3058
      %v3098 = vunpack.c.l.b16 %v3059
      %v3099 = vunpack.c.l.b16 %v3060
      %v3100 = vunpack.c.l.b16 %v3061
      %v3101 = vunpack.c.l.b16 %v3062
      %v3102 = vunpack.c.l.b16 %v3063
      %v3103 = vunpack.c.l.b16 %v3064
      %v3104 = vunpack.c.l.b16 %v3065
      %v3105 = vpack.c.b16 %v3090, %v3089
      %v3106 = vpack.c.b16 %v3092, %v3091
      %v3107 = vpack.c.b16 %v3094, %v3093
      %v3108 = vpack.c.b16 %v3096, %v3095
      %v3109 = vpack.c.b16 %v3098, %v3097
      %v3110 = vpack.c.b16 %v3100, %v3099
      %v3111 = vpack.c.b16 %v3102, %v3101
      %v3112 = vpack.c.b16 %v3104, %v3103
      %3121 = vmatprep.subr.bf16.mxu0 0
      %3122 = vmatpush1.bf16.msra.mxu0 %v3112
      %3123 = vmatprep.subr.bf16.mxu0 0
      %3124 = vmatpush1.bf16.msra.mxu0 %v3111
      %3125 = vmatprep.subr.bf16.mxu0 0
      %3126 = vmatpush1.bf16.msra.mxu0 %v3110
      %3127 = vmatprep.subr.bf16.mxu0 0
      %3128 = vmatpush1.bf16.msra.mxu0 %v3109
      %3129 = vmatprep.subr.bf16.mxu0 0
      %3130 = vmatpush1.bf16.msra.mxu0 %v3108
      %3131 = vmatprep.subr.bf16.mxu0 0
      %3132 = vmatpush1.bf16.msra.mxu0 %v3107
      %3133 = vmatprep.subr.bf16.mxu0 0
      %3134 = vmatpush1.bf16.msra.mxu0 %v3106
      %3135 = vmatprep.subr.bf16.mxu0 0
      %3136 = vmatpush1.bf16.msra.mxu0 %v3105
      %3137 = vmatprep.subr.bf16.mxu0 0
      %3138 = vmatpush2.bf16.msra.mxu0 0
      %3139 = vmatprep.subr.bf16.mxu0 0
      %3140 = vmatpush2.bf16.msra.mxu0 0
      %3141 = vmatprep.subr.bf16.mxu0 0
      %3142 = vmatpush2.bf16.msra.mxu0 0
      %3143 = vmatprep.subr.bf16.mxu0 0
      %3144 = vmatpush2.bf16.msra.mxu0 0
      %3145 = vmatprep.subr.bf16.mxu0 0
      %3146 = vmatpush2.bf16.msra.mxu0 0
      %3147 = vmatprep.subr.bf16.mxu0 0
      %3148 = vmatpush2.bf16.msra.mxu0 0
      %3149 = vmatprep.subr.bf16.mxu0 0
      %3150 = vmatpush2.bf16.msra.mxu0 0
      %3151 = vmatprep.subr.bf16.mxu0 0
      %3152 = vmatpush2.bf16.msra.mxu0 0
      %3153 = vmatprep.mubr.bf16.mxu0 0
      %3154 = vmatmul.mubr.bf16.gmra.mxu0 %v3049
      %v3155 = vpop.f32.mrf.mxu0
      %v3156 = vadd.f32 %v3071, %v3155
      %v3157 = vpop.f32.mrf.mxu0
      %v3158 = vpop.f32.mrf.mxu0
      %v3159 = vpop.f32.mrf.mxu0
      %3160 = vdwg.mxu0
      %v3161 = vmax.f32 %v3156, 0.0
      %v3162 = vld [vmem:[%s7] sm:$0x1]
      %v3164 = vlaneseq
      %v3165 = vshrl.u32 %v3164, 7
      %v3166 = vsub.s32 0, %v3165
      %v3167 = vrot.slane %v3162, %v3166
      %v3169 = vmul.f32 %v3161, %v3167
      %3170 = vadd.xlane.f32.xlu0 %v3169
      %v3171 = vpop.xlane.xlu0 %3170
      %v3172 = vld [vmem:[#allocation3] sm:$0x1]
      %v3174 = vlaneseq
      %v3175 = vshrl.u32 %v3174, 7
      %v3176 = vsub.s32 0, %v3175
      %v3177 = vrot.slane %v3172, %v3176
      %v3179 = vadd.f32 %v3171, %v3177
      %v3180 = vxor.u32 %v3179, 2147483648
      %v3181 = vmul.f32 %v3180, 1.442695
      %v3182 = vpow.pop %v3181
      %v3183 = vadd.f32 %v3182, 1.0
      %v3184 = vrcp.pop %v3183
      %v3185 = vmul.f32 1.0, %v3184
      %vm3186 = vcmask 7168
      %3187 = vst.msk [vmem:[%s351] sm:$0xff] %vm3186, %v3185
      %p3188 = scmp.lt.s32.totalorder %s22, 1
      %s3189 = scalar_select %p3188, %s22, 1
      %s3190 = smul.addr %s3189, 8
      %s3191 = scalar_lea.vmem %s9, %s3190
      // Predicated region
      $region57: #{rnn_forward.1} parent=55 // pred_check
        %p3192 = pneg %p239
      $region58: #{rnn_forward.1} parent=55 // pred_check_branch
        %3194 = sbr.rel (%p3192) target = $region60
      $region59: #{rnn_forward.1} parent=55 // pred_region
        _
      $region60: #{rnn_forward.1} parent=55 // pred_fallthru
        _
    $region56: #{rnn_forward.1} parent=5 // pred_fallthru
      _
    %p3195 = scmp.le.s32.totalorder 2, %s17
    // Predicated region
    $region61: #{rnn_forward.1} parent=5 // pred_check
      %p3196 = pneg %p3195
    $region62: #{rnn_forward.1} parent=5 // pred_check_branch
      %3198 = sbr.rel (%p3196) target = $region64
    $region63: #{rnn_forward.1} parent=5 // pred_region
      %s3199 = ssub.s32 %s17, 2
      // Predicated region
      $region65: #{rnn_forward.1} parent=63 // pred_check
        %p3200 = pneg %p245
      $region66: #{rnn_forward.1} parent=63 // pred_check_branch
        %3202 = sbr.rel (%p3200) target = $region68
      $region67: #{rnn_forward.1} parent=63 // pred_region
        %p3203 = scmp.lt.s32.totalorder %s23, 1
        %s3204 = scalar_select %p3203, %s23, 1
        %s3205 = smul.addr %s3204, 8
        %s3206 = scalar_lea.vmem %s9, %s3205
      $region68: #{rnn_forward.1} parent=63 // pred_fallthru
        _
    $region64: #{rnn_forward.1} parent=5 // pred_fallthru
      _
  $region6: #{rnn_forward.1} parent=0 // loop_footer
    %s21 = sadd.s32 1, %s17
  $region7: #{rnn_forward.1} parent=0 // loop_footer_branch
    %16 = sbr.rel target = $region3
  $region8: #{rnn_forward.1} parent=0 // loop_exit
    _

</llo_original>
